<compile_context>
chip_gen: v6e
topology: v6e:2x2x1
jax: 0.10.0
libtpu: 0.0.40
codegen_flags: <defaults>
</compile_context>

<pallas_src>
import jax
import jax.numpy as jnp
from jax import lax
from jax.experimental import pallas as pl
from jax.experimental.pallas import tpu as pltpu


def _round_up(a, b):
    return (a + b - 1) // b * b


def _conv2d_cd_kernel(xs_ref, w_ref, o_ref, acc_ref):
    # xs_ref : (1, 1, TH+2, Wp, Cin_p)  zero-padded, halo'd row strip
    # w_ref  : (3, 3, Cin_p, TCout)     3x3 weight tile (centre tap pre-folded)
    # o_ref  : (1, 1, TH, Wp, TCout)    lane-dense output strip
    # acc_ref: (TH*Wp, TCout) f32       VMEM accumulator
    TH = o_ref.shape[2]
    Wp = o_ref.shape[3]
    TCout = o_ref.shape[4]
    Cin = xs_ref.shape[4]
    M = TH * Wp

    xs = xs_ref[0, 0]                                    # (TH+2, Wp, Cin)

    # Roll the cheaper operand on the XLU (overlaps the MXU matmul of the
    # neighbouring tap): the input strip when it is narrower than the output
    # tile (the common case), otherwise the f32 product.  Input rolls are only
    # taken for f32 activations to avoid packed-dtype sublane rolls.
    roll_input = (xs.dtype == jnp.float32) and (Cin <= TCout)

    first = True
    for kh in range(3):
        # One layout-preserving flatten per kh (Wp % 8 == 0) instead of nine
        # misaligned, (8,128)-tile-crossing slice+reshape copies.
        strip = xs[kh:kh + TH].reshape(M, Cin)           # (TH*Wp, Cin)
        for kw in range(3):
            # Align the kw tap: out[h, w] needs the contribution of the input
            # row at flat index (h*Wp + w + kw), i.e. a roll by -kw along the
            # flattened axis.  Wrapped rows only land in the width/height
            # padding that is cropped away in the wrapper.
            if roll_input:
                lhs = strip if kw == 0 else pltpu.roll(strip, shift=M - kw, axis=0)
                r = jnp.dot(lhs, w_ref[kh, kw],
                            preferred_element_type=jnp.float32)      # (M, TCout)
            else:
                p = jnp.dot(strip, w_ref[kh, kw],
                            preferred_element_type=jnp.float32)      # (M, TCout)
                r = p if kw == 0 else pltpu.roll(p, shift=M - kw, axis=0)
            if first:
                acc_ref[...] = r
                first = False
            else:
                acc_ref[...] += r

    o_ref[0, 0] = acc_ref[...].reshape(TH, Wp, TCout).astype(o_ref.dtype)


def conv2d_cd(x_nchw, weight_oihw, *, tile_h=16, tile_cout=128,
              compute_dtype=None, vmem_budget_bytes=24 * 1024 * 1024):
    """Central-difference 3x3 conv (stride=1, pad=1, bias=False).

    x: (N, Cin, H, W); weight: (Cout, Cin, 3, 3).  Returns (N, Cout, H, W).
    compute_dtype: optionally cast activations/weights (e.g. jnp.bfloat16 on
    v6e/v7x); MXU accumulation stays f32.
    """
    N, Cin, H, W = x_nchw.shape
    Cout = weight_oihw.shape[0]
    out_dtype = x_nchw.dtype

    # ---- fold the 1x1 kernel_diff conv into the centre tap of the 3x3 ----
    w_hwio = jnp.transpose(weight_oihw, (2, 3, 1, 0))         # (3,3,Cin,Cout)
    w_hwio = w_hwio.at[1, 1].add(-jnp.sum(w_hwio, axis=(0, 1)))

    # ---- padded / tiled sizes ----
    Cin_p = _round_up(Cin, 8)                  # sublane-aligned contraction dim
    Cout_p = _round_up(Cout, 128)              # lane-dense output channels
    TC = min(tile_cout, Cout_p)
    assert TC % 128 == 0 and Cout_p % TC == 0
    Wp = _round_up(W + 2, 8)                   # pad=1 both sides, then to x8

    in_esize = (jnp.dtype(compute_dtype).itemsize if compute_dtype is not None
                else jnp.dtype(x_nchw.dtype).itemsize)
    out_esize = jnp.dtype(out_dtype).itemsize

    def _footprint(th):
        x_blk = (th + 2) * Wp * Cin_p * in_esize * 2      # double buffered
        w_blk = 9 * Cin_p * TC * in_esize * 2
        o_blk = th * Wp * TC * out_esize * 2
        acc = th * Wp * TC * 4
        return x_blk + w_blk + o_blk + acc

    TH = max(1, min(tile_h, H))
    while TH > 8 and _footprint(TH) > vmem_budget_bytes:
        TH -= 8
    Hc = _round_up(H, TH)
    nH = Hc // TH
    nC = Cout_p // TC

    # ---- plain-JAX glue: layout, padding, halo'd row strips ----
    x_nhwc = jnp.transpose(x_nchw, (0, 2, 3, 1))              # (N,H,W,Cin)
    if compute_dtype is not None:
        x_nhwc = x_nhwc.astype(compute_dtype)
        w_hwio = w_hwio.astype(compute_dtype)
    x_pad = jnp.pad(
        x_nhwc,
        ((0, 0), (1, Hc + 1 - H), (1, Wp - 1 - W), (0, Cin_p - Cin)))
    # Blocked index maps cannot express overlapping windows, so the 2-row halo
    # per strip is materialised here: (N, nH, TH+2, Wp, Cin_p).
    x_strips = jnp.stack(
        [x_pad[:, i * TH:i * TH + TH + 2] for i in range(nH)], axis=1)
    w_p = jnp.pad(
        w_hwio, ((0, 0), (0, 0), (0, Cin_p - Cin), (0, Cout_p - Cout)))

    # Row-strip axis last (fastest): the weight tile stays resident per (n, c)
    # while input strips stream through the pipeline.
    grid = (N, nC, nH)
    out = pl.pallas_call(
        _conv2d_cd_kernel,
        out_shape=jax.ShapeDtypeStruct((N, nH, TH, Wp, Cout_p), out_dtype),
        grid_spec=pltpu.PrefetchScalarGridSpec(
            num_scalar_prefetch=0,
            grid=grid,
            in_specs=[
                pl.BlockSpec((1, 1, TH + 2, Wp, Cin_p),
                             lambda n, c, i: (n, i, 0, 0, 0)),
                pl.BlockSpec((3, 3, Cin_p, TC),
                             lambda n, c, i: (0, 0, 0, c)),
            ],
            out_specs=pl.BlockSpec((1, 1, TH, Wp, TC),
                                   lambda n, c, i: (n, i, 0, 0, c)),
            scratch_shapes=[pltpu.VMEM((TH * Wp, TC), jnp.float32)],
        ),
        compiler_params=pltpu.CompilerParams(
            dimension_semantics=("parallel", "parallel", "parallel"),
            vmem_limit_bytes=32 * 1024 * 1024),
    )(x_strips, w_p)

    out = out.reshape(N, nH * TH, Wp, Cout_p)[:, :H, :W, :Cout]
    return jnp.transpose(out, (0, 3, 1, 2))


def _reference(x_nchw, weight_oihw):
    """Pure-JAX reference mirroring the PyTorch forward."""
    dn = lax.conv_dimension_numbers(x_nchw.shape, weight_oihw.shape,
                                    ("NCHW", "OIHW", "NCHW"))
    out_normal = lax.conv_general_dilated(
        x_nchw, weight_oihw, window_strides=(1, 1),
        padding=((1, 1), (1, 1)), dimension_numbers=dn)
    kernel_diff = jnp.sum(weight_oihw, axis=(2, 3), keepdims=True)
    out_diff = lax.conv_general_dilated(
        x_nchw, kernel_diff, window_strides=(1, 1),
        padding=((0, 0), (0, 0)), dimension_numbers=dn)
    return out_normal - out_diff


if __name__ == "__main__":
    key = jax.random.PRNGKey(0)
    k_x, k_w, k_x2, k_w2 = jax.random.split(key, 4)

    # Main config (matches the module's typical small usage).
    N, Cin, Cout, H, W = 2, 4, 8, 16, 16
    x = jax.random.normal(k_x, (N, Cin, H, W), dtype=jnp.float32)
    fan_in = Cin * 3 * 3
    bound = 1.0 / (fan_in ** 0.5)
    weight = jax.random.uniform(k_w, (Cout, Cin, 3, 3), dtype=jnp.float32,
                                minval=-bound, maxval=bound)

    out = conv2d_cd(x, weight)
    jax.block_until_ready(out)
    ref = _reference(x, weight)
    assert out.shape == (N, Cout, H, W)
    assert jnp.allclose(out, ref, atol=1e-4, rtol=1e-4), "mismatch vs reference"

    # Odd-sized config to exercise the padding / cropping paths.
    N2, Cin2, Cout2, H2, W2 = 1, 3, 5, 11, 13
    x2 = jax.random.normal(k_x2, (N2, Cin2, H2, W2), dtype=jnp.float32)
    bound2 = 1.0 / ((Cin2 * 9) ** 0.5)
    weight2 = jax.random.uniform(k_w2, (Cout2, Cin2, 3, 3), dtype=jnp.float32,
                                 minval=-bound2, maxval=bound2)
    out2 = conv2d_cd(x2, weight2)
    jax.block_until_ready(out2)
    ref2 = _reference(x2, weight2)
    assert out2.shape == (N2, Cout2, H2, W2)
    assert jnp.allclose(out2, ref2, atol=1e-4, rtol=1e-4), "mismatch vs reference (odd shapes)"

    print("KERNEL_OK")
</pallas_src>

<mosaic_0001>
module attributes {stable_mosaic.version = 11 : i64} {
  func.func @_conv2d_cd_kernel(%arg0: i32, %arg1: i32, %arg2: i32, %arg3: memref<1x1x18x24x8xf32, #tpu.memory_space<vmem>>, %arg4: memref<3x3x8x128xf32, #tpu.memory_space<vmem>>, %arg5: memref<1x1x16x24x128xf32, #tpu.memory_space<vmem>>, %arg6: memref<384x128xf32, #tpu.memory_space<vmem>>) attributes {dimension_semantics = [#tpu.dimension_semantics<parallel>, #tpu.dimension_semantics<parallel>, #tpu.dimension_semantics<parallel>], iteration_bounds = array<i64: 2, 1, 1>, scalar_prefetch = 0 : i64, scratch_operands = 1 : i64, tpu.core_type = #tpu.core_type<tc>, window_params = [{transform_indices = @transform_0, window_bounds = array<i64: 1, 1, 18, 24, 8>}, {transform_indices = @transform_1, window_bounds = array<i64: 3, 3, 8, 128>}, {transform_indices = @transform_2, window_bounds = array<i64: 1, 1, 16, 24, 128>}]} {
    %c0 = arith.constant 0 : index
    %c0_0 = arith.constant 0 : index
    %c0_1 = arith.constant 0 : index
    %c0_2 = arith.constant 0 : index
    %c0_3 = arith.constant 0 : index
    %0 = vector.load %arg3[%c0, %c0_0, %c0_1, %c0_2, %c0_3] : memref<1x1x18x24x8xf32, #tpu.memory_space<vmem>>, vector<1x1x18x24x8xf32>
    %1 = vector.shape_cast %0 : vector<1x1x18x24x8xf32> to vector<18x24x8xf32>
    %2 = vector.extract_strided_slice %1 {offsets = [0, 0, 0], sizes = [16, 24, 8], strides = [1, 1, 1]} : vector<18x24x8xf32> to vector<16x24x8xf32>
    %3 = vector.shape_cast %2 : vector<16x24x8xf32> to vector<384x8xf32>
    %c0_4 = arith.constant 0 : index
    %c0_5 = arith.constant 0 : index
    %c0_6 = arith.constant 0 : index
    %c0_7 = arith.constant 0 : index
    %4 = vector.load %arg4[%c0_4, %c0_5, %c0_6, %c0_7] : memref<3x3x8x128xf32, #tpu.memory_space<vmem>>, vector<1x1x8x128xf32>
    %5 = vector.shape_cast %4 : vector<1x1x8x128xf32> to vector<8x128xf32>
    %cst = arith.constant dense<0.000000e+00> : vector<384x128xf32>
    %6 = tpu.matmul %3, %5, %cst {dimension_numbers = #tpu.dot_dimension_numbers<[1], [0], [0], [1], [0, 0, 1, 1], [], []>} : vector<384x8xf32>, vector<8x128xf32>, vector<384x128xf32> -> vector<384x128xf32>
    %c0_8 = arith.constant 0 : index
    %c0_9 = arith.constant 0 : index
    %7 = vector.load %arg6[%c0_8, %c0_9] : memref<384x128xf32, #tpu.memory_space<vmem>>, vector<384x128xf32>
    tpu.vector_store %arg6[%c0_8, %c0_9], %6 {strides = array<i32>} : memref<384x128xf32, #tpu.memory_space<vmem>>, vector<384x128xf32>,
    %c383_i32 = arith.constant 383 : i32
    %8 = tpu.dynamic_rotate %3 by %c383_i32 dim 0 : vector<384x8xf32>, i32 -> vector<384x8xf32>
    %c0_10 = arith.constant 0 : index
    %c1 = arith.constant 1 : index
    %c0_11 = arith.constant 0 : index
    %c0_12 = arith.constant 0 : index
    %9 = vector.load %arg4[%c0_10, %c1, %c0_11, %c0_12] : memref<3x3x8x128xf32, #tpu.memory_space<vmem>>, vector<1x1x8x128xf32>
    %10 = vector.shape_cast %9 : vector<1x1x8x128xf32> to vector<8x128xf32>
    %cst_13 = arith.constant dense<0.000000e+00> : vector<384x128xf32>
    %11 = tpu.matmul %8, %10, %cst_13 {dimension_numbers = #tpu.dot_dimension_numbers<[1], [0], [0], [1], [0, 0, 1, 1], [], []>} : vector<384x8xf32>, vector<8x128xf32>, vector<384x128xf32> -> vector<384x128xf32>
    %c0_14 = arith.constant 0 : index
    %c0_15 = arith.constant 0 : index
    %12 = vector.load %arg6[%c0_14, %c0_15] : memref<384x128xf32, #tpu.memory_space<vmem>>, vector<384x128xf32>
    %13 = arith.addf %12, %11 : vector<384x128xf32>
    %c0_16 = arith.constant 0 : index
    %c0_17 = arith.constant 0 : index
    %14 = vector.load %arg6[%c0_16, %c0_17] : memref<384x128xf32, #tpu.memory_space<vmem>>, vector<384x128xf32>
    tpu.vector_store %arg6[%c0_16, %c0_17], %13 {strides = array<i32>} : memref<384x128xf32, #tpu.memory_space<vmem>>, vector<384x128xf32>,
    %c382_i32 = arith.constant 382 : i32
    %15 = tpu.dynamic_rotate %3 by %c382_i32 dim 0 : vector<384x8xf32>, i32 -> vector<384x8xf32>
    %c0_18 = arith.constant 0 : index
    %c2 = arith.constant 2 : index
    %c0_19 = arith.constant 0 : index
    %c0_20 = arith.constant 0 : index
    %16 = vector.load %arg4[%c0_18, %c2, %c0_19, %c0_20] : memref<3x3x8x128xf32, #tpu.memory_space<vmem>>, vector<1x1x8x128xf32>
    %17 = vector.shape_cast %16 : vector<1x1x8x128xf32> to vector<8x128xf32>
    %cst_21 = arith.constant dense<0.000000e+00> : vector<384x128xf32>
    %18 = tpu.matmul %15, %17, %cst_21 {dimension_numbers = #tpu.dot_dimension_numbers<[1], [0], [0], [1], [0, 0, 1, 1], [], []>} : vector<384x8xf32>, vector<8x128xf32>, vector<384x128xf32> -> vector<384x128xf32>
    %c0_22 = arith.constant 0 : index
    %c0_23 = arith.constant 0 : index
    %19 = vector.load %arg6[%c0_22, %c0_23] : memref<384x128xf32, #tpu.memory_space<vmem>>, vector<384x128xf32>
    %20 = arith.addf %19, %18 : vector<384x128xf32>
    %c0_24 = arith.constant 0 : index
    %c0_25 = arith.constant 0 : index
    %21 = vector.load %arg6[%c0_24, %c0_25] : memref<384x128xf32, #tpu.memory_space<vmem>>, vector<384x128xf32>
    tpu.vector_store %arg6[%c0_24, %c0_25], %20 {strides = array<i32>} : memref<384x128xf32, #tpu.memory_space<vmem>>, vector<384x128xf32>,
    %22 = vector.extract_strided_slice %1 {offsets = [1, 0, 0], sizes = [16, 24, 8], strides = [1, 1, 1]} : vector<18x24x8xf32> to vector<16x24x8xf32>
    %23 = vector.shape_cast %22 : vector<16x24x8xf32> to vector<384x8xf32>
    %c1_26 = arith.constant 1 : index
    %c0_27 = arith.constant 0 : index
    %c0_28 = arith.constant 0 : index
    %c0_29 = arith.constant 0 : index
    %24 = vector.load %arg4[%c1_26, %c0_27, %c0_28, %c0_29] : memref<3x3x8x128xf32, #tpu.memory_space<vmem>>, vector<1x1x8x128xf32>
    %25 = vector.shape_cast %24 : vector<1x1x8x128xf32> to vector<8x128xf32>
    %cst_30 = arith.constant dense<0.000000e+00> : vector<384x128xf32>
    %26 = tpu.matmul %23, %25, %cst_30 {dimension_numbers = #tpu.dot_dimension_numbers<[1], [0], [0], [1], [0, 0, 1, 1], [], []>} : vector<384x8xf32>, vector<8x128xf32>, vector<384x128xf32> -> vector<384x128xf32>
    %c0_31 = arith.constant 0 : index
    %c0_32 = arith.constant 0 : index
    %27 = vector.load %arg6[%c0_31, %c0_32] : memref<384x128xf32, #tpu.memory_space<vmem>>, vector<384x128xf32>
    %28 = arith.addf %27, %26 : vector<384x128xf32>
    %c0_33 = arith.constant 0 : index
    %c0_34 = arith.constant 0 : index
    %29 = vector.load %arg6[%c0_33, %c0_34] : memref<384x128xf32, #tpu.memory_space<vmem>>, vector<384x128xf32>
    tpu.vector_store %arg6[%c0_33, %c0_34], %28 {strides = array<i32>} : memref<384x128xf32, #tpu.memory_space<vmem>>, vector<384x128xf32>,
    %c383_i32_35 = arith.constant 383 : i32
    %30 = tpu.dynamic_rotate %23 by %c383_i32_35 dim 0 : vector<384x8xf32>, i32 -> vector<384x8xf32>
    %c1_36 = arith.constant 1 : index
    %c1_37 = arith.constant 1 : index
    %c0_38 = arith.constant 0 : index
    %c0_39 = arith.constant 0 : index
    %31 = vector.load %arg4[%c1_36, %c1_37, %c0_38, %c0_39] : memref<3x3x8x128xf32, #tpu.memory_space<vmem>>, vector<1x1x8x128xf32>
    %32 = vector.shape_cast %31 : vector<1x1x8x128xf32> to vector<8x128xf32>
    %cst_40 = arith.constant dense<0.000000e+00> : vector<384x128xf32>
    %33 = tpu.matmul %30, %32, %cst_40 {dimension_numbers = #tpu.dot_dimension_numbers<[1], [0], [0], [1], [0, 0, 1, 1], [], []>} : vector<384x8xf32>, vector<8x128xf32>, vector<384x128xf32> -> vector<384x128xf32>
    %c0_41 = arith.constant 0 : index
    %c0_42 = arith.constant 0 : index
    %34 = vector.load %arg6[%c0_41, %c0_42] : memref<384x128xf32, #tpu.memory_space<vmem>>, vector<384x128xf32>
    %35 = arith.addf %34, %33 : vector<384x128xf32>
    %c0_43 = arith.constant 0 : index
    %c0_44 = arith.constant 0 : index
    %36 = vector.load %arg6[%c0_43, %c0_44] : memref<384x128xf32, #tpu.memory_space<vmem>>, vector<384x128xf32>
    tpu.vector_store %arg6[%c0_43, %c0_44], %35 {strides = array<i32>} : memref<384x128xf32, #tpu.memory_space<vmem>>, vector<384x128xf32>,
    %c382_i32_45 = arith.constant 382 : i32
    %37 = tpu.dynamic_rotate %23 by %c382_i32_45 dim 0 : vector<384x8xf32>, i32 -> vector<384x8xf32>
    %c1_46 = arith.constant 1 : index
    %c2_47 = arith.constant 2 : index
    %c0_48 = arith.constant 0 : index
    %c0_49 = arith.constant 0 : index
    %38 = vector.load %arg4[%c1_46, %c2_47, %c0_48, %c0_49] : memref<3x3x8x128xf32, #tpu.memory_space<vmem>>, vector<1x1x8x128xf32>
    %39 = vector.shape_cast %38 : vector<1x1x8x128xf32> to vector<8x128xf32>
    %cst_50 = arith.constant dense<0.000000e+00> : vector<384x128xf32>
    %40 = tpu.matmul %37, %39, %cst_50 {dimension_numbers = #tpu.dot_dimension_numbers<[1], [0], [0], [1], [0, 0, 1, 1], [], []>} : vector<384x8xf32>, vector<8x128xf32>, vector<384x128xf32> -> vector<384x128xf32>
    %c0_51 = arith.constant 0 : index
    %c0_52 = arith.constant 0 : index
    %41 = vector.load %arg6[%c0_51, %c0_52] : memref<384x128xf32, #tpu.memory_space<vmem>>, vector<384x128xf32>
    %42 = arith.addf %41, %40 : vector<384x128xf32>
    %c0_53 = arith.constant 0 : index
    %c0_54 = arith.constant 0 : index
    %43 = vector.load %arg6[%c0_53, %c0_54] : memref<384x128xf32, #tpu.memory_space<vmem>>, vector<384x128xf32>
    tpu.vector_store %arg6[%c0_53, %c0_54], %42 {strides = array<i32>} : memref<384x128xf32, #tpu.memory_space<vmem>>, vector<384x128xf32>,
    %44 = vector.extract_strided_slice %1 {offsets = [2, 0, 0], sizes = [16, 24, 8], strides = [1, 1, 1]} : vector<18x24x8xf32> to vector<16x24x8xf32>
    %45 = vector.shape_cast %44 : vector<16x24x8xf32> to vector<384x8xf32>
    %c2_55 = arith.constant 2 : index
    %c0_56 = arith.constant 0 : index
    %c0_57 = arith.constant 0 : index
    %c0_58 = arith.constant 0 : index
    %46 = vector.load %arg4[%c2_55, %c0_56, %c0_57, %c0_58] : memref<3x3x8x128xf32, #tpu.memory_space<vmem>>, vector<1x1x8x128xf32>
    %47 = vector.shape_cast %46 : vector<1x1x8x128xf32> to vector<8x128xf32>
    %cst_59 = arith.constant dense<0.000000e+00> : vector<384x128xf32>
    %48 = tpu.matmul %45, %47, %cst_59 {dimension_numbers = #tpu.dot_dimension_numbers<[1], [0], [0], [1], [0, 0, 1, 1], [], []>} : vector<384x8xf32>, vector<8x128xf32>, vector<384x128xf32> -> vector<384x128xf32>
    %c0_60 = arith.constant 0 : index
    %c0_61 = arith.constant 0 : index
    %49 = vector.load %arg6[%c0_60, %c0_61] : memref<384x128xf32, #tpu.memory_space<vmem>>, vector<384x128xf32>
    %50 = arith.addf %49, %48 : vector<384x128xf32>
    %c0_62 = arith.constant 0 : index
    %c0_63 = arith.constant 0 : index
    %51 = vector.load %arg6[%c0_62, %c0_63] : memref<384x128xf32, #tpu.memory_space<vmem>>, vector<384x128xf32>
    tpu.vector_store %arg6[%c0_62, %c0_63], %50 {strides = array<i32>} : memref<384x128xf32, #tpu.memory_space<vmem>>, vector<384x128xf32>,
    %c383_i32_64 = arith.constant 383 : i32
    %52 = tpu.dynamic_rotate %45 by %c383_i32_64 dim 0 : vector<384x8xf32>, i32 -> vector<384x8xf32>
    %c2_65 = arith.constant 2 : index
    %c1_66 = arith.constant 1 : index
    %c0_67 = arith.constant 0 : index
    %c0_68 = arith.constant 0 : index
    %53 = vector.load %arg4[%c2_65, %c1_66, %c0_67, %c0_68] : memref<3x3x8x128xf32, #tpu.memory_space<vmem>>, vector<1x1x8x128xf32>
    %54 = vector.shape_cast %53 : vector<1x1x8x128xf32> to vector<8x128xf32>
    %cst_69 = arith.constant dense<0.000000e+00> : vector<384x128xf32>
    %55 = tpu.matmul %52, %54, %cst_69 {dimension_numbers = #tpu.dot_dimension_numbers<[1], [0], [0], [1], [0, 0, 1, 1], [], []>} : vector<384x8xf32>, vector<8x128xf32>, vector<384x128xf32> -> vector<384x128xf32>
    %c0_70 = arith.constant 0 : index
    %c0_71 = arith.constant 0 : index
    %56 = vector.load %arg6[%c0_70, %c0_71] : memref<384x128xf32, #tpu.memory_space<vmem>>, vector<384x128xf32>
    %57 = arith.addf %56, %55 : vector<384x128xf32>
    %c0_72 = arith.constant 0 : index
    %c0_73 = arith.constant 0 : index
    %58 = vector.load %arg6[%c0_72, %c0_73] : memref<384x128xf32, #tpu.memory_space<vmem>>, vector<384x128xf32>
    tpu.vector_store %arg6[%c0_72, %c0_73], %57 {strides = array<i32>} : memref<384x128xf32, #tpu.memory_space<vmem>>, vector<384x128xf32>,
    %c382_i32_74 = arith.constant 382 : i32
    %59 = tpu.dynamic_rotate %45 by %c382_i32_74 dim 0 : vector<384x8xf32>, i32 -> vector<384x8xf32>
    %c2_75 = arith.constant 2 : index
    %c2_76 = arith.constant 2 : index
    %c0_77 = arith.constant 0 : index
    %c0_78 = arith.constant 0 : index
    %60 = vector.load %arg4[%c2_75, %c2_76, %c0_77, %c0_78] : memref<3x3x8x128xf32, #tpu.memory_space<vmem>>, vector<1x1x8x128xf32>
    %61 = vector.shape_cast %60 : vector<1x1x8x128xf32> to vector<8x128xf32>
    %cst_79 = arith.constant dense<0.000000e+00> : vector<384x128xf32>
    %62 = tpu.matmul %59, %61, %cst_79 {dimension_numbers = #tpu.dot_dimension_numbers<[1], [0], [0], [1], [0, 0, 1, 1], [], []>} : vector<384x8xf32>, vector<8x128xf32>, vector<384x128xf32> -> vector<384x128xf32>
    %c0_80 = arith.constant 0 : index
    %c0_81 = arith.constant 0 : index
    %63 = vector.load %arg6[%c0_80, %c0_81] : memref<384x128xf32, #tpu.memory_space<vmem>>, vector<384x128xf32>
    %64 = arith.addf %63, %62 : vector<384x128xf32>
    %c0_82 = arith.constant 0 : index
    %c0_83 = arith.constant 0 : index
    %65 = vector.load %arg6[%c0_82, %c0_83] : memref<384x128xf32, #tpu.memory_space<vmem>>, vector<384x128xf32>
    tpu.vector_store %arg6[%c0_82, %c0_83], %64 {strides = array<i32>} : memref<384x128xf32, #tpu.memory_space<vmem>>, vector<384x128xf32>,
    %c0_84 = arith.constant 0 : index
    %c0_85 = arith.constant 0 : index
    %66 = vector.load %arg6[%c0_84, %c0_85] : memref<384x128xf32, #tpu.memory_space<vmem>>, vector<384x128xf32>
    %67 = vector.shape_cast %66 : vector<384x128xf32> to vector<16x24x128xf32>
    %c0_86 = arith.constant 0 : index
    %c0_87 = arith.constant 0 : index
    %c0_88 = arith.constant 0 : index
    %c0_89 = arith.constant 0 : index
    %c0_90 = arith.constant 0 : index
    %68 = vector.load %arg5[%c0_86, %c0_87, %c0_88, %c0_89, %c0_90] : memref<1x1x16x24x128xf32, #tpu.memory_space<vmem>>, vector<1x1x16x24x128xf32>
    %69 = vector.shape_cast %68 : vector<1x1x16x24x128xf32> to vector<16x24x128xf32>
    %70 = vector.shape_cast %67 : vector<16x24x128xf32> to vector<1x1x16x24x128xf32>
    tpu.vector_store %arg5[%c0_86, %c0_87, %c0_88, %c0_89, %c0_90], %70 {strides = array<i32>} : memref<1x1x16x24x128xf32, #tpu.memory_space<vmem>>, vector<1x1x16x24x128xf32>,
    return
  }
  func.func @transform_0(%arg0: i32, %arg1: i32, %arg2: i32) -> (i32, i32, i32, i32, i32) {
    %c0_i32 = arith.constant 0 : i32
    %c0_i32_0 = arith.constant 0 : i32
    %c0_i32_1 = arith.constant 0 : i32
    %c0_i32_2 = arith.constant 0 : i32
    return %arg0, %arg2, %c0_i32, %c0_i32_0, %c0_i32_1 : i32, i32, i32, i32, i32
  }
  func.func @transform_1(%arg0: i32, %arg1: i32, %arg2: i32) -> (i32, i32, i32, i32) {
    %c0_i32 = arith.constant 0 : i32
    %c0_i32_0 = arith.constant 0 : i32
    %c0_i32_1 = arith.constant 0 : i32
    %c0_i32_2 = arith.constant 0 : i32
    return %c0_i32, %c0_i32_0, %c0_i32_1, %arg1 : i32, i32, i32, i32
  }
  func.func @transform_2(%arg0: i32, %arg1: i32, %arg2: i32) -> (i32, i32, i32, i32, i32) {
    %c0_i32 = arith.constant 0 : i32
    %c0_i32_0 = arith.constant 0 : i32
    %c0_i32_1 = arith.constant 0 : i32
    return %arg0, %arg2, %c0_i32, %c0_i32_0, %arg1 : i32, i32, i32, i32, i32
  }
}

</mosaic_0001>

<llo_original>
// kernel: tpu_custom_call.1
$region0: #{tpu_custom_call.1}
  #allocation0 [shape = 'u32[]', space=smem, size = 0x4, offset = 0x4, fixed_abs, tag = 'smem constant byte address 0x4 - core index']
  #allocation1 [shape = 'u32[144,128]{1,0:T(1,128)}', space=vmem, size = 0x12000, scoped, tag = 'internal scratch']
  #allocation2 [shape = 'f32[384,128]{1,0:T(8,128)}', space=vmem, size = 0x30000, scoped, tag = 'scratch operand']
  %s0 = inlined_call_operand.vmem [shape: f32[2,1,18,24,8], index: 0, kind: input, shape index: {}]
  %s1 = inlined_call_operand.vmem [shape: f32[3,3,8,128], index: 1, kind: input, shape index: {}]
  %s2 = inlined_call_operand.hbm [shape: f32[2,1,16,24,128], index: 2, kind: output, shape index: {}]
  %s3 = sld [smem:[#allocation0]]
  $region41: #{tpu_custom_call.1} parent=0
    _
  %s5 = ssub.s32 1, %s3
  %s6 = scalar_select 0, %s5, %s3
  $region1: #{tpu_custom_call.1} parent=0
    #allocation3 [shape = 'u8[393216]{0}', space=vmem, size = 0x60000, scoped, tag = 'output window, operand 0']
    #allocation4 [shape = 's32[2]{0}', space=sflag, size = 0x8, scoped, tag = 'scoped memory for tpu_custom_call.1']
    %7 = vsyncpa [#allocation4], 0
    %s8 = scalar_lea.sflag [#allocation4], 1
    %9 = vsyncpa %s8, 0
    loop: start=0, step=1, limit=4
    $region2: #{tpu_custom_call.1} parent=1 // loop_pre_header
      _
    $region3: #{tpu_custom_call.1} parent=1 // loop_header
      %s11 = sphi 0, %s15
      %p12 = scmp.ge.s32.totalorder %s11, 4
      %s18 = sphi 0, %s37
      %s19 = sphi 0, %s33
      %s20 = sphi 0, %s29
      %s21 = sphi 0, %s18
      %s22 = sphi 0, %s19
      %s23 = sphi 0, %s20
      %s24 = sphi 0, %s21
      %s25 = sphi 0, %s22
      %s26 = sphi 0, %s23
      %s42 = sphi 0, %s44
      %s45 = sphi 0, %s42
      %s46 = sphi 0, %s45
      %s62 = sphi 0, %s46
      %s68 = sphi 0, %s70
      %s71 = sphi 0, %s68
      %s72 = sphi 0, %s71
      %s88 = sphi 0, %s72
      %s98 = sphi 0, %s100
      %s101 = sphi 0, %s98
      %s102 = sphi 0, %s101
      %s118 = sphi 0, %s102
    $region4: #{tpu_custom_call.1} parent=1 // loop_header_branch
      %14 = sbr.rel (%p12) target = $region8
    $region5: #{tpu_custom_call.1} parent=1 // loop_body
      %s16 = ssub.s32 %s11, 1
      %s17 = ssub.s32 %s11, 2
      %s27 = sadd.s32 1, %s20
      %p28 = scmp.ge.s32.totalorder %s27, 1
      %s29 = scalar_select %p28, 0, %s27
      %s30 = sadd.s32 1, %s19
      %s31 = scalar_select %p28, %s30, %s19
      %p32 = scmp.ge.s32.totalorder %s31, 1
      %s33 = scalar_select %p32, 0, %s31
      %s34 = sadd.s32 1, %s18
      %s35 = scalar_select %p32, %s34, %s18
      %p36 = scmp.ge.s32.totalorder %s35, 2
      %s37 = scalar_select %p36, 0, %s35
      %s38 = ssub.s32 %s18, %s37
      %s39 = ssub.s32 %s20, %s29
      %s40 = sor.u32 %s38, %s39
      %p41 = scmp.eq.s32.totalorder %s40, 0
      %s43 = sadd.s32 %s42, 1
      %s44 = scalar_select %p41, %s42, %s43
      %p47 = pneg %p41
      %p48 = scmp.eq.s32.totalorder %s11, 1
      %p49 = por %p47, %p48
      %p50 = scmp.ne.s32.totalorder %s42, %s45
      %p51 = scmp.eq.s32.totalorder %s11, 0
      %p52 = por %p50, %p51
      %p53 = scmp.ne.s32.totalorder %s42, %s45
      %p54 = scmp.eq.s32.totalorder %s16, 1
      %p55 = por %p53, %p54
      %p56 = scmp.ne.s32.totalorder %s45, %s46
      %p57 = scmp.eq.s32.totalorder %s16, 0
      %p58 = por %p56, %p57
      %p59 = scmp.ne.s32.totalorder %s45, %s46
      %p60 = scmp.eq.s32.totalorder %s17, 1
      %p61 = por %p59, %p60
      %p63 = scmp.ne.s32.totalorder %s46, %s62
      %p64 = scmp.eq.s32.totalorder %s17, 0
      %p65 = por %p63, %p64
      %s66 = ssub.s32 %s19, %s33
      %p67 = scmp.eq.s32.totalorder %s66, 0
      %s69 = sadd.s32 %s68, 1
      %s70 = scalar_select %p67, %s68, %s69
      %p73 = pneg %p67
      %p74 = scmp.eq.s32.totalorder %s11, 1
      %p75 = por %p73, %p74
      %p76 = scmp.ne.s32.totalorder %s68, %s71
      %p77 = scmp.eq.s32.totalorder %s11, 0
      %p78 = por %p76, %p77
      %p79 = scmp.ne.s32.totalorder %s68, %s71
      %p80 = scmp.eq.s32.totalorder %s16, 1
      %p81 = por %p79, %p80
      %p82 = scmp.ne.s32.totalorder %s71, %s72
      %p83 = scmp.eq.s32.totalorder %s16, 0
      %p84 = por %p82, %p83
      %p85 = scmp.ne.s32.totalorder %s71, %s72
      %p86 = scmp.eq.s32.totalorder %s17, 1
      %p87 = por %p85, %p86
      %p89 = scmp.ne.s32.totalorder %s72, %s88
      %p90 = scmp.eq.s32.totalorder %s17, 0
      %p91 = por %p89, %p90
      %s92 = ssub.s32 %s18, %s37
      %s93 = ssub.s32 %s20, %s29
      %s94 = sor.u32 %s92, %s93
      %s95 = ssub.s32 %s19, %s33
      %s96 = sor.u32 %s94, %s95
      %p97 = scmp.eq.s32.totalorder %s96, 0
      %s99 = sadd.s32 %s98, 1
      %s100 = scalar_select %p97, %s98, %s99
      %p103 = pneg %p97
      %p104 = scmp.eq.s32.totalorder %s11, 1
      %p105 = por %p103, %p104
      %p106 = scmp.ne.s32.totalorder %s98, %s101
      %p107 = scmp.eq.s32.totalorder %s11, 0
      %p108 = por %p106, %p107
      %p109 = scmp.ne.s32.totalorder %s98, %s101
      %p110 = scmp.eq.s32.totalorder %s16, 1
      %p111 = por %p109, %p110
      %p112 = scmp.ne.s32.totalorder %s101, %s102
      %p113 = scmp.eq.s32.totalorder %s16, 0
      %p114 = por %p112, %p113
      %p115 = scmp.ne.s32.totalorder %s101, %s102
      %p116 = scmp.eq.s32.totalorder %s17, 1
      %p117 = por %p115, %p116
      %p119 = scmp.ne.s32.totalorder %s102, %s118
      %p120 = scmp.eq.s32.totalorder %s17, 0
      %p121 = por %p119, %p120
      %p122 = scmp.le.s32.totalorder 1, %s11
      %p123 = scmp.lt.s32.totalorder %s11, 3
      %p124 = pnand %p122, %p123
      %p125 = pneg %p124
      // Predicated region
      $region9: #{tpu_custom_call.1} parent=5 // pred_check
        _
      $region10: #{tpu_custom_call.1} parent=5 // pred_check_branch
        %127 = sbr.rel (%p124) target = $region12
      $region11: #{tpu_custom_call.1} parent=5 // pred_region
        %s128 = ssub.s32 %s11, 1
        // Predicated region
        $region13: #{tpu_custom_call.1} parent=11 // pred_check
          %p129 = pneg %p84
        $region14: #{tpu_custom_call.1} parent=11 // pred_check_branch
          %131 = sbr.rel (%p129) target = $region16
        $region15: #{tpu_custom_call.1} parent=11 // pred_region
          %p132 = scmp.lt.s32.totalorder %s22, 0
          %s133 = scalar_select %p132, %s22, 0
          %s134 = smul.addr %s133, 8
          %s135 = scalar_lea.vmem %s1, %s134
        $region16: #{tpu_custom_call.1} parent=11 // pred_fallthru
          _
      $region12: #{tpu_custom_call.1} parent=5 // pred_fallthru
        _
      %p136 = scmp.lt.s32.totalorder %s11, 2
      // Predicated region
      $region17: #{tpu_custom_call.1} parent=5 // pred_check
        %p137 = pneg %p136
      $region18: #{tpu_custom_call.1} parent=5 // pred_check_branch
        %139 = sbr.rel (%p137) target = $region20
      $region19: #{tpu_custom_call.1} parent=5 // pred_region
        // Predicated region
        $region21: #{tpu_custom_call.1} parent=19 // pred_check
          %p140 = pneg %p52
        $region22: #{tpu_custom_call.1} parent=19 // pred_check_branch
          %142 = sbr.rel (%p140) target = $region24
        $region23: #{tpu_custom_call.1} parent=19 // pred_region
          %p143 = scmp.lt.s32.totalorder %s18, 1
          %s144 = scalar_select %p143, %s18, 1
          %p145 = scmp.lt.s32.totalorder %s20, 0
          %s146 = scalar_select %p145, %s20, 0
          %s147 = smul.addr %s146, 54
          %s148 = smul.addr %s144, 54
          %s149 = sadd.s32 %s147, %s148
          %s150 = smul.addr %s149, 8
          %s151 = scalar_lea.vmem %s0, %s150
        $region24: #{tpu_custom_call.1} parent=19 // pred_fallthru
          _
      $region20: #{tpu_custom_call.1} parent=5 // pred_fallthru
        _
      %p152 = scmp.le.s32.totalorder 1, %s11
      %p153 = scmp.lt.s32.totalorder %s11, 3
      %p154 = pnand %p152, %p153
      %p155 = pneg %p154
      // Predicated region
      $region25: #{tpu_custom_call.1} parent=5 // pred_check
        _
      $region26: #{tpu_custom_call.1} parent=5 // pred_check_branch
        %157 = sbr.rel (%p154) target = $region28
      $region27: #{tpu_custom_call.1} parent=5 // pred_region
        %s158 = ssub.s32 %s11, 1
        %p159 = scmp.lt.s32.totalorder %s21, 1
        %s160 = scalar_select %p159, %s21, 1
        %p161 = scmp.lt.s32.totalorder %s23, 0
        %s162 = scalar_select %p161, %s23, 0
        %s163 = smul.addr %s162, 54
        %s164 = smul.addr %s160, 54
        %s165 = sadd.s32 %s163, %s164
        %s166 = smul.addr %s165, 8
        %s167 = scalar_lea.vmem %s0, %s166
        %p168 = pneg %p58
        %p169 = pneg %p55
        %p170 = scmp.lt.s32.totalorder %s22, 0
        %s171 = scalar_select %p170, %s22, 0
        %s172 = smul.addr %s171, 8
        %s173 = scalar_lea.vmem %s1, %s172
        %p174 = pneg %p84
        %p175 = pneg %p81
        %p176 = pneg %p114
        %p177 = pneg %p111
        %s178 = sand.u32 %s101, 1
        %s179 = scalar_lea.sflag [#allocation4], %s178
        %s180 = sand.u32 %s101, 1
        %s181 = smul.addr %s180, 384
        %s182 = scalar_lea.vmem [#allocation3], %s181
        %p183 = scmp.lt.s32.totalorder %s21, 1
        %s184 = scalar_select %p183, %s21, 1
        %p185 = scmp.lt.s32.totalorder %s23, 0
        %s186 = scalar_select %p185, %s23, 0
        %s187 = smul.addr %s186, 54
        %s188 = smul.addr %s184, 54
        %s189 = sadd.s32 %s187, %s188
        %s190 = smul.addr %s189, 8
        %s191 = scalar_lea.vmem %s0, %s190
        %p192 = scmp.lt.s32.totalorder %s22, 0
        %s193 = scalar_select %p192, %s22, 0
        %s194 = smul.addr %s193, 8
        %s195 = scalar_lea.vmem %s1, %s194
        %v196 = vld [vmem:[%s191] sm:$0xff]
        %v197 = vld [vmem:[%s191 + $0x8] sm:$0xff]
        %v198 = vld [vmem:[%s191 + $0x10] sm:$0xff]
        %v199 = vld [vmem:[%s191 + $0x18] sm:$0xff]
        %v200 = vld [vmem:[%s191 + $0x20] sm:$0xff]
        %v201 = vld [vmem:[%s191 + $0x28] sm:$0xff]
        %v202 = vld [vmem:[%s191 + $0x30] sm:$0xff]
        %v203 = vld [vmem:[%s191 + $0x38] sm:$0xff]
        %v204 = vld [vmem:[%s191 + $0x40] sm:$0xff]
        %v205 = vld [vmem:[%s191 + $0x48] sm:$0xff]
        %v206 = vld [vmem:[%s191 + $0x50] sm:$0xff]
        %v207 = vld [vmem:[%s191 + $0x58] sm:$0xff]
        %v208 = vld [vmem:[%s191 + $0x60] sm:$0xff]
        %v209 = vld [vmem:[%s191 + $0x68] sm:$0xff]
        %v210 = vld [vmem:[%s191 + $0x70] sm:$0xff]
        %v211 = vld [vmem:[%s191 + $0x78] sm:$0xff]
        %v212 = vld [vmem:[%s191 + $0x80] sm:$0xff]
        %v213 = vld [vmem:[%s191 + $0x88] sm:$0xff]
        %v214 = vld [vmem:[%s191 + $0x90] sm:$0xff]
        %v215 = vld [vmem:[%s191 + $0x98] sm:$0xff]
        %v216 = vld [vmem:[%s191 + $0xa0] sm:$0xff]
        %v217 = vld [vmem:[%s191 + $0xa8] sm:$0xff]
        %v218 = vld [vmem:[%s191 + $0xb0] sm:$0xff]
        %v219 = vld [vmem:[%s191 + $0xb8] sm:$0xff]
        %v220 = vld [vmem:[%s191 + $0xc0] sm:$0xff]
        %v221 = vld [vmem:[%s191 + $0xc8] sm:$0xff]
        %v222 = vld [vmem:[%s191 + $0xd0] sm:$0xff]
        %v223 = vld [vmem:[%s191 + $0xd8] sm:$0xff]
        %v224 = vld [vmem:[%s191 + $0xe0] sm:$0xff]
        %v225 = vld [vmem:[%s191 + $0xe8] sm:$0xff]
        %v226 = vld [vmem:[%s191 + $0xf0] sm:$0xff]
        %v227 = vld [vmem:[%s191 + $0xf8] sm:$0xff]
        %v228 = vld [vmem:[%s191 + $0x100] sm:$0xff]
        %v229 = vld [vmem:[%s191 + $0x108] sm:$0xff]
        %v230 = vld [vmem:[%s191 + $0x110] sm:$0xff]
        %v231 = vld [vmem:[%s191 + $0x118] sm:$0xff]
        %v232 = vld [vmem:[%s191 + $0x120] sm:$0xff]
        %v233 = vld [vmem:[%s191 + $0x128] sm:$0xff]
        %v234 = vld [vmem:[%s191 + $0x130] sm:$0xff]
        %v235 = vld [vmem:[%s191 + $0x138] sm:$0xff]
        %v236 = vld [vmem:[%s191 + $0x140] sm:$0xff]
        %v237 = vld [vmem:[%s191 + $0x148] sm:$0xff]
        %v238 = vld [vmem:[%s191 + $0x150] sm:$0xff]
        %v239 = vld [vmem:[%s191 + $0x158] sm:$0xff]
        %v240 = vld [vmem:[%s191 + $0x160] sm:$0xff]
        %v241 = vld [vmem:[%s191 + $0x168] sm:$0xff]
        %v242 = vld [vmem:[%s191 + $0x170] sm:$0xff]
        %v243 = vld [vmem:[%s191 + $0x178] sm:$0xff]
        %v244 = vld [vmem:[%s191 + $0x180] sm:$0xff]
        %v245 = vld [vmem:[%s191 + $0x188] sm:$0xff]
        %v246 = vld [vmem:[%s191 + $0x190] sm:$0xff]
        %v247 = vld [vmem:[%s191 + $0x198] sm:$0xff]
        %v248 = vld [vmem:[%s191 + $0x1a0] sm:$0xff]
        %v249 = vld [vmem:[%s191 + $0x1a8] sm:$0xff]
        %v250 = vld [vmem:[%s195] sm:$0xff]
        %vm251 = vcmask 64512
        %v253 = vsel %vm251, %v196, 0
        %v256 = vsel %vm251, %v197, 0
        %v259 = vsel %vm251, %v198, 0
        %v262 = vsel %vm251, %v199, 0
        %v265 = vsel %vm251, %v200, 0
        %v268 = vsel %vm251, %v201, 0
        %v271 = vsel %vm251, %v202, 0
        %v274 = vsel %vm251, %v203, 0
        %v277 = vsel %vm251, %v204, 0
        %v280 = vsel %vm251, %v205, 0
        %v283 = vsel %vm251, %v206, 0
        %v286 = vsel %vm251, %v207, 0
        %v289 = vsel %vm251, %v208, 0
        %v292 = vsel %vm251, %v209, 0
        %v295 = vsel %vm251, %v210, 0
        %v298 = vsel %vm251, %v211, 0
        %v301 = vsel %vm251, %v212, 0
        %v304 = vsel %vm251, %v213, 0
        %v307 = vsel %vm251, %v214, 0
        %v310 = vsel %vm251, %v215, 0
        %v313 = vsel %vm251, %v216, 0
        %v316 = vsel %vm251, %v217, 0
        %v319 = vsel %vm251, %v218, 0
        %v322 = vsel %vm251, %v219, 0
        %v325 = vsel %vm251, %v220, 0
        %v328 = vsel %vm251, %v221, 0
        %v331 = vsel %vm251, %v222, 0
        %v334 = vsel %vm251, %v223, 0
        %v337 = vsel %vm251, %v224, 0
        %v340 = vsel %vm251, %v225, 0
        %v343 = vsel %vm251, %v226, 0
        %v346 = vsel %vm251, %v227, 0
        %v349 = vsel %vm251, %v228, 0
        %v352 = vsel %vm251, %v229, 0
        %v355 = vsel %vm251, %v230, 0
        %v358 = vsel %vm251, %v231, 0
        %v361 = vsel %vm251, %v232, 0
        %v364 = vsel %vm251, %v233, 0
        %v367 = vsel %vm251, %v234, 0
        %v370 = vsel %vm251, %v235, 0
        %v373 = vsel %vm251, %v236, 0
        %v376 = vsel %vm251, %v237, 0
        %v379 = vsel %vm251, %v238, 0
        %v382 = vsel %vm251, %v239, 0
        %v385 = vsel %vm251, %v240, 0
        %v388 = vsel %vm251, %v241, 0
        %v391 = vsel %vm251, %v242, 0
        %v394 = vsel %vm251, %v243, 0
        %396 = vmatprep.subr.mxu0 0.0
        %397 = vmatpush1.msra.mxu0 0.0
        %398 = vmatprep.subr.mxu0 0.0
        %399 = vmatpush1.msra.mxu0 0.0
        %400 = vmatprep.subr.mxu0 0.0
        %401 = vmatpush1.msra.mxu0 0.0
        %402 = vmatprep.subr.mxu0 0.0
        %403 = vmatpush1.msra.mxu0 0.0
        %404 = vmatprep.subr.mxu0 0.0
        %405 = vmatpush1.msra.mxu0 0.0
        %406 = vmatprep.subr.mxu0 0.0
        %407 = vmatpush1.msra.mxu0 0.0
        %408 = vmatprep.subr.mxu0 0.0
        %409 = vmatpush1.msra.mxu0 0.0
        %410 = vmatprep.subr.mxu0 0.0
        %411 = vmatpush1.msra.mxu0 0.0
        %412 = vmatprep.subr.mxu0 0.0
        %413 = vmatpush1.msra.mxu0 0.0
        %414 = vmatprep.subr.mxu0 0.0
        %415 = vmatpush1.msra.mxu0 0.0
        %416 = vmatprep.subr.mxu0 0.0
        %417 = vmatpush1.msra.mxu0 0.0
        %418 = vmatprep.subr.mxu0 0.0
        %419 = vmatpush1.msra.mxu0 0.0
        %420 = vmatprep.subr.mxu0 0.0
        %421 = vmatpush1.msra.mxu0 0.0
        %422 = vmatprep.subr.mxu0 0.0
        %423 = vmatpush1.msra.mxu0 0.0
        %424 = vmatprep.subr.mxu0 0.0
        %425 = vmatpush1.msra.mxu0 0.0
        %426 = vmatprep.subr.mxu0 0.0
        %427 = vmatpush1.msra.mxu0 %v250
        %428 = vmatprep.subr.mxu0 0.0
        %429 = vmatpush2.msra.mxu0 0.0
        %430 = vmatprep.subr.mxu0 0.0
        %431 = vmatpush2.msra.mxu0 0.0
        %432 = vmatprep.subr.mxu0 0.0
        %433 = vmatpush2.msra.mxu0 0.0
        %434 = vmatprep.subr.mxu0 0.0
        %435 = vmatpush2.msra.mxu0 0.0
        %436 = vmatprep.subr.mxu0 0.0
        %437 = vmatpush2.msra.mxu0 0.0
        %438 = vmatprep.subr.mxu0 0.0
        %439 = vmatpush2.msra.mxu0 0.0
        %440 = vmatprep.subr.mxu0 0.0
        %441 = vmatpush2.msra.mxu0 0.0
        %442 = vmatprep.subr.mxu0 0.0
        %443 = vmatpush2.msra.mxu0 0.0
        %444 = vmatprep.subr.mxu0 0.0
        %445 = vmatpush2.msra.mxu0 0.0
        %446 = vmatprep.subr.mxu0 0.0
        %447 = vmatpush2.msra.mxu0 0.0
        %448 = vmatprep.subr.mxu0 0.0
        %449 = vmatpush2.msra.mxu0 0.0
        %450 = vmatprep.subr.mxu0 0.0
        %451 = vmatpush2.msra.mxu0 0.0
        %452 = vmatprep.subr.mxu0 0.0
        %453 = vmatpush2.msra.mxu0 0.0
        %454 = vmatprep.subr.mxu0 0.0
        %455 = vmatpush2.msra.mxu0 0.0
        %456 = vmatprep.subr.mxu0 0.0
        %457 = vmatpush2.msra.mxu0 0.0
        %458 = vmatprep.subr.mxu0 0.0
        %459 = vmatpush2.msra.mxu0 0.0
        %460 = vmatprep.mubr.f32.mxu0 0.0
        %461 = vmatmul.mubr.f32.gmra.mxu0 %v253
        %v462 = vpop.f32.mrf.mxu0
        %v463 = vadd.f32 0.0, %v462
        %v464 = vpop.f32.mrf.mxu0
        %465 = vmatprep.mubr.f32.mxu0 0.0
        %466 = vmatmul.mubr.f32.gmra.mxu0 %v256
        %v467 = vpop.f32.mrf.mxu0
        %v468 = vadd.f32 0.0, %v467
        %v469 = vpop.f32.mrf.mxu0
        %470 = vmatprep.mubr.f32.mxu0 0.0
        %471 = vmatmul.mubr.f32.gmra.mxu0 %v259
        %v472 = vpop.f32.mrf.mxu0
        %v473 = vadd.f32 0.0, %v472
        %v474 = vpop.f32.mrf.mxu0
        %475 = vmatprep.mubr.f32.mxu0 0.0
        %476 = vmatmul.mubr.f32.gmra.mxu0 %v262
        %v477 = vpop.f32.mrf.mxu0
        %v478 = vadd.f32 0.0, %v477
        %v479 = vpop.f32.mrf.mxu0
        %480 = vmatprep.mubr.f32.mxu0 0.0
        %481 = vmatmul.mubr.f32.gmra.mxu0 %v265
        %v482 = vpop.f32.mrf.mxu0
        %v483 = vadd.f32 0.0, %v482
        %v484 = vpop.f32.mrf.mxu0
        %485 = vmatprep.mubr.f32.mxu0 0.0
        %486 = vmatmul.mubr.f32.gmra.mxu0 %v268
        %v487 = vpop.f32.mrf.mxu0
        %v488 = vadd.f32 0.0, %v487
        %v489 = vpop.f32.mrf.mxu0
        %490 = vmatprep.mubr.f32.mxu0 0.0
        %491 = vmatmul.mubr.f32.gmra.mxu0 %v271
        %v492 = vpop.f32.mrf.mxu0
        %v493 = vadd.f32 0.0, %v492
        %v494 = vpop.f32.mrf.mxu0
        %495 = vmatprep.mubr.f32.mxu0 0.0
        %496 = vmatmul.mubr.f32.gmra.mxu0 %v274
        %v497 = vpop.f32.mrf.mxu0
        %v498 = vadd.f32 0.0, %v497
        %v499 = vpop.f32.mrf.mxu0
        %500 = vmatprep.mubr.f32.mxu0 0.0
        %501 = vmatmul.mubr.f32.gmra.mxu0 %v277
        %v502 = vpop.f32.mrf.mxu0
        %v503 = vadd.f32 0.0, %v502
        %v504 = vpop.f32.mrf.mxu0
        %505 = vmatprep.mubr.f32.mxu0 0.0
        %506 = vmatmul.mubr.f32.gmra.mxu0 %v280
        %v507 = vpop.f32.mrf.mxu0
        %v508 = vadd.f32 0.0, %v507
        %v509 = vpop.f32.mrf.mxu0
        %510 = vmatprep.mubr.f32.mxu0 0.0
        %511 = vmatmul.mubr.f32.gmra.mxu0 %v283
        %v512 = vpop.f32.mrf.mxu0
        %v513 = vadd.f32 0.0, %v512
        %v514 = vpop.f32.mrf.mxu0
        %515 = vmatprep.mubr.f32.mxu0 0.0
        %516 = vmatmul.mubr.f32.gmra.mxu0 %v286
        %v517 = vpop.f32.mrf.mxu0
        %v518 = vadd.f32 0.0, %v517
        %v519 = vpop.f32.mrf.mxu0
        %520 = vmatprep.mubr.f32.mxu0 0.0
        %521 = vmatmul.mubr.f32.gmra.mxu0 %v289
        %v522 = vpop.f32.mrf.mxu0
        %v523 = vadd.f32 0.0, %v522
        %v524 = vpop.f32.mrf.mxu0
        %525 = vmatprep.mubr.f32.mxu0 0.0
        %526 = vmatmul.mubr.f32.gmra.mxu0 %v292
        %v527 = vpop.f32.mrf.mxu0
        %v528 = vadd.f32 0.0, %v527
        %v529 = vpop.f32.mrf.mxu0
        %530 = vmatprep.mubr.f32.mxu0 0.0
        %531 = vmatmul.mubr.f32.gmra.mxu0 %v295
        %v532 = vpop.f32.mrf.mxu0
        %v533 = vadd.f32 0.0, %v532
        %v534 = vpop.f32.mrf.mxu0
        %535 = vmatprep.mubr.f32.mxu0 0.0
        %536 = vmatmul.mubr.f32.gmra.mxu0 %v298
        %v537 = vpop.f32.mrf.mxu0
        %v538 = vadd.f32 0.0, %v537
        %v539 = vpop.f32.mrf.mxu0
        %540 = vmatprep.mubr.f32.mxu0 0.0
        %541 = vmatmul.mubr.f32.gmra.mxu0 %v301
        %v542 = vpop.f32.mrf.mxu0
        %v543 = vadd.f32 0.0, %v542
        %v544 = vpop.f32.mrf.mxu0
        %545 = vmatprep.mubr.f32.mxu0 0.0
        %546 = vmatmul.mubr.f32.gmra.mxu0 %v304
        %v547 = vpop.f32.mrf.mxu0
        %v548 = vadd.f32 0.0, %v547
        %v549 = vpop.f32.mrf.mxu0
        %550 = vmatprep.mubr.f32.mxu0 0.0
        %551 = vmatmul.mubr.f32.gmra.mxu0 %v307
        %v552 = vpop.f32.mrf.mxu0
        %v553 = vadd.f32 0.0, %v552
        %v554 = vpop.f32.mrf.mxu0
        %555 = vmatprep.mubr.f32.mxu0 0.0
        %556 = vmatmul.mubr.f32.gmra.mxu0 %v310
        %v557 = vpop.f32.mrf.mxu0
        %v558 = vadd.f32 0.0, %v557
        %v559 = vpop.f32.mrf.mxu0
        %560 = vmatprep.mubr.f32.mxu0 0.0
        %561 = vmatmul.mubr.f32.gmra.mxu0 %v313
        %v562 = vpop.f32.mrf.mxu0
        %v563 = vadd.f32 0.0, %v562
        %v564 = vpop.f32.mrf.mxu0
        %565 = vmatprep.mubr.f32.mxu0 0.0
        %566 = vmatmul.mubr.f32.gmra.mxu0 %v316
        %v567 = vpop.f32.mrf.mxu0
        %v568 = vadd.f32 0.0, %v567
        %v569 = vpop.f32.mrf.mxu0
        %570 = vmatprep.mubr.f32.mxu0 0.0
        %571 = vmatmul.mubr.f32.gmra.mxu0 %v319
        %v572 = vpop.f32.mrf.mxu0
        %v573 = vadd.f32 0.0, %v572
        %v574 = vpop.f32.mrf.mxu0
        %575 = vmatprep.mubr.f32.mxu0 0.0
        %576 = vmatmul.mubr.f32.gmra.mxu0 %v322
        %v577 = vpop.f32.mrf.mxu0
        %v578 = vadd.f32 0.0, %v577
        %v579 = vpop.f32.mrf.mxu0
        %580 = vmatprep.mubr.f32.mxu0 0.0
        %581 = vmatmul.mubr.f32.gmra.mxu0 %v325
        %v582 = vpop.f32.mrf.mxu0
        %v583 = vadd.f32 0.0, %v582
        %v584 = vpop.f32.mrf.mxu0
        %585 = vmatprep.mubr.f32.mxu0 0.0
        %586 = vmatmul.mubr.f32.gmra.mxu0 %v328
        %v587 = vpop.f32.mrf.mxu0
        %v588 = vadd.f32 0.0, %v587
        %v589 = vpop.f32.mrf.mxu0
        %590 = vmatprep.mubr.f32.mxu0 0.0
        %591 = vmatmul.mubr.f32.gmra.mxu0 %v331
        %v592 = vpop.f32.mrf.mxu0
        %v593 = vadd.f32 0.0, %v592
        %v594 = vpop.f32.mrf.mxu0
        %595 = vmatprep.mubr.f32.mxu0 0.0
        %596 = vmatmul.mubr.f32.gmra.mxu0 %v334
        %v597 = vpop.f32.mrf.mxu0
        %v598 = vadd.f32 0.0, %v597
        %v599 = vpop.f32.mrf.mxu0
        %600 = vmatprep.mubr.f32.mxu0 0.0
        %601 = vmatmul.mubr.f32.gmra.mxu0 %v337
        %v602 = vpop.f32.mrf.mxu0
        %v603 = vadd.f32 0.0, %v602
        %v604 = vpop.f32.mrf.mxu0
        %605 = vmatprep.mubr.f32.mxu0 0.0
        %606 = vmatmul.mubr.f32.gmra.mxu0 %v340
        %v607 = vpop.f32.mrf.mxu0
        %v608 = vadd.f32 0.0, %v607
        %v609 = vpop.f32.mrf.mxu0
        %610 = vmatprep.mubr.f32.mxu0 0.0
        %611 = vmatmul.mubr.f32.gmra.mxu0 %v343
        %v612 = vpop.f32.mrf.mxu0
        %v613 = vadd.f32 0.0, %v612
        %v614 = vpop.f32.mrf.mxu0
        %615 = vmatprep.mubr.f32.mxu0 0.0
        %616 = vmatmul.mubr.f32.gmra.mxu0 %v346
        %v617 = vpop.f32.mrf.mxu0
        %v618 = vadd.f32 0.0, %v617
        %v619 = vpop.f32.mrf.mxu0
        %620 = vmatprep.mubr.f32.mxu0 0.0
        %621 = vmatmul.mubr.f32.gmra.mxu0 %v349
        %v622 = vpop.f32.mrf.mxu0
        %v623 = vadd.f32 0.0, %v622
        %v624 = vpop.f32.mrf.mxu0
        %625 = vmatprep.mubr.f32.mxu0 0.0
        %626 = vmatmul.mubr.f32.gmra.mxu0 %v352
        %v627 = vpop.f32.mrf.mxu0
        %v628 = vadd.f32 0.0, %v627
        %v629 = vpop.f32.mrf.mxu0
        %630 = vmatprep.mubr.f32.mxu0 0.0
        %631 = vmatmul.mubr.f32.gmra.mxu0 %v355
        %v632 = vpop.f32.mrf.mxu0
        %v633 = vadd.f32 0.0, %v632
        %v634 = vpop.f32.mrf.mxu0
        %635 = vmatprep.mubr.f32.mxu0 0.0
        %636 = vmatmul.mubr.f32.gmra.mxu0 %v358
        %v637 = vpop.f32.mrf.mxu0
        %v638 = vadd.f32 0.0, %v637
        %v639 = vpop.f32.mrf.mxu0
        %640 = vmatprep.mubr.f32.mxu0 0.0
        %641 = vmatmul.mubr.f32.gmra.mxu0 %v361
        %v642 = vpop.f32.mrf.mxu0
        %v643 = vadd.f32 0.0, %v642
        %v644 = vpop.f32.mrf.mxu0
        %645 = vmatprep.mubr.f32.mxu0 0.0
        %646 = vmatmul.mubr.f32.gmra.mxu0 %v364
        %v647 = vpop.f32.mrf.mxu0
        %v648 = vadd.f32 0.0, %v647
        %v649 = vpop.f32.mrf.mxu0
        %650 = vmatprep.mubr.f32.mxu0 0.0
        %651 = vmatmul.mubr.f32.gmra.mxu0 %v367
        %v652 = vpop.f32.mrf.mxu0
        %v653 = vadd.f32 0.0, %v652
        %v654 = vpop.f32.mrf.mxu0
        %655 = vmatprep.mubr.f32.mxu0 0.0
        %656 = vmatmul.mubr.f32.gmra.mxu0 %v370
        %v657 = vpop.f32.mrf.mxu0
        %v658 = vadd.f32 0.0, %v657
        %v659 = vpop.f32.mrf.mxu0
        %660 = vmatprep.mubr.f32.mxu0 0.0
        %661 = vmatmul.mubr.f32.gmra.mxu0 %v373
        %v662 = vpop.f32.mrf.mxu0
        %v663 = vadd.f32 0.0, %v662
        %v664 = vpop.f32.mrf.mxu0
        %665 = vmatprep.mubr.f32.mxu0 0.0
        %666 = vmatmul.mubr.f32.gmra.mxu0 %v376
        %v667 = vpop.f32.mrf.mxu0
        %v668 = vadd.f32 0.0, %v667
        %v669 = vpop.f32.mrf.mxu0
        %670 = vmatprep.mubr.f32.mxu0 0.0
        %671 = vmatmul.mubr.f32.gmra.mxu0 %v379
        %v672 = vpop.f32.mrf.mxu0
        %v673 = vadd.f32 0.0, %v672
        %v674 = vpop.f32.mrf.mxu0
        %675 = vmatprep.mubr.f32.mxu0 0.0
        %676 = vmatmul.mubr.f32.gmra.mxu0 %v382
        %v677 = vpop.f32.mrf.mxu0
        %v678 = vadd.f32 0.0, %v677
        %v679 = vpop.f32.mrf.mxu0
        %680 = vmatprep.mubr.f32.mxu0 0.0
        %681 = vmatmul.mubr.f32.gmra.mxu0 %v385
        %v682 = vpop.f32.mrf.mxu0
        %v683 = vadd.f32 0.0, %v682
        %v684 = vpop.f32.mrf.mxu0
        %685 = vmatprep.mubr.f32.mxu0 0.0
        %686 = vmatmul.mubr.f32.gmra.mxu0 %v388
        %v687 = vpop.f32.mrf.mxu0
        %v688 = vadd.f32 0.0, %v687
        %v689 = vpop.f32.mrf.mxu0
        %690 = vmatprep.mubr.f32.mxu0 0.0
        %691 = vmatmul.mubr.f32.gmra.mxu0 %v391
        %v692 = vpop.f32.mrf.mxu0
        %v693 = vadd.f32 0.0, %v692
        %v694 = vpop.f32.mrf.mxu0
        %695 = vmatprep.mubr.f32.mxu0 0.0
        %696 = vmatmul.mubr.f32.gmra.mxu0 %v394
        %v697 = vpop.f32.mrf.mxu0
        %v698 = vadd.f32 0.0, %v697
        %v699 = vpop.f32.mrf.mxu0
        %700 = vdwg.mxu0
        %701 = vst [vmem:[#allocation2] sm:$0xff] %v463
        %702 = vst [vmem:[#allocation2 + $0x8] sm:$0xff] %v468
        %703 = vst [vmem:[#allocation2 + $0x10] sm:$0xff] %v473
        %704 = vst [vmem:[#allocation2 + $0x18] sm:$0xff] %v478
        %705 = vst [vmem:[#allocation2 + $0x20] sm:$0xff] %v483
        %706 = vst [vmem:[#allocation2 + $0x28] sm:$0xff] %v488
        %707 = vst [vmem:[#allocation2 + $0x30] sm:$0xff] %v493
        %708 = vst [vmem:[#allocation2 + $0x38] sm:$0xff] %v498
        %709 = vst [vmem:[#allocation2 + $0x40] sm:$0xff] %v503
        %710 = vst [vmem:[#allocation2 + $0x48] sm:$0xff] %v508
        %711 = vst [vmem:[#allocation2 + $0x50] sm:$0xff] %v513
        %712 = vst [vmem:[#allocation2 + $0x58] sm:$0xff] %v518
        %713 = vst [vmem:[#allocation2 + $0x60] sm:$0xff] %v523
        %714 = vst [vmem:[#allocation2 + $0x68] sm:$0xff] %v528
        %715 = vst [vmem:[#allocation2 + $0x70] sm:$0xff] %v533
        %716 = vst [vmem:[#allocation2 + $0x78] sm:$0xff] %v538
        %717 = vst [vmem:[#allocation2 + $0x80] sm:$0xff] %v543
        %718 = vst [vmem:[#allocation2 + $0x88] sm:$0xff] %v548
        %719 = vst [vmem:[#allocation2 + $0x90] sm:$0xff] %v553
        %720 = vst [vmem:[#allocation2 + $0x98] sm:$0xff] %v558
        %721 = vst [vmem:[#allocation2 + $0xa0] sm:$0xff] %v563
        %722 = vst [vmem:[#allocation2 + $0xa8] sm:$0xff] %v568
        %723 = vst [vmem:[#allocation2 + $0xb0] sm:$0xff] %v573
        %724 = vst [vmem:[#allocation2 + $0xb8] sm:$0xff] %v578
        %725 = vst [vmem:[#allocation2 + $0xc0] sm:$0xff] %v583
        %726 = vst [vmem:[#allocation2 + $0xc8] sm:$0xff] %v588
        %727 = vst [vmem:[#allocation2 + $0xd0] sm:$0xff] %v593
        %728 = vst [vmem:[#allocation2 + $0xd8] sm:$0xff] %v598
        %729 = vst [vmem:[#allocation2 + $0xe0] sm:$0xff] %v603
        %730 = vst [vmem:[#allocation2 + $0xe8] sm:$0xff] %v608
        %731 = vst [vmem:[#allocation2 + $0xf0] sm:$0xff] %v613
        %732 = vst [vmem:[#allocation2 + $0xf8] sm:$0xff] %v618
        %733 = vst [vmem:[#allocation2 + $0x100] sm:$0xff] %v623
        %734 = vst [vmem:[#allocation2 + $0x108] sm:$0xff] %v628
        %735 = vst [vmem:[#allocation2 + $0x110] sm:$0xff] %v633
        %736 = vst [vmem:[#allocation2 + $0x118] sm:$0xff] %v638
        %737 = vst [vmem:[#allocation2 + $0x120] sm:$0xff] %v643
        %738 = vst [vmem:[#allocation2 + $0x128] sm:$0xff] %v648
        %739 = vst [vmem:[#allocation2 + $0x130] sm:$0xff] %v653
        %740 = vst [vmem:[#allocation2 + $0x138] sm:$0xff] %v658
        %741 = vst [vmem:[#allocation2 + $0x140] sm:$0xff] %v663
        %742 = vst [vmem:[#allocation2 + $0x148] sm:$0xff] %v668
        %743 = vst [vmem:[#allocation2 + $0x150] sm:$0xff] %v673
        %744 = vst [vmem:[#allocation2 + $0x158] sm:$0xff] %v678
        %745 = vst [vmem:[#allocation2 + $0x160] sm:$0xff] %v683
        %746 = vst [vmem:[#allocation2 + $0x168] sm:$0xff] %v688
        %747 = vst [vmem:[#allocation2 + $0x170] sm:$0xff] %v693
        %748 = vst [vmem:[#allocation2 + $0x178] sm:$0xff] %v698
        %v749 = vrot.slane %v196, 1
        %v750 = vrot.slane %v197, 1
        %v751 = vrot.slane %v198, 1
        %v752 = vrot.slane %v199, 1
        %v753 = vrot.slane %v200, 1
        %v754 = vrot.slane %v201, 1
        %v755 = vrot.slane %v202, 1
        %v756 = vrot.slane %v203, 1
        %v757 = vrot.slane %v204, 1
        %v758 = vrot.slane %v205, 1
        %v759 = vrot.slane %v206, 1
        %v760 = vrot.slane %v207, 1
        %v761 = vrot.slane %v208, 1
        %v762 = vrot.slane %v209, 1
        %v763 = vrot.slane %v210, 1
        %v764 = vrot.slane %v211, 1
        %v765 = vrot.slane %v212, 1
        %v766 = vrot.slane %v213, 1
        %v767 = vrot.slane %v214, 1
        %v768 = vrot.slane %v215, 1
        %v769 = vrot.slane %v216, 1
        %v770 = vrot.slane %v217, 1
        %v771 = vrot.slane %v218, 1
        %v772 = vrot.slane %v219, 1
        %v773 = vrot.slane %v220, 1
        %v774 = vrot.slane %v221, 1
        %v775 = vrot.slane %v222, 1
        %v776 = vrot.slane %v223, 1
        %v777 = vrot.slane %v224, 1
        %v778 = vrot.slane %v225, 1
        %v779 = vrot.slane %v226, 1
        %v780 = vrot.slane %v227, 1
        %v781 = vrot.slane %v228, 1
        %v782 = vrot.slane %v229, 1
        %v783 = vrot.slane %v230, 1
        %v784 = vrot.slane %v231, 1
        %v785 = vrot.slane %v232, 1
        %v786 = vrot.slane %v233, 1
        %v787 = vrot.slane %v234, 1
        %v788 = vrot.slane %v235, 1
        %v789 = vrot.slane %v236, 1
        %v790 = vrot.slane %v237, 1
        %v791 = vrot.slane %v238, 1
        %v792 = vrot.slane %v239, 1
        %v793 = vrot.slane %v240, 1
        %v794 = vrot.slane %v241, 1
        %v795 = vrot.slane %v242, 1
        %v796 = vrot.slane %v243, 1
        %v797 = vlaneseq
        %v798 = vshrl.u32 %v797, 7
        %vm799 = vcmp.lt.s32.totalorder %v798, 7
        %v800 = vsel %vm799, %v795, %v796
        %v801 = vsel %vm799, %v794, %v795
        %v802 = vsel %vm799, %v793, %v794
        %v803 = vsel %vm799, %v792, %v793
        %v804 = vsel %vm799, %v791, %v792
        %v805 = vsel %vm799, %v790, %v791
        %v806 = vsel %vm799, %v789, %v790
        %v807 = vsel %vm799, %v788, %v789
        %v808 = vsel %vm799, %v787, %v788
        %v809 = vsel %vm799, %v786, %v787
        %v810 = vsel %vm799, %v785, %v786
        %v811 = vsel %vm799, %v784, %v785
        %v812 = vsel %vm799, %v783, %v784
        %v813 = vsel %vm799, %v782, %v783
        %v814 = vsel %vm799, %v781, %v782
        %v815 = vsel %vm799, %v780, %v781
        %v816 = vsel %vm799, %v779, %v780
        %v817 = vsel %vm799, %v778, %v779
        %v818 = vsel %vm799, %v777, %v778
        %v819 = vsel %vm799, %v776, %v777
        %v820 = vsel %vm799, %v775, %v776
        %v821 = vsel %vm799, %v774, %v775
        %v822 = vsel %vm799, %v773, %v774
        %v823 = vsel %vm799, %v772, %v773
        %v824 = vsel %vm799, %v771, %v772
        %v825 = vsel %vm799, %v770, %v771
        %v826 = vsel %vm799, %v769, %v770
        %v827 = vsel %vm799, %v768, %v769
        %v828 = vsel %vm799, %v767, %v768
        %v829 = vsel %vm799, %v766, %v767
        %v830 = vsel %vm799, %v765, %v766
        %v831 = vsel %vm799, %v764, %v765
        %v832 = vsel %vm799, %v763, %v764
        %v833 = vsel %vm799, %v762, %v763
        %v834 = vsel %vm799, %v761, %v762
        %v835 = vsel %vm799, %v760, %v761
        %v836 = vsel %vm799, %v759, %v760
        %v837 = vsel %vm799, %v758, %v759
        %v838 = vsel %vm799, %v757, %v758
        %v839 = vsel %vm799, %v756, %v757
        %v840 = vsel %vm799, %v755, %v756
        %v841 = vsel %vm799, %v754, %v755
        %v842 = vsel %vm799, %v753, %v754
        %v843 = vsel %vm799, %v752, %v753
        %v844 = vsel %vm799, %v751, %v752
        %v845 = vsel %vm799, %v750, %v751
        %v846 = vsel %vm799, %v749, %v750
        %v847 = vsel %vm799, %v796, %v749
        %s848 = scalar_lea.vmem %s195, 8
        %v849 = vld [vmem:[%s848] sm:$0xff]
        %v851 = vsel %vm251, %v846, 0
        %v854 = vsel %vm251, %v845, 0
        %v857 = vsel %vm251, %v844, 0
        %v860 = vsel %vm251, %v843, 0
        %v863 = vsel %vm251, %v842, 0
        %v866 = vsel %vm251, %v841, 0
        %v869 = vsel %vm251, %v840, 0
        %v872 = vsel %vm251, %v839, 0
        %v875 = vsel %vm251, %v838, 0
        %v878 = vsel %vm251, %v837, 0
        %v881 = vsel %vm251, %v836, 0
        %v884 = vsel %vm251, %v835, 0
        %v887 = vsel %vm251, %v834, 0
        %v890 = vsel %vm251, %v833, 0
        %v893 = vsel %vm251, %v832, 0
        %v896 = vsel %vm251, %v831, 0
        %v899 = vsel %vm251, %v830, 0
        %v902 = vsel %vm251, %v829, 0
        %v905 = vsel %vm251, %v828, 0
        %v908 = vsel %vm251, %v827, 0
        %v911 = vsel %vm251, %v826, 0
        %v914 = vsel %vm251, %v825, 0
        %v917 = vsel %vm251, %v824, 0
        %v920 = vsel %vm251, %v823, 0
        %v923 = vsel %vm251, %v822, 0
        %v926 = vsel %vm251, %v821, 0
        %v929 = vsel %vm251, %v820, 0
        %v932 = vsel %vm251, %v819, 0
        %v935 = vsel %vm251, %v818, 0
        %v938 = vsel %vm251, %v817, 0
        %v941 = vsel %vm251, %v816, 0
        %v944 = vsel %vm251, %v815, 0
        %v947 = vsel %vm251, %v814, 0
        %v950 = vsel %vm251, %v813, 0
        %v953 = vsel %vm251, %v812, 0
        %v956 = vsel %vm251, %v811, 0
        %v959 = vsel %vm251, %v810, 0
        %v962 = vsel %vm251, %v809, 0
        %v965 = vsel %vm251, %v808, 0
        %v968 = vsel %vm251, %v807, 0
        %v971 = vsel %vm251, %v806, 0
        %v974 = vsel %vm251, %v805, 0
        %v977 = vsel %vm251, %v804, 0
        %v980 = vsel %vm251, %v803, 0
        %v983 = vsel %vm251, %v802, 0
        %v986 = vsel %vm251, %v801, 0
        %v989 = vsel %vm251, %v800, 0
        %v992 = vsel %vm251, %v847, 0
        %994 = vmatprep.subr.mxu0 0.0
        %995 = vmatpush1.msra.mxu0 0.0
        %996 = vmatprep.subr.mxu0 0.0
        %997 = vmatpush1.msra.mxu0 0.0
        %998 = vmatprep.subr.mxu0 0.0
        %999 = vmatpush1.msra.mxu0 0.0
        %1000 = vmatprep.subr.mxu0 0.0
        %1001 = vmatpush1.msra.mxu0 0.0
        %1002 = vmatprep.subr.mxu0 0.0
        %1003 = vmatpush1.msra.mxu0 0.0
        %1004 = vmatprep.subr.mxu0 0.0
        %1005 = vmatpush1.msra.mxu0 0.0
        %1006 = vmatprep.subr.mxu0 0.0
        %1007 = vmatpush1.msra.mxu0 0.0
        %1008 = vmatprep.subr.mxu0 0.0
        %1009 = vmatpush1.msra.mxu0 0.0
        %1010 = vmatprep.subr.mxu0 0.0
        %1011 = vmatpush1.msra.mxu0 0.0
        %1012 = vmatprep.subr.mxu0 0.0
        %1013 = vmatpush1.msra.mxu0 0.0
        %1014 = vmatprep.subr.mxu0 0.0
        %1015 = vmatpush1.msra.mxu0 0.0
        %1016 = vmatprep.subr.mxu0 0.0
        %1017 = vmatpush1.msra.mxu0 0.0
        %1018 = vmatprep.subr.mxu0 0.0
        %1019 = vmatpush1.msra.mxu0 0.0
        %1020 = vmatprep.subr.mxu0 0.0
        %1021 = vmatpush1.msra.mxu0 0.0
        %1022 = vmatprep.subr.mxu0 0.0
        %1023 = vmatpush1.msra.mxu0 0.0
        %1024 = vmatprep.subr.mxu0 0.0
        %1025 = vmatpush1.msra.mxu0 %v849
        %1026 = vmatprep.subr.mxu0 0.0
        %1027 = vmatpush2.msra.mxu0 0.0
        %1028 = vmatprep.subr.mxu0 0.0
        %1029 = vmatpush2.msra.mxu0 0.0
        %1030 = vmatprep.subr.mxu0 0.0
        %1031 = vmatpush2.msra.mxu0 0.0
        %1032 = vmatprep.subr.mxu0 0.0
        %1033 = vmatpush2.msra.mxu0 0.0
        %1034 = vmatprep.subr.mxu0 0.0
        %1035 = vmatpush2.msra.mxu0 0.0
        %1036 = vmatprep.subr.mxu0 0.0
        %1037 = vmatpush2.msra.mxu0 0.0
        %1038 = vmatprep.subr.mxu0 0.0
        %1039 = vmatpush2.msra.mxu0 0.0
        %1040 = vmatprep.subr.mxu0 0.0
        %1041 = vmatpush2.msra.mxu0 0.0
        %1042 = vmatprep.subr.mxu0 0.0
        %1043 = vmatpush2.msra.mxu0 0.0
        %1044 = vmatprep.subr.mxu0 0.0
        %1045 = vmatpush2.msra.mxu0 0.0
        %1046 = vmatprep.subr.mxu0 0.0
        %1047 = vmatpush2.msra.mxu0 0.0
        %1048 = vmatprep.subr.mxu0 0.0
        %1049 = vmatpush2.msra.mxu0 0.0
        %1050 = vmatprep.subr.mxu0 0.0
        %1051 = vmatpush2.msra.mxu0 0.0
        %1052 = vmatprep.subr.mxu0 0.0
        %1053 = vmatpush2.msra.mxu0 0.0
        %1054 = vmatprep.subr.mxu0 0.0
        %1055 = vmatpush2.msra.mxu0 0.0
        %1056 = vmatprep.subr.mxu0 0.0
        %1057 = vmatpush2.msra.mxu0 0.0
        %1058 = vmatprep.mubr.f32.mxu0 0.0
        %1059 = vmatmul.mubr.f32.gmra.mxu0 %v851
        %v1060 = vpop.f32.mrf.mxu0
        %v1061 = vadd.f32 0.0, %v1060
        %v1062 = vpop.f32.mrf.mxu0
        %1063 = vmatprep.mubr.f32.mxu0 0.0
        %1064 = vmatmul.mubr.f32.gmra.mxu0 %v854
        %v1065 = vpop.f32.mrf.mxu0
        %v1066 = vadd.f32 0.0, %v1065
        %v1067 = vpop.f32.mrf.mxu0
        %1068 = vmatprep.mubr.f32.mxu0 0.0
        %1069 = vmatmul.mubr.f32.gmra.mxu0 %v857
        %v1070 = vpop.f32.mrf.mxu0
        %v1071 = vadd.f32 0.0, %v1070
        %v1072 = vpop.f32.mrf.mxu0
        %1073 = vmatprep.mubr.f32.mxu0 0.0
        %1074 = vmatmul.mubr.f32.gmra.mxu0 %v860
        %v1075 = vpop.f32.mrf.mxu0
        %v1076 = vadd.f32 0.0, %v1075
        %v1077 = vpop.f32.mrf.mxu0
        %1078 = vmatprep.mubr.f32.mxu0 0.0
        %1079 = vmatmul.mubr.f32.gmra.mxu0 %v863
        %v1080 = vpop.f32.mrf.mxu0
        %v1081 = vadd.f32 0.0, %v1080
        %v1082 = vpop.f32.mrf.mxu0
        %1083 = vmatprep.mubr.f32.mxu0 0.0
        %1084 = vmatmul.mubr.f32.gmra.mxu0 %v866
        %v1085 = vpop.f32.mrf.mxu0
        %v1086 = vadd.f32 0.0, %v1085
        %v1087 = vpop.f32.mrf.mxu0
        %1088 = vmatprep.mubr.f32.mxu0 0.0
        %1089 = vmatmul.mubr.f32.gmra.mxu0 %v869
        %v1090 = vpop.f32.mrf.mxu0
        %v1091 = vadd.f32 0.0, %v1090
        %v1092 = vpop.f32.mrf.mxu0
        %1093 = vmatprep.mubr.f32.mxu0 0.0
        %1094 = vmatmul.mubr.f32.gmra.mxu0 %v872
        %v1095 = vpop.f32.mrf.mxu0
        %v1096 = vadd.f32 0.0, %v1095
        %v1097 = vpop.f32.mrf.mxu0
        %1098 = vmatprep.mubr.f32.mxu0 0.0
        %1099 = vmatmul.mubr.f32.gmra.mxu0 %v875
        %v1100 = vpop.f32.mrf.mxu0
        %v1101 = vadd.f32 0.0, %v1100
        %v1102 = vpop.f32.mrf.mxu0
        %1103 = vmatprep.mubr.f32.mxu0 0.0
        %1104 = vmatmul.mubr.f32.gmra.mxu0 %v878
        %v1105 = vpop.f32.mrf.mxu0
        %v1106 = vadd.f32 0.0, %v1105
        %v1107 = vpop.f32.mrf.mxu0
        %1108 = vmatprep.mubr.f32.mxu0 0.0
        %1109 = vmatmul.mubr.f32.gmra.mxu0 %v881
        %v1110 = vpop.f32.mrf.mxu0
        %v1111 = vadd.f32 0.0, %v1110
        %v1112 = vpop.f32.mrf.mxu0
        %1113 = vmatprep.mubr.f32.mxu0 0.0
        %1114 = vmatmul.mubr.f32.gmra.mxu0 %v884
        %v1115 = vpop.f32.mrf.mxu0
        %v1116 = vadd.f32 0.0, %v1115
        %v1117 = vpop.f32.mrf.mxu0
        %1118 = vmatprep.mubr.f32.mxu0 0.0
        %1119 = vmatmul.mubr.f32.gmra.mxu0 %v887
        %v1120 = vpop.f32.mrf.mxu0
        %v1121 = vadd.f32 0.0, %v1120
        %v1122 = vpop.f32.mrf.mxu0
        %1123 = vmatprep.mubr.f32.mxu0 0.0
        %1124 = vmatmul.mubr.f32.gmra.mxu0 %v890
        %v1125 = vpop.f32.mrf.mxu0
        %v1126 = vadd.f32 0.0, %v1125
        %v1127 = vpop.f32.mrf.mxu0
        %1128 = vmatprep.mubr.f32.mxu0 0.0
        %1129 = vmatmul.mubr.f32.gmra.mxu0 %v893
        %v1130 = vpop.f32.mrf.mxu0
        %v1131 = vadd.f32 0.0, %v1130
        %v1132 = vpop.f32.mrf.mxu0
        %1133 = vmatprep.mubr.f32.mxu0 0.0
        %1134 = vmatmul.mubr.f32.gmra.mxu0 %v896
        %v1135 = vpop.f32.mrf.mxu0
        %v1136 = vadd.f32 0.0, %v1135
        %v1137 = vpop.f32.mrf.mxu0
        %1138 = vmatprep.mubr.f32.mxu0 0.0
        %1139 = vmatmul.mubr.f32.gmra.mxu0 %v899
        %v1140 = vpop.f32.mrf.mxu0
        %v1141 = vadd.f32 0.0, %v1140
        %v1142 = vpop.f32.mrf.mxu0
        %1143 = vmatprep.mubr.f32.mxu0 0.0
        %1144 = vmatmul.mubr.f32.gmra.mxu0 %v902
        %v1145 = vpop.f32.mrf.mxu0
        %v1146 = vadd.f32 0.0, %v1145
        %v1147 = vpop.f32.mrf.mxu0
        %1148 = vmatprep.mubr.f32.mxu0 0.0
        %1149 = vmatmul.mubr.f32.gmra.mxu0 %v905
        %v1150 = vpop.f32.mrf.mxu0
        %v1151 = vadd.f32 0.0, %v1150
        %v1152 = vpop.f32.mrf.mxu0
        %1153 = vmatprep.mubr.f32.mxu0 0.0
        %1154 = vmatmul.mubr.f32.gmra.mxu0 %v908
        %v1155 = vpop.f32.mrf.mxu0
        %v1156 = vadd.f32 0.0, %v1155
        %v1157 = vpop.f32.mrf.mxu0
        %1158 = vmatprep.mubr.f32.mxu0 0.0
        %1159 = vmatmul.mubr.f32.gmra.mxu0 %v911
        %v1160 = vpop.f32.mrf.mxu0
        %v1161 = vadd.f32 0.0, %v1160
        %v1162 = vpop.f32.mrf.mxu0
        %1163 = vmatprep.mubr.f32.mxu0 0.0
        %1164 = vmatmul.mubr.f32.gmra.mxu0 %v914
        %v1165 = vpop.f32.mrf.mxu0
        %v1166 = vadd.f32 0.0, %v1165
        %v1167 = vpop.f32.mrf.mxu0
        %1168 = vmatprep.mubr.f32.mxu0 0.0
        %1169 = vmatmul.mubr.f32.gmra.mxu0 %v917
        %v1170 = vpop.f32.mrf.mxu0
        %v1171 = vadd.f32 0.0, %v1170
        %v1172 = vpop.f32.mrf.mxu0
        %1173 = vmatprep.mubr.f32.mxu0 0.0
        %1174 = vmatmul.mubr.f32.gmra.mxu0 %v920
        %v1175 = vpop.f32.mrf.mxu0
        %v1176 = vadd.f32 0.0, %v1175
        %v1177 = vpop.f32.mrf.mxu0
        %1178 = vmatprep.mubr.f32.mxu0 0.0
        %1179 = vmatmul.mubr.f32.gmra.mxu0 %v923
        %v1180 = vpop.f32.mrf.mxu0
        %v1181 = vadd.f32 0.0, %v1180
        %v1182 = vpop.f32.mrf.mxu0
        %1183 = vmatprep.mubr.f32.mxu0 0.0
        %1184 = vmatmul.mubr.f32.gmra.mxu0 %v926
        %v1185 = vpop.f32.mrf.mxu0
        %v1186 = vadd.f32 0.0, %v1185
        %v1187 = vpop.f32.mrf.mxu0
        %1188 = vmatprep.mubr.f32.mxu0 0.0
        %1189 = vmatmul.mubr.f32.gmra.mxu0 %v929
        %v1190 = vpop.f32.mrf.mxu0
        %v1191 = vadd.f32 0.0, %v1190
        %v1192 = vpop.f32.mrf.mxu0
        %1193 = vmatprep.mubr.f32.mxu0 0.0
        %1194 = vmatmul.mubr.f32.gmra.mxu0 %v932
        %v1195 = vpop.f32.mrf.mxu0
        %v1196 = vadd.f32 0.0, %v1195
        %v1197 = vpop.f32.mrf.mxu0
        %1198 = vmatprep.mubr.f32.mxu0 0.0
        %1199 = vmatmul.mubr.f32.gmra.mxu0 %v935
        %v1200 = vpop.f32.mrf.mxu0
        %v1201 = vadd.f32 0.0, %v1200
        %v1202 = vpop.f32.mrf.mxu0
        %1203 = vmatprep.mubr.f32.mxu0 0.0
        %1204 = vmatmul.mubr.f32.gmra.mxu0 %v938
        %v1205 = vpop.f32.mrf.mxu0
        %v1206 = vadd.f32 0.0, %v1205
        %v1207 = vpop.f32.mrf.mxu0
        %1208 = vmatprep.mubr.f32.mxu0 0.0
        %1209 = vmatmul.mubr.f32.gmra.mxu0 %v941
        %v1210 = vpop.f32.mrf.mxu0
        %v1211 = vadd.f32 0.0, %v1210
        %v1212 = vpop.f32.mrf.mxu0
        %1213 = vmatprep.mubr.f32.mxu0 0.0
        %1214 = vmatmul.mubr.f32.gmra.mxu0 %v944
        %v1215 = vpop.f32.mrf.mxu0
        %v1216 = vadd.f32 0.0, %v1215
        %v1217 = vpop.f32.mrf.mxu0
        %1218 = vmatprep.mubr.f32.mxu0 0.0
        %1219 = vmatmul.mubr.f32.gmra.mxu0 %v947
        %v1220 = vpop.f32.mrf.mxu0
        %v1221 = vadd.f32 0.0, %v1220
        %v1222 = vpop.f32.mrf.mxu0
        %1223 = vmatprep.mubr.f32.mxu0 0.0
        %1224 = vmatmul.mubr.f32.gmra.mxu0 %v950
        %v1225 = vpop.f32.mrf.mxu0
        %v1226 = vadd.f32 0.0, %v1225
        %v1227 = vpop.f32.mrf.mxu0
        %1228 = vmatprep.mubr.f32.mxu0 0.0
        %1229 = vmatmul.mubr.f32.gmra.mxu0 %v953
        %v1230 = vpop.f32.mrf.mxu0
        %v1231 = vadd.f32 0.0, %v1230
        %v1232 = vpop.f32.mrf.mxu0
        %1233 = vmatprep.mubr.f32.mxu0 0.0
        %1234 = vmatmul.mubr.f32.gmra.mxu0 %v956
        %v1235 = vpop.f32.mrf.mxu0
        %v1236 = vadd.f32 0.0, %v1235
        %v1237 = vpop.f32.mrf.mxu0
        %1238 = vmatprep.mubr.f32.mxu0 0.0
        %1239 = vmatmul.mubr.f32.gmra.mxu0 %v959
        %v1240 = vpop.f32.mrf.mxu0
        %v1241 = vadd.f32 0.0, %v1240
        %v1242 = vpop.f32.mrf.mxu0
        %1243 = vmatprep.mubr.f32.mxu0 0.0
        %1244 = vmatmul.mubr.f32.gmra.mxu0 %v962
        %v1245 = vpop.f32.mrf.mxu0
        %v1246 = vadd.f32 0.0, %v1245
        %v1247 = vpop.f32.mrf.mxu0
        %1248 = vmatprep.mubr.f32.mxu0 0.0
        %1249 = vmatmul.mubr.f32.gmra.mxu0 %v965
        %v1250 = vpop.f32.mrf.mxu0
        %v1251 = vadd.f32 0.0, %v1250
        %v1252 = vpop.f32.mrf.mxu0
        %1253 = vmatprep.mubr.f32.mxu0 0.0
        %1254 = vmatmul.mubr.f32.gmra.mxu0 %v968
        %v1255 = vpop.f32.mrf.mxu0
        %v1256 = vadd.f32 0.0, %v1255
        %v1257 = vpop.f32.mrf.mxu0
        %1258 = vmatprep.mubr.f32.mxu0 0.0
        %1259 = vmatmul.mubr.f32.gmra.mxu0 %v971
        %v1260 = vpop.f32.mrf.mxu0
        %v1261 = vadd.f32 0.0, %v1260
        %v1262 = vpop.f32.mrf.mxu0
        %1263 = vmatprep.mubr.f32.mxu0 0.0
        %1264 = vmatmul.mubr.f32.gmra.mxu0 %v974
        %v1265 = vpop.f32.mrf.mxu0
        %v1266 = vadd.f32 0.0, %v1265
        %v1267 = vpop.f32.mrf.mxu0
        %1268 = vmatprep.mubr.f32.mxu0 0.0
        %1269 = vmatmul.mubr.f32.gmra.mxu0 %v977
        %v1270 = vpop.f32.mrf.mxu0
        %v1271 = vadd.f32 0.0, %v1270
        %v1272 = vpop.f32.mrf.mxu0
        %1273 = vmatprep.mubr.f32.mxu0 0.0
        %1274 = vmatmul.mubr.f32.gmra.mxu0 %v980
        %v1275 = vpop.f32.mrf.mxu0
        %v1276 = vadd.f32 0.0, %v1275
        %v1277 = vpop.f32.mrf.mxu0
        %1278 = vmatprep.mubr.f32.mxu0 0.0
        %1279 = vmatmul.mubr.f32.gmra.mxu0 %v983
        %v1280 = vpop.f32.mrf.mxu0
        %v1281 = vadd.f32 0.0, %v1280
        %v1282 = vpop.f32.mrf.mxu0
        %1283 = vmatprep.mubr.f32.mxu0 0.0
        %1284 = vmatmul.mubr.f32.gmra.mxu0 %v986
        %v1285 = vpop.f32.mrf.mxu0
        %v1286 = vadd.f32 0.0, %v1285
        %v1287 = vpop.f32.mrf.mxu0
        %1288 = vmatprep.mubr.f32.mxu0 0.0
        %1289 = vmatmul.mubr.f32.gmra.mxu0 %v989
        %v1290 = vpop.f32.mrf.mxu0
        %v1291 = vadd.f32 0.0, %v1290
        %v1292 = vpop.f32.mrf.mxu0
        %1293 = vmatprep.mubr.f32.mxu0 0.0
        %1294 = vmatmul.mubr.f32.gmra.mxu0 %v992
        %v1295 = vpop.f32.mrf.mxu0
        %v1296 = vadd.f32 0.0, %v1295
        %v1297 = vpop.f32.mrf.mxu0
        %1298 = vdwg.mxu0
        %v1299 = vld [vmem:[#allocation2] sm:$0xff]
        %v1300 = vld [vmem:[#allocation2 + $0x8] sm:$0xff]
        %v1301 = vld [vmem:[#allocation2 + $0x10] sm:$0xff]
        %v1302 = vld [vmem:[#allocation2 + $0x18] sm:$0xff]
        %v1303 = vld [vmem:[#allocation2 + $0x20] sm:$0xff]
        %v1304 = vld [vmem:[#allocation2 + $0x28] sm:$0xff]
        %v1305 = vld [vmem:[#allocation2 + $0x30] sm:$0xff]
        %v1306 = vld [vmem:[#allocation2 + $0x38] sm:$0xff]
        %v1307 = vld [vmem:[#allocation2 + $0x40] sm:$0xff]
        %v1308 = vld [vmem:[#allocation2 + $0x48] sm:$0xff]
        %v1309 = vld [vmem:[#allocation2 + $0x50] sm:$0xff]
        %v1310 = vld [vmem:[#allocation2 + $0x58] sm:$0xff]
        %v1311 = vld [vmem:[#allocation2 + $0x60] sm:$0xff]
        %v1312 = vld [vmem:[#allocation2 + $0x68] sm:$0xff]
        %v1313 = vld [vmem:[#allocation2 + $0x70] sm:$0xff]
        %v1314 = vld [vmem:[#allocation2 + $0x78] sm:$0xff]
        %v1315 = vld [vmem:[#allocation2 + $0x80] sm:$0xff]
        %v1316 = vld [vmem:[#allocation2 + $0x88] sm:$0xff]
        %v1317 = vld [vmem:[#allocation2 + $0x90] sm:$0xff]
        %v1318 = vld [vmem:[#allocation2 + $0x98] sm:$0xff]
        %v1319 = vld [vmem:[#allocation2 + $0xa0] sm:$0xff]
        %v1320 = vld [vmem:[#allocation2 + $0xa8] sm:$0xff]
        %v1321 = vld [vmem:[#allocation2 + $0xb0] sm:$0xff]
        %v1322 = vld [vmem:[#allocation2 + $0xb8] sm:$0xff]
        %v1323 = vld [vmem:[#allocation2 + $0xc0] sm:$0xff]
        %v1324 = vld [vmem:[#allocation2 + $0xc8] sm:$0xff]
        %v1325 = vld [vmem:[#allocation2 + $0xd0] sm:$0xff]
        %v1326 = vld [vmem:[#allocation2 + $0xd8] sm:$0xff]
        %v1327 = vld [vmem:[#allocation2 + $0xe0] sm:$0xff]
        %v1328 = vld [vmem:[#allocation2 + $0xe8] sm:$0xff]
        %v1329 = vld [vmem:[#allocation2 + $0xf0] sm:$0xff]
        %v1330 = vld [vmem:[#allocation2 + $0xf8] sm:$0xff]
        %v1331 = vld [vmem:[#allocation2 + $0x100] sm:$0xff]
        %v1332 = vld [vmem:[#allocation2 + $0x108] sm:$0xff]
        %v1333 = vld [vmem:[#allocation2 + $0x110] sm:$0xff]
        %v1334 = vld [vmem:[#allocation2 + $0x118] sm:$0xff]
        %v1335 = vld [vmem:[#allocation2 + $0x120] sm:$0xff]
        %v1336 = vld [vmem:[#allocation2 + $0x128] sm:$0xff]
        %v1337 = vld [vmem:[#allocation2 + $0x130] sm:$0xff]
        %v1338 = vld [vmem:[#allocation2 + $0x138] sm:$0xff]
        %v1339 = vld [vmem:[#allocation2 + $0x140] sm:$0xff]
        %v1340 = vld [vmem:[#allocation2 + $0x148] sm:$0xff]
        %v1341 = vld [vmem:[#allocation2 + $0x150] sm:$0xff]
        %v1342 = vld [vmem:[#allocation2 + $0x158] sm:$0xff]
        %v1343 = vld [vmem:[#allocation2 + $0x160] sm:$0xff]
        %v1344 = vld [vmem:[#allocation2 + $0x168] sm:$0xff]
        %v1345 = vld [vmem:[#allocation2 + $0x170] sm:$0xff]
        %v1346 = vld [vmem:[#allocation2 + $0x178] sm:$0xff]
        %v1347 = vadd.f32 %v1299, %v1061
        %v1348 = vadd.f32 %v1300, %v1066
        %v1349 = vadd.f32 %v1301, %v1071
        %v1350 = vadd.f32 %v1302, %v1076
        %v1351 = vadd.f32 %v1303, %v1081
        %v1352 = vadd.f32 %v1304, %v1086
        %v1353 = vadd.f32 %v1305, %v1091
        %v1354 = vadd.f32 %v1306, %v1096
        %v1355 = vadd.f32 %v1307, %v1101
        %v1356 = vadd.f32 %v1308, %v1106
        %v1357 = vadd.f32 %v1309, %v1111
        %v1358 = vadd.f32 %v1310, %v1116
        %v1359 = vadd.f32 %v1311, %v1121
        %v1360 = vadd.f32 %v1312, %v1126
        %v1361 = vadd.f32 %v1313, %v1131
        %v1362 = vadd.f32 %v1314, %v1136
        %v1363 = vadd.f32 %v1315, %v1141
        %v1364 = vadd.f32 %v1316, %v1146
        %v1365 = vadd.f32 %v1317, %v1151
        %v1366 = vadd.f32 %v1318, %v1156
        %v1367 = vadd.f32 %v1319, %v1161
        %v1368 = vadd.f32 %v1320, %v1166
        %v1369 = vadd.f32 %v1321, %v1171
        %v1370 = vadd.f32 %v1322, %v1176
        %v1371 = vadd.f32 %v1323, %v1181
        %v1372 = vadd.f32 %v1324, %v1186
        %v1373 = vadd.f32 %v1325, %v1191
        %v1374 = vadd.f32 %v1326, %v1196
        %v1375 = vadd.f32 %v1327, %v1201
        %v1376 = vadd.f32 %v1328, %v1206
        %v1377 = vadd.f32 %v1329, %v1211
        %v1378 = vadd.f32 %v1330, %v1216
        %v1379 = vadd.f32 %v1331, %v1221
        %v1380 = vadd.f32 %v1332, %v1226
        %v1381 = vadd.f32 %v1333, %v1231
        %v1382 = vadd.f32 %v1334, %v1236
        %v1383 = vadd.f32 %v1335, %v1241
        %v1384 = vadd.f32 %v1336, %v1246
        %v1385 = vadd.f32 %v1337, %v1251
        %v1386 = vadd.f32 %v1338, %v1256
        %v1387 = vadd.f32 %v1339, %v1261
        %v1388 = vadd.f32 %v1340, %v1266
        %v1389 = vadd.f32 %v1341, %v1271
        %v1390 = vadd.f32 %v1342, %v1276
        %v1391 = vadd.f32 %v1343, %v1281
        %v1392 = vadd.f32 %v1344, %v1286
        %v1393 = vadd.f32 %v1345, %v1291
        %v1394 = vadd.f32 %v1346, %v1296
        %1395 = vst [vmem:[#allocation2] sm:$0xff] %v1347
        %1396 = vst [vmem:[#allocation2 + $0x8] sm:$0xff] %v1348
        %1397 = vst [vmem:[#allocation2 + $0x10] sm:$0xff] %v1349
        %1398 = vst [vmem:[#allocation2 + $0x18] sm:$0xff] %v1350
        %1399 = vst [vmem:[#allocation2 + $0x20] sm:$0xff] %v1351
        %1400 = vst [vmem:[#allocation2 + $0x28] sm:$0xff] %v1352
        %1401 = vst [vmem:[#allocation2 + $0x30] sm:$0xff] %v1353
        %1402 = vst [vmem:[#allocation2 + $0x38] sm:$0xff] %v1354
        %1403 = vst [vmem:[#allocation2 + $0x40] sm:$0xff] %v1355
        %1404 = vst [vmem:[#allocation2 + $0x48] sm:$0xff] %v1356
        %1405 = vst [vmem:[#allocation2 + $0x50] sm:$0xff] %v1357
        %1406 = vst [vmem:[#allocation2 + $0x58] sm:$0xff] %v1358
        %1407 = vst [vmem:[#allocation2 + $0x60] sm:$0xff] %v1359
        %1408 = vst [vmem:[#allocation2 + $0x68] sm:$0xff] %v1360
        %1409 = vst [vmem:[#allocation2 + $0x70] sm:$0xff] %v1361
        %1410 = vst [vmem:[#allocation2 + $0x78] sm:$0xff] %v1362
        %1411 = vst [vmem:[#allocation2 + $0x80] sm:$0xff] %v1363
        %1412 = vst [vmem:[#allocation2 + $0x88] sm:$0xff] %v1364
        %1413 = vst [vmem:[#allocation2 + $0x90] sm:$0xff] %v1365
        %1414 = vst [vmem:[#allocation2 + $0x98] sm:$0xff] %v1366
        %1415 = vst [vmem:[#allocation2 + $0xa0] sm:$0xff] %v1367
        %1416 = vst [vmem:[#allocation2 + $0xa8] sm:$0xff] %v1368
        %1417 = vst [vmem:[#allocation2 + $0xb0] sm:$0xff] %v1369
        %1418 = vst [vmem:[#allocation2 + $0xb8] sm:$0xff] %v1370
        %1419 = vst [vmem:[#allocation2 + $0xc0] sm:$0xff] %v1371
        %1420 = vst [vmem:[#allocation2 + $0xc8] sm:$0xff] %v1372
        %1421 = vst [vmem:[#allocation2 + $0xd0] sm:$0xff] %v1373
        %1422 = vst [vmem:[#allocation2 + $0xd8] sm:$0xff] %v1374
        %1423 = vst [vmem:[#allocation2 + $0xe0] sm:$0xff] %v1375
        %1424 = vst [vmem:[#allocation2 + $0xe8] sm:$0xff] %v1376
        %1425 = vst [vmem:[#allocation2 + $0xf0] sm:$0xff] %v1377
        %1426 = vst [vmem:[#allocation2 + $0xf8] sm:$0xff] %v1378
        %1427 = vst [vmem:[#allocation2 + $0x100] sm:$0xff] %v1379
        %1428 = vst [vmem:[#allocation2 + $0x108] sm:$0xff] %v1380
        %1429 = vst [vmem:[#allocation2 + $0x110] sm:$0xff] %v1381
        %1430 = vst [vmem:[#allocation2 + $0x118] sm:$0xff] %v1382
        %1431 = vst [vmem:[#allocation2 + $0x120] sm:$0xff] %v1383
        %1432 = vst [vmem:[#allocation2 + $0x128] sm:$0xff] %v1384
        %1433 = vst [vmem:[#allocation2 + $0x130] sm:$0xff] %v1385
        %1434 = vst [vmem:[#allocation2 + $0x138] sm:$0xff] %v1386
        %1435 = vst [vmem:[#allocation2 + $0x140] sm:$0xff] %v1387
        %1436 = vst [vmem:[#allocation2 + $0x148] sm:$0xff] %v1388
        %1437 = vst [vmem:[#allocation2 + $0x150] sm:$0xff] %v1389
        %1438 = vst [vmem:[#allocation2 + $0x158] sm:$0xff] %v1390
        %1439 = vst [vmem:[#allocation2 + $0x160] sm:$0xff] %v1391
        %1440 = vst [vmem:[#allocation2 + $0x168] sm:$0xff] %v1392
        %1441 = vst [vmem:[#allocation2 + $0x170] sm:$0xff] %v1393
        %1442 = vst [vmem:[#allocation2 + $0x178] sm:$0xff] %v1394
        %v1443 = vrot.slane %v196, 2
        %v1444 = vrot.slane %v197, 2
        %v1445 = vrot.slane %v198, 2
        %v1446 = vrot.slane %v199, 2
        %v1447 = vrot.slane %v200, 2
        %v1448 = vrot.slane %v201, 2
        %v1449 = vrot.slane %v202, 2
        %v1450 = vrot.slane %v203, 2
        %v1451 = vrot.slane %v204, 2
        %v1452 = vrot.slane %v205, 2
        %v1453 = vrot.slane %v206, 2
        %v1454 = vrot.slane %v207, 2
        %v1455 = vrot.slane %v208, 2
        %v1456 = vrot.slane %v209, 2
        %v1457 = vrot.slane %v210, 2
        %v1458 = vrot.slane %v211, 2
        %v1459 = vrot.slane %v212, 2
        %v1460 = vrot.slane %v213, 2
        %v1461 = vrot.slane %v214, 2
        %v1462 = vrot.slane %v215, 2
        %v1463 = vrot.slane %v216, 2
        %v1464 = vrot.slane %v217, 2
        %v1465 = vrot.slane %v218, 2
        %v1466 = vrot.slane %v219, 2
        %v1467 = vrot.slane %v220, 2
        %v1468 = vrot.slane %v221, 2
        %v1469 = vrot.slane %v222, 2
        %v1470 = vrot.slane %v223, 2
        %v1471 = vrot.slane %v224, 2
        %v1472 = vrot.slane %v225, 2
        %v1473 = vrot.slane %v226, 2
        %v1474 = vrot.slane %v227, 2
        %v1475 = vrot.slane %v228, 2
        %v1476 = vrot.slane %v229, 2
        %v1477 = vrot.slane %v230, 2
        %v1478 = vrot.slane %v231, 2
        %v1479 = vrot.slane %v232, 2
        %v1480 = vrot.slane %v233, 2
        %v1481 = vrot.slane %v234, 2
        %v1482 = vrot.slane %v235, 2
        %v1483 = vrot.slane %v236, 2
        %v1484 = vrot.slane %v237, 2
        %v1485 = vrot.slane %v238, 2
        %v1486 = vrot.slane %v239, 2
        %v1487 = vrot.slane %v240, 2
        %v1488 = vrot.slane %v241, 2
        %v1489 = vrot.slane %v242, 2
        %v1490 = vrot.slane %v243, 2
        %vm1491 = vcmp.lt.s32.totalorder %v798, 6
        %v1492 = vsel %vm1491, %v1489, %v1490
        %v1493 = vsel %vm1491, %v1488, %v1489
        %v1494 = vsel %vm1491, %v1487, %v1488
        %v1495 = vsel %vm1491, %v1486, %v1487
        %v1496 = vsel %vm1491, %v1485, %v1486
        %v1497 = vsel %vm1491, %v1484, %v1485
        %v1498 = vsel %vm1491, %v1483, %v1484
        %v1499 = vsel %vm1491, %v1482, %v1483
        %v1500 = vsel %vm1491, %v1481, %v1482
        %v1501 = vsel %vm1491, %v1480, %v1481
        %v1502 = vsel %vm1491, %v1479, %v1480
        %v1503 = vsel %vm1491, %v1478, %v1479
        %v1504 = vsel %vm1491, %v1477, %v1478
        %v1505 = vsel %vm1491, %v1476, %v1477
        %v1506 = vsel %vm1491, %v1475, %v1476
        %v1507 = vsel %vm1491, %v1474, %v1475
        %v1508 = vsel %vm1491, %v1473, %v1474
        %v1509 = vsel %vm1491, %v1472, %v1473
        %v1510 = vsel %vm1491, %v1471, %v1472
        %v1511 = vsel %vm1491, %v1470, %v1471
        %v1512 = vsel %vm1491, %v1469, %v1470
        %v1513 = vsel %vm1491, %v1468, %v1469
        %v1514 = vsel %vm1491, %v1467, %v1468
        %v1515 = vsel %vm1491, %v1466, %v1467
        %v1516 = vsel %vm1491, %v1465, %v1466
        %v1517 = vsel %vm1491, %v1464, %v1465
        %v1518 = vsel %vm1491, %v1463, %v1464
        %v1519 = vsel %vm1491, %v1462, %v1463
        %v1520 = vsel %vm1491, %v1461, %v1462
        %v1521 = vsel %vm1491, %v1460, %v1461
        %v1522 = vsel %vm1491, %v1459, %v1460
        %v1523 = vsel %vm1491, %v1458, %v1459
        %v1524 = vsel %vm1491, %v1457, %v1458
        %v1525 = vsel %vm1491, %v1456, %v1457
        %v1526 = vsel %vm1491, %v1455, %v1456
        %v1527 = vsel %vm1491, %v1454, %v1455
        %v1528 = vsel %vm1491, %v1453, %v1454
        %v1529 = vsel %vm1491, %v1452, %v1453
        %v1530 = vsel %vm1491, %v1451, %v1452
        %v1531 = vsel %vm1491, %v1450, %v1451
        %v1532 = vsel %vm1491, %v1449, %v1450
        %v1533 = vsel %vm1491, %v1448, %v1449
        %v1534 = vsel %vm1491, %v1447, %v1448
        %v1535 = vsel %vm1491, %v1446, %v1447
        %v1536 = vsel %vm1491, %v1445, %v1446
        %v1537 = vsel %vm1491, %v1444, %v1445
        %v1538 = vsel %vm1491, %v1443, %v1444
        %v1539 = vsel %vm1491, %v1490, %v1443
        %s1540 = scalar_lea.vmem %s195, 16
        %v1541 = vld [vmem:[%s1540] sm:$0xff]
        %v1543 = vsel %vm251, %v1538, 0
        %v1546 = vsel %vm251, %v1537, 0
        %v1549 = vsel %vm251, %v1536, 0
        %v1552 = vsel %vm251, %v1535, 0
        %v1555 = vsel %vm251, %v1534, 0
        %v1558 = vsel %vm251, %v1533, 0
        %v1561 = vsel %vm251, %v1532, 0
        %v1564 = vsel %vm251, %v1531, 0
        %v1567 = vsel %vm251, %v1530, 0
        %v1570 = vsel %vm251, %v1529, 0
        %v1573 = vsel %vm251, %v1528, 0
        %v1576 = vsel %vm251, %v1527, 0
        %v1579 = vsel %vm251, %v1526, 0
        %v1582 = vsel %vm251, %v1525, 0
        %v1585 = vsel %vm251, %v1524, 0
        %v1588 = vsel %vm251, %v1523, 0
        %v1591 = vsel %vm251, %v1522, 0
        %v1594 = vsel %vm251, %v1521, 0
        %v1597 = vsel %vm251, %v1520, 0
        %v1600 = vsel %vm251, %v1519, 0
        %v1603 = vsel %vm251, %v1518, 0
        %v1606 = vsel %vm251, %v1517, 0
        %v1609 = vsel %vm251, %v1516, 0
        %v1612 = vsel %vm251, %v1515, 0
        %v1615 = vsel %vm251, %v1514, 0
        %v1618 = vsel %vm251, %v1513, 0
        %v1621 = vsel %vm251, %v1512, 0
        %v1624 = vsel %vm251, %v1511, 0
        %v1627 = vsel %vm251, %v1510, 0
        %v1630 = vsel %vm251, %v1509, 0
        %v1633 = vsel %vm251, %v1508, 0
        %v1636 = vsel %vm251, %v1507, 0
        %v1639 = vsel %vm251, %v1506, 0
        %v1642 = vsel %vm251, %v1505, 0
        %v1645 = vsel %vm251, %v1504, 0
        %v1648 = vsel %vm251, %v1503, 0
        %v1651 = vsel %vm251, %v1502, 0
        %v1654 = vsel %vm251, %v1501, 0
        %v1657 = vsel %vm251, %v1500, 0
        %v1660 = vsel %vm251, %v1499, 0
        %v1663 = vsel %vm251, %v1498, 0
        %v1666 = vsel %vm251, %v1497, 0
        %v1669 = vsel %vm251, %v1496, 0
        %v1672 = vsel %vm251, %v1495, 0
        %v1675 = vsel %vm251, %v1494, 0
        %v1678 = vsel %vm251, %v1493, 0
        %v1681 = vsel %vm251, %v1492, 0
        %v1684 = vsel %vm251, %v1539, 0
        %1686 = vmatprep.subr.mxu0 0.0
        %1687 = vmatpush1.msra.mxu0 0.0
        %1688 = vmatprep.subr.mxu0 0.0
        %1689 = vmatpush1.msra.mxu0 0.0
        %1690 = vmatprep.subr.mxu0 0.0
        %1691 = vmatpush1.msra.mxu0 0.0
        %1692 = vmatprep.subr.mxu0 0.0
        %1693 = vmatpush1.msra.mxu0 0.0
        %1694 = vmatprep.subr.mxu0 0.0
        %1695 = vmatpush1.msra.mxu0 0.0
        %1696 = vmatprep.subr.mxu0 0.0
        %1697 = vmatpush1.msra.mxu0 0.0
        %1698 = vmatprep.subr.mxu0 0.0
        %1699 = vmatpush1.msra.mxu0 0.0
        %1700 = vmatprep.subr.mxu0 0.0
        %1701 = vmatpush1.msra.mxu0 0.0
        %1702 = vmatprep.subr.mxu0 0.0
        %1703 = vmatpush1.msra.mxu0 0.0
        %1704 = vmatprep.subr.mxu0 0.0
        %1705 = vmatpush1.msra.mxu0 0.0
        %1706 = vmatprep.subr.mxu0 0.0
        %1707 = vmatpush1.msra.mxu0 0.0
        %1708 = vmatprep.subr.mxu0 0.0
        %1709 = vmatpush1.msra.mxu0 0.0
        %1710 = vmatprep.subr.mxu0 0.0
        %1711 = vmatpush1.msra.mxu0 0.0
        %1712 = vmatprep.subr.mxu0 0.0
        %1713 = vmatpush1.msra.mxu0 0.0
        %1714 = vmatprep.subr.mxu0 0.0
        %1715 = vmatpush1.msra.mxu0 0.0
        %1716 = vmatprep.subr.mxu0 0.0
        %1717 = vmatpush1.msra.mxu0 %v1541
        %1718 = vmatprep.subr.mxu0 0.0
        %1719 = vmatpush2.msra.mxu0 0.0
        %1720 = vmatprep.subr.mxu0 0.0
        %1721 = vmatpush2.msra.mxu0 0.0
        %1722 = vmatprep.subr.mxu0 0.0
        %1723 = vmatpush2.msra.mxu0 0.0
        %1724 = vmatprep.subr.mxu0 0.0
        %1725 = vmatpush2.msra.mxu0 0.0
        %1726 = vmatprep.subr.mxu0 0.0
        %1727 = vmatpush2.msra.mxu0 0.0
        %1728 = vmatprep.subr.mxu0 0.0
        %1729 = vmatpush2.msra.mxu0 0.0
        %1730 = vmatprep.subr.mxu0 0.0
        %1731 = vmatpush2.msra.mxu0 0.0
        %1732 = vmatprep.subr.mxu0 0.0
        %1733 = vmatpush2.msra.mxu0 0.0
        %1734 = vmatprep.subr.mxu0 0.0
        %1735 = vmatpush2.msra.mxu0 0.0
        %1736 = vmatprep.subr.mxu0 0.0
        %1737 = vmatpush2.msra.mxu0 0.0
        %1738 = vmatprep.subr.mxu0 0.0
        %1739 = vmatpush2.msra.mxu0 0.0
        %1740 = vmatprep.subr.mxu0 0.0
        %1741 = vmatpush2.msra.mxu0 0.0
        %1742 = vmatprep.subr.mxu0 0.0
        %1743 = vmatpush2.msra.mxu0 0.0
        %1744 = vmatprep.subr.mxu0 0.0
        %1745 = vmatpush2.msra.mxu0 0.0
        %1746 = vmatprep.subr.mxu0 0.0
        %1747 = vmatpush2.msra.mxu0 0.0
        %1748 = vmatprep.subr.mxu0 0.0
        %1749 = vmatpush2.msra.mxu0 0.0
        %1750 = vmatprep.mubr.f32.mxu0 0.0
        %1751 = vmatmul.mubr.f32.gmra.mxu0 %v1543
        %v1752 = vpop.f32.mrf.mxu0
        %v1753 = vadd.f32 0.0, %v1752
        %v1754 = vpop.f32.mrf.mxu0
        %1755 = vmatprep.mubr.f32.mxu0 0.0
        %1756 = vmatmul.mubr.f32.gmra.mxu0 %v1546
        %v1757 = vpop.f32.mrf.mxu0
        %v1758 = vadd.f32 0.0, %v1757
        %v1759 = vpop.f32.mrf.mxu0
        %1760 = vmatprep.mubr.f32.mxu0 0.0
        %1761 = vmatmul.mubr.f32.gmra.mxu0 %v1549
        %v1762 = vpop.f32.mrf.mxu0
        %v1763 = vadd.f32 0.0, %v1762
        %v1764 = vpop.f32.mrf.mxu0
        %1765 = vmatprep.mubr.f32.mxu0 0.0
        %1766 = vmatmul.mubr.f32.gmra.mxu0 %v1552
        %v1767 = vpop.f32.mrf.mxu0
        %v1768 = vadd.f32 0.0, %v1767
        %v1769 = vpop.f32.mrf.mxu0
        %1770 = vmatprep.mubr.f32.mxu0 0.0
        %1771 = vmatmul.mubr.f32.gmra.mxu0 %v1555
        %v1772 = vpop.f32.mrf.mxu0
        %v1773 = vadd.f32 0.0, %v1772
        %v1774 = vpop.f32.mrf.mxu0
        %1775 = vmatprep.mubr.f32.mxu0 0.0
        %1776 = vmatmul.mubr.f32.gmra.mxu0 %v1558
        %v1777 = vpop.f32.mrf.mxu0
        %v1778 = vadd.f32 0.0, %v1777
        %v1779 = vpop.f32.mrf.mxu0
        %1780 = vmatprep.mubr.f32.mxu0 0.0
        %1781 = vmatmul.mubr.f32.gmra.mxu0 %v1561
        %v1782 = vpop.f32.mrf.mxu0
        %v1783 = vadd.f32 0.0, %v1782
        %v1784 = vpop.f32.mrf.mxu0
        %1785 = vmatprep.mubr.f32.mxu0 0.0
        %1786 = vmatmul.mubr.f32.gmra.mxu0 %v1564
        %v1787 = vpop.f32.mrf.mxu0
        %v1788 = vadd.f32 0.0, %v1787
        %v1789 = vpop.f32.mrf.mxu0
        %1790 = vmatprep.mubr.f32.mxu0 0.0
        %1791 = vmatmul.mubr.f32.gmra.mxu0 %v1567
        %v1792 = vpop.f32.mrf.mxu0
        %v1793 = vadd.f32 0.0, %v1792
        %v1794 = vpop.f32.mrf.mxu0
        %1795 = vmatprep.mubr.f32.mxu0 0.0
        %1796 = vmatmul.mubr.f32.gmra.mxu0 %v1570
        %v1797 = vpop.f32.mrf.mxu0
        %v1798 = vadd.f32 0.0, %v1797
        %v1799 = vpop.f32.mrf.mxu0
        %1800 = vmatprep.mubr.f32.mxu0 0.0
        %1801 = vmatmul.mubr.f32.gmra.mxu0 %v1573
        %v1802 = vpop.f32.mrf.mxu0
        %v1803 = vadd.f32 0.0, %v1802
        %v1804 = vpop.f32.mrf.mxu0
        %1805 = vmatprep.mubr.f32.mxu0 0.0
        %1806 = vmatmul.mubr.f32.gmra.mxu0 %v1576
        %v1807 = vpop.f32.mrf.mxu0
        %v1808 = vadd.f32 0.0, %v1807
        %v1809 = vpop.f32.mrf.mxu0
        %1810 = vmatprep.mubr.f32.mxu0 0.0
        %1811 = vmatmul.mubr.f32.gmra.mxu0 %v1579
        %v1812 = vpop.f32.mrf.mxu0
        %v1813 = vadd.f32 0.0, %v1812
        %v1814 = vpop.f32.mrf.mxu0
        %1815 = vmatprep.mubr.f32.mxu0 0.0
        %1816 = vmatmul.mubr.f32.gmra.mxu0 %v1582
        %v1817 = vpop.f32.mrf.mxu0
        %v1818 = vadd.f32 0.0, %v1817
        %v1819 = vpop.f32.mrf.mxu0
        %1820 = vmatprep.mubr.f32.mxu0 0.0
        %1821 = vmatmul.mubr.f32.gmra.mxu0 %v1585
        %v1822 = vpop.f32.mrf.mxu0
        %v1823 = vadd.f32 0.0, %v1822
        %v1824 = vpop.f32.mrf.mxu0
        %1825 = vmatprep.mubr.f32.mxu0 0.0
        %1826 = vmatmul.mubr.f32.gmra.mxu0 %v1588
        %v1827 = vpop.f32.mrf.mxu0
        %v1828 = vadd.f32 0.0, %v1827
        %v1829 = vpop.f32.mrf.mxu0
        %1830 = vmatprep.mubr.f32.mxu0 0.0
        %1831 = vmatmul.mubr.f32.gmra.mxu0 %v1591
        %v1832 = vpop.f32.mrf.mxu0
        %v1833 = vadd.f32 0.0, %v1832
        %v1834 = vpop.f32.mrf.mxu0
        %1835 = vmatprep.mubr.f32.mxu0 0.0
        %1836 = vmatmul.mubr.f32.gmra.mxu0 %v1594
        %v1837 = vpop.f32.mrf.mxu0
        %v1838 = vadd.f32 0.0, %v1837
        %v1839 = vpop.f32.mrf.mxu0
        %1840 = vmatprep.mubr.f32.mxu0 0.0
        %1841 = vmatmul.mubr.f32.gmra.mxu0 %v1597
        %v1842 = vpop.f32.mrf.mxu0
        %v1843 = vadd.f32 0.0, %v1842
        %v1844 = vpop.f32.mrf.mxu0
        %1845 = vmatprep.mubr.f32.mxu0 0.0
        %1846 = vmatmul.mubr.f32.gmra.mxu0 %v1600
        %v1847 = vpop.f32.mrf.mxu0
        %v1848 = vadd.f32 0.0, %v1847
        %v1849 = vpop.f32.mrf.mxu0
        %1850 = vmatprep.mubr.f32.mxu0 0.0
        %1851 = vmatmul.mubr.f32.gmra.mxu0 %v1603
        %v1852 = vpop.f32.mrf.mxu0
        %v1853 = vadd.f32 0.0, %v1852
        %v1854 = vpop.f32.mrf.mxu0
        %1855 = vmatprep.mubr.f32.mxu0 0.0
        %1856 = vmatmul.mubr.f32.gmra.mxu0 %v1606
        %v1857 = vpop.f32.mrf.mxu0
        %v1858 = vadd.f32 0.0, %v1857
        %v1859 = vpop.f32.mrf.mxu0
        %1860 = vmatprep.mubr.f32.mxu0 0.0
        %1861 = vmatmul.mubr.f32.gmra.mxu0 %v1609
        %v1862 = vpop.f32.mrf.mxu0
        %v1863 = vadd.f32 0.0, %v1862
        %v1864 = vpop.f32.mrf.mxu0
        %1865 = vmatprep.mubr.f32.mxu0 0.0
        %1866 = vmatmul.mubr.f32.gmra.mxu0 %v1612
        %v1867 = vpop.f32.mrf.mxu0
        %v1868 = vadd.f32 0.0, %v1867
        %v1869 = vpop.f32.mrf.mxu0
        %1870 = vmatprep.mubr.f32.mxu0 0.0
        %1871 = vmatmul.mubr.f32.gmra.mxu0 %v1615
        %v1872 = vpop.f32.mrf.mxu0
        %v1873 = vadd.f32 0.0, %v1872
        %v1874 = vpop.f32.mrf.mxu0
        %1875 = vmatprep.mubr.f32.mxu0 0.0
        %1876 = vmatmul.mubr.f32.gmra.mxu0 %v1618
        %v1877 = vpop.f32.mrf.mxu0
        %v1878 = vadd.f32 0.0, %v1877
        %v1879 = vpop.f32.mrf.mxu0
        %1880 = vmatprep.mubr.f32.mxu0 0.0
        %1881 = vmatmul.mubr.f32.gmra.mxu0 %v1621
        %v1882 = vpop.f32.mrf.mxu0
        %v1883 = vadd.f32 0.0, %v1882
        %v1884 = vpop.f32.mrf.mxu0
        %1885 = vmatprep.mubr.f32.mxu0 0.0
        %1886 = vmatmul.mubr.f32.gmra.mxu0 %v1624
        %v1887 = vpop.f32.mrf.mxu0
        %v1888 = vadd.f32 0.0, %v1887
        %v1889 = vpop.f32.mrf.mxu0
        %1890 = vmatprep.mubr.f32.mxu0 0.0
        %1891 = vmatmul.mubr.f32.gmra.mxu0 %v1627
        %v1892 = vpop.f32.mrf.mxu0
        %v1893 = vadd.f32 0.0, %v1892
        %v1894 = vpop.f32.mrf.mxu0
        %1895 = vmatprep.mubr.f32.mxu0 0.0
        %1896 = vmatmul.mubr.f32.gmra.mxu0 %v1630
        %v1897 = vpop.f32.mrf.mxu0
        %v1898 = vadd.f32 0.0, %v1897
        %v1899 = vpop.f32.mrf.mxu0
        %1900 = vmatprep.mubr.f32.mxu0 0.0
        %1901 = vmatmul.mubr.f32.gmra.mxu0 %v1633
        %v1902 = vpop.f32.mrf.mxu0
        %v1903 = vadd.f32 0.0, %v1902
        %v1904 = vpop.f32.mrf.mxu0
        %1905 = vmatprep.mubr.f32.mxu0 0.0
        %1906 = vmatmul.mubr.f32.gmra.mxu0 %v1636
        %v1907 = vpop.f32.mrf.mxu0
        %v1908 = vadd.f32 0.0, %v1907
        %v1909 = vpop.f32.mrf.mxu0
        %1910 = vmatprep.mubr.f32.mxu0 0.0
        %1911 = vmatmul.mubr.f32.gmra.mxu0 %v1639
        %v1912 = vpop.f32.mrf.mxu0
        %v1913 = vadd.f32 0.0, %v1912
        %v1914 = vpop.f32.mrf.mxu0
        %1915 = vmatprep.mubr.f32.mxu0 0.0
        %1916 = vmatmul.mubr.f32.gmra.mxu0 %v1642
        %v1917 = vpop.f32.mrf.mxu0
        %v1918 = vadd.f32 0.0, %v1917
        %v1919 = vpop.f32.mrf.mxu0
        %1920 = vmatprep.mubr.f32.mxu0 0.0
        %1921 = vmatmul.mubr.f32.gmra.mxu0 %v1645
        %v1922 = vpop.f32.mrf.mxu0
        %v1923 = vadd.f32 0.0, %v1922
        %v1924 = vpop.f32.mrf.mxu0
        %1925 = vmatprep.mubr.f32.mxu0 0.0
        %1926 = vmatmul.mubr.f32.gmra.mxu0 %v1648
        %v1927 = vpop.f32.mrf.mxu0
        %v1928 = vadd.f32 0.0, %v1927
        %v1929 = vpop.f32.mrf.mxu0
        %1930 = vmatprep.mubr.f32.mxu0 0.0
        %1931 = vmatmul.mubr.f32.gmra.mxu0 %v1651
        %v1932 = vpop.f32.mrf.mxu0
        %v1933 = vadd.f32 0.0, %v1932
        %v1934 = vpop.f32.mrf.mxu0
        %1935 = vmatprep.mubr.f32.mxu0 0.0
        %1936 = vmatmul.mubr.f32.gmra.mxu0 %v1654
        %v1937 = vpop.f32.mrf.mxu0
        %v1938 = vadd.f32 0.0, %v1937
        %v1939 = vpop.f32.mrf.mxu0
        %1940 = vmatprep.mubr.f32.mxu0 0.0
        %1941 = vmatmul.mubr.f32.gmra.mxu0 %v1657
        %v1942 = vpop.f32.mrf.mxu0
        %v1943 = vadd.f32 0.0, %v1942
        %v1944 = vpop.f32.mrf.mxu0
        %1945 = vmatprep.mubr.f32.mxu0 0.0
        %1946 = vmatmul.mubr.f32.gmra.mxu0 %v1660
        %v1947 = vpop.f32.mrf.mxu0
        %v1948 = vadd.f32 0.0, %v1947
        %v1949 = vpop.f32.mrf.mxu0
        %1950 = vmatprep.mubr.f32.mxu0 0.0
        %1951 = vmatmul.mubr.f32.gmra.mxu0 %v1663
        %v1952 = vpop.f32.mrf.mxu0
        %v1953 = vadd.f32 0.0, %v1952
        %v1954 = vpop.f32.mrf.mxu0
        %1955 = vmatprep.mubr.f32.mxu0 0.0
        %1956 = vmatmul.mubr.f32.gmra.mxu0 %v1666
        %v1957 = vpop.f32.mrf.mxu0
        %v1958 = vadd.f32 0.0, %v1957
        %v1959 = vpop.f32.mrf.mxu0
        %1960 = vmatprep.mubr.f32.mxu0 0.0
        %1961 = vmatmul.mubr.f32.gmra.mxu0 %v1669
        %v1962 = vpop.f32.mrf.mxu0
        %v1963 = vadd.f32 0.0, %v1962
        %v1964 = vpop.f32.mrf.mxu0
        %1965 = vmatprep.mubr.f32.mxu0 0.0
        %1966 = vmatmul.mubr.f32.gmra.mxu0 %v1672
        %v1967 = vpop.f32.mrf.mxu0
        %v1968 = vadd.f32 0.0, %v1967
        %v1969 = vpop.f32.mrf.mxu0
        %1970 = vmatprep.mubr.f32.mxu0 0.0
        %1971 = vmatmul.mubr.f32.gmra.mxu0 %v1675
        %v1972 = vpop.f32.mrf.mxu0
        %v1973 = vadd.f32 0.0, %v1972
        %v1974 = vpop.f32.mrf.mxu0
        %1975 = vmatprep.mubr.f32.mxu0 0.0
        %1976 = vmatmul.mubr.f32.gmra.mxu0 %v1678
        %v1977 = vpop.f32.mrf.mxu0
        %v1978 = vadd.f32 0.0, %v1977
        %v1979 = vpop.f32.mrf.mxu0
        %1980 = vmatprep.mubr.f32.mxu0 0.0
        %1981 = vmatmul.mubr.f32.gmra.mxu0 %v1681
        %v1982 = vpop.f32.mrf.mxu0
        %v1983 = vadd.f32 0.0, %v1982
        %v1984 = vpop.f32.mrf.mxu0
        %1985 = vmatprep.mubr.f32.mxu0 0.0
        %1986 = vmatmul.mubr.f32.gmra.mxu0 %v1684
        %v1987 = vpop.f32.mrf.mxu0
        %v1988 = vadd.f32 0.0, %v1987
        %v1989 = vpop.f32.mrf.mxu0
        %1990 = vdwg.mxu0
        %v1991 = vld [vmem:[#allocation2] sm:$0xff]
        %v1992 = vld [vmem:[#allocation2 + $0x8] sm:$0xff]
        %v1993 = vld [vmem:[#allocation2 + $0x10] sm:$0xff]
        %v1994 = vld [vmem:[#allocation2 + $0x18] sm:$0xff]
        %v1995 = vld [vmem:[#allocation2 + $0x20] sm:$0xff]
        %v1996 = vld [vmem:[#allocation2 + $0x28] sm:$0xff]
        %v1997 = vld [vmem:[#allocation2 + $0x30] sm:$0xff]
        %v1998 = vld [vmem:[#allocation2 + $0x38] sm:$0xff]
        %v1999 = vld [vmem:[#allocation2 + $0x40] sm:$0xff]
        %v2000 = vld [vmem:[#allocation2 + $0x48] sm:$0xff]
        %v2001 = vld [vmem:[#allocation2 + $0x50] sm:$0xff]
        %v2002 = vld [vmem:[#allocation2 + $0x58] sm:$0xff]
        %v2003 = vld [vmem:[#allocation2 + $0x60] sm:$0xff]
        %v2004 = vld [vmem:[#allocation2 + $0x68] sm:$0xff]
        %v2005 = vld [vmem:[#allocation2 + $0x70] sm:$0xff]
        %v2006 = vld [vmem:[#allocation2 + $0x78] sm:$0xff]
        %v2007 = vld [vmem:[#allocation2 + $0x80] sm:$0xff]
        %v2008 = vld [vmem:[#allocation2 + $0x88] sm:$0xff]
        %v2009 = vld [vmem:[#allocation2 + $0x90] sm:$0xff]
        %v2010 = vld [vmem:[#allocation2 + $0x98] sm:$0xff]
        %v2011 = vld [vmem:[#allocation2 + $0xa0] sm:$0xff]
        %v2012 = vld [vmem:[#allocation2 + $0xa8] sm:$0xff]
        %v2013 = vld [vmem:[#allocation2 + $0xb0] sm:$0xff]
        %v2014 = vld [vmem:[#allocation2 + $0xb8] sm:$0xff]
        %v2015 = vld [vmem:[#allocation2 + $0xc0] sm:$0xff]
        %v2016 = vld [vmem:[#allocation2 + $0xc8] sm:$0xff]
        %v2017 = vld [vmem:[#allocation2 + $0xd0] sm:$0xff]
        %v2018 = vld [vmem:[#allocation2 + $0xd8] sm:$0xff]
        %v2019 = vld [vmem:[#allocation2 + $0xe0] sm:$0xff]
        %v2020 = vld [vmem:[#allocation2 + $0xe8] sm:$0xff]
        %v2021 = vld [vmem:[#allocation2 + $0xf0] sm:$0xff]
        %v2022 = vld [vmem:[#allocation2 + $0xf8] sm:$0xff]
        %v2023 = vld [vmem:[#allocation2 + $0x100] sm:$0xff]
        %v2024 = vld [vmem:[#allocation2 + $0x108] sm:$0xff]
        %v2025 = vld [vmem:[#allocation2 + $0x110] sm:$0xff]
        %v2026 = vld [vmem:[#allocation2 + $0x118] sm:$0xff]
        %v2027 = vld [vmem:[#allocation2 + $0x120] sm:$0xff]
        %v2028 = vld [vmem:[#allocation2 + $0x128] sm:$0xff]
        %v2029 = vld [vmem:[#allocation2 + $0x130] sm:$0xff]
        %v2030 = vld [vmem:[#allocation2 + $0x138] sm:$0xff]
        %v2031 = vld [vmem:[#allocation2 + $0x140] sm:$0xff]
        %v2032 = vld [vmem:[#allocation2 + $0x148] sm:$0xff]
        %v2033 = vld [vmem:[#allocation2 + $0x150] sm:$0xff]
        %v2034 = vld [vmem:[#allocation2 + $0x158] sm:$0xff]
        %v2035 = vld [vmem:[#allocation2 + $0x160] sm:$0xff]
        %v2036 = vld [vmem:[#allocation2 + $0x168] sm:$0xff]
        %v2037 = vld [vmem:[#allocation2 + $0x170] sm:$0xff]
        %v2038 = vld [vmem:[#allocation2 + $0x178] sm:$0xff]
        %v2039 = vadd.f32 %v1991, %v1753
        %v2040 = vadd.f32 %v1992, %v1758
        %v2041 = vadd.f32 %v1993, %v1763
        %v2042 = vadd.f32 %v1994, %v1768
        %v2043 = vadd.f32 %v1995, %v1773
        %v2044 = vadd.f32 %v1996, %v1778
        %v2045 = vadd.f32 %v1997, %v1783
        %v2046 = vadd.f32 %v1998, %v1788
        %v2047 = vadd.f32 %v1999, %v1793
        %v2048 = vadd.f32 %v2000, %v1798
        %v2049 = vadd.f32 %v2001, %v1803
        %v2050 = vadd.f32 %v2002, %v1808
        %v2051 = vadd.f32 %v2003, %v1813
        %v2052 = vadd.f32 %v2004, %v1818
        %v2053 = vadd.f32 %v2005, %v1823
        %v2054 = vadd.f32 %v2006, %v1828
        %v2055 = vadd.f32 %v2007, %v1833
        %v2056 = vadd.f32 %v2008, %v1838
        %v2057 = vadd.f32 %v2009, %v1843
        %v2058 = vadd.f32 %v2010, %v1848
        %v2059 = vadd.f32 %v2011, %v1853
        %v2060 = vadd.f32 %v2012, %v1858
        %v2061 = vadd.f32 %v2013, %v1863
        %v2062 = vadd.f32 %v2014, %v1868
        %v2063 = vadd.f32 %v2015, %v1873
        %v2064 = vadd.f32 %v2016, %v1878
        %v2065 = vadd.f32 %v2017, %v1883
        %v2066 = vadd.f32 %v2018, %v1888
        %v2067 = vadd.f32 %v2019, %v1893
        %v2068 = vadd.f32 %v2020, %v1898
        %v2069 = vadd.f32 %v2021, %v1903
        %v2070 = vadd.f32 %v2022, %v1908
        %v2071 = vadd.f32 %v2023, %v1913
        %v2072 = vadd.f32 %v2024, %v1918
        %v2073 = vadd.f32 %v2025, %v1923
        %v2074 = vadd.f32 %v2026, %v1928
        %v2075 = vadd.f32 %v2027, %v1933
        %v2076 = vadd.f32 %v2028, %v1938
        %v2077 = vadd.f32 %v2029, %v1943
        %v2078 = vadd.f32 %v2030, %v1948
        %v2079 = vadd.f32 %v2031, %v1953
        %v2080 = vadd.f32 %v2032, %v1958
        %v2081 = vadd.f32 %v2033, %v1963
        %v2082 = vadd.f32 %v2034, %v1968
        %v2083 = vadd.f32 %v2035, %v1973
        %v2084 = vadd.f32 %v2036, %v1978
        %v2085 = vadd.f32 %v2037, %v1983
        %v2086 = vadd.f32 %v2038, %v1988
        %2087 = vst [vmem:[#allocation2] sm:$0xff] %v2039
        %2088 = vst [vmem:[#allocation2 + $0x8] sm:$0xff] %v2040
        %2089 = vst [vmem:[#allocation2 + $0x10] sm:$0xff] %v2041
        %2090 = vst [vmem:[#allocation2 + $0x18] sm:$0xff] %v2042
        %2091 = vst [vmem:[#allocation2 + $0x20] sm:$0xff] %v2043
        %2092 = vst [vmem:[#allocation2 + $0x28] sm:$0xff] %v2044
        %2093 = vst [vmem:[#allocation2 + $0x30] sm:$0xff] %v2045
        %2094 = vst [vmem:[#allocation2 + $0x38] sm:$0xff] %v2046
        %2095 = vst [vmem:[#allocation2 + $0x40] sm:$0xff] %v2047
        %2096 = vst [vmem:[#allocation2 + $0x48] sm:$0xff] %v2048
        %2097 = vst [vmem:[#allocation2 + $0x50] sm:$0xff] %v2049
        %2098 = vst [vmem:[#allocation2 + $0x58] sm:$0xff] %v2050
        %2099 = vst [vmem:[#allocation2 + $0x60] sm:$0xff] %v2051
        %2100 = vst [vmem:[#allocation2 + $0x68] sm:$0xff] %v2052
        %2101 = vst [vmem:[#allocation2 + $0x70] sm:$0xff] %v2053
        %2102 = vst [vmem:[#allocation2 + $0x78] sm:$0xff] %v2054
        %2103 = vst [vmem:[#allocation2 + $0x80] sm:$0xff] %v2055
        %2104 = vst [vmem:[#allocation2 + $0x88] sm:$0xff] %v2056
        %2105 = vst [vmem:[#allocation2 + $0x90] sm:$0xff] %v2057
        %2106 = vst [vmem:[#allocation2 + $0x98] sm:$0xff] %v2058
        %2107 = vst [vmem:[#allocation2 + $0xa0] sm:$0xff] %v2059
        %2108 = vst [vmem:[#allocation2 + $0xa8] sm:$0xff] %v2060
        %2109 = vst [vmem:[#allocation2 + $0xb0] sm:$0xff] %v2061
        %2110 = vst [vmem:[#allocation2 + $0xb8] sm:$0xff] %v2062
        %2111 = vst [vmem:[#allocation2 + $0xc0] sm:$0xff] %v2063
        %2112 = vst [vmem:[#allocation2 + $0xc8] sm:$0xff] %v2064
        %2113 = vst [vmem:[#allocation2 + $0xd0] sm:$0xff] %v2065
        %2114 = vst [vmem:[#allocation2 + $0xd8] sm:$0xff] %v2066
        %2115 = vst [vmem:[#allocation2 + $0xe0] sm:$0xff] %v2067
        %2116 = vst [vmem:[#allocation2 + $0xe8] sm:$0xff] %v2068
        %2117 = vst [vmem:[#allocation2 + $0xf0] sm:$0xff] %v2069
        %2118 = vst [vmem:[#allocation2 + $0xf8] sm:$0xff] %v2070
        %2119 = vst [vmem:[#allocation2 + $0x100] sm:$0xff] %v2071
        %2120 = vst [vmem:[#allocation2 + $0x108] sm:$0xff] %v2072
        %2121 = vst [vmem:[#allocation2 + $0x110] sm:$0xff] %v2073
        %2122 = vst [vmem:[#allocation2 + $0x118] sm:$0xff] %v2074
        %2123 = vst [vmem:[#allocation2 + $0x120] sm:$0xff] %v2075
        %2124 = vst [vmem:[#allocation2 + $0x128] sm:$0xff] %v2076
        %2125 = vst [vmem:[#allocation2 + $0x130] sm:$0xff] %v2077
        %2126 = vst [vmem:[#allocation2 + $0x138] sm:$0xff] %v2078
        %2127 = vst [vmem:[#allocation2 + $0x140] sm:$0xff] %v2079
        %2128 = vst [vmem:[#allocation2 + $0x148] sm:$0xff] %v2080
        %2129 = vst [vmem:[#allocation2 + $0x150] sm:$0xff] %v2081
        %2130 = vst [vmem:[#allocation2 + $0x158] sm:$0xff] %v2082
        %2131 = vst [vmem:[#allocation2 + $0x160] sm:$0xff] %v2083
        %2132 = vst [vmem:[#allocation2 + $0x168] sm:$0xff] %v2084
        %2133 = vst [vmem:[#allocation2 + $0x170] sm:$0xff] %v2085
        %2134 = vst [vmem:[#allocation2 + $0x178] sm:$0xff] %v2086
        %s2135 = scalar_lea.vmem %s195, 24
        %v2136 = vld [vmem:[%s2135] sm:$0xff]
        %v2138 = vsel %vm251, %v244, 0
        %v2141 = vsel %vm251, %v245, 0
        %v2144 = vsel %vm251, %v246, 0
        %2146 = vmatprep.subr.mxu0 0.0
        %2147 = vmatpush1.msra.mxu0 0.0
        %2148 = vmatprep.subr.mxu0 0.0
        %2149 = vmatpush1.msra.mxu0 0.0
        %2150 = vmatprep.subr.mxu0 0.0
        %2151 = vmatpush1.msra.mxu0 0.0
        %2152 = vmatprep.subr.mxu0 0.0
        %2153 = vmatpush1.msra.mxu0 0.0
        %2154 = vmatprep.subr.mxu0 0.0
        %2155 = vmatpush1.msra.mxu0 0.0
        %2156 = vmatprep.subr.mxu0 0.0
        %2157 = vmatpush1.msra.mxu0 0.0
        %2158 = vmatprep.subr.mxu0 0.0
        %2159 = vmatpush1.msra.mxu0 0.0
        %2160 = vmatprep.subr.mxu0 0.0
        %2161 = vmatpush1.msra.mxu0 0.0
        %2162 = vmatprep.subr.mxu0 0.0
        %2163 = vmatpush1.msra.mxu0 0.0
        %2164 = vmatprep.subr.mxu0 0.0
        %2165 = vmatpush1.msra.mxu0 0.0
        %2166 = vmatprep.subr.mxu0 0.0
        %2167 = vmatpush1.msra.mxu0 0.0
        %2168 = vmatprep.subr.mxu0 0.0
        %2169 = vmatpush1.msra.mxu0 0.0
        %2170 = vmatprep.subr.mxu0 0.0
        %2171 = vmatpush1.msra.mxu0 0.0
        %2172 = vmatprep.subr.mxu0 0.0
        %2173 = vmatpush1.msra.mxu0 0.0
        %2174 = vmatprep.subr.mxu0 0.0
        %2175 = vmatpush1.msra.mxu0 0.0
        %2176 = vmatprep.subr.mxu0 0.0
        %2177 = vmatpush1.msra.mxu0 %v2136
        %2178 = vmatprep.subr.mxu0 0.0
        %2179 = vmatpush2.msra.mxu0 0.0
        %2180 = vmatprep.subr.mxu0 0.0
        %2181 = vmatpush2.msra.mxu0 0.0
        %2182 = vmatprep.subr.mxu0 0.0
        %2183 = vmatpush2.msra.mxu0 0.0
        %2184 = vmatprep.subr.mxu0 0.0
        %2185 = vmatpush2.msra.mxu0 0.0
        %2186 = vmatprep.subr.mxu0 0.0
        %2187 = vmatpush2.msra.mxu0 0.0
        %2188 = vmatprep.subr.mxu0 0.0
        %2189 = vmatpush2.msra.mxu0 0.0
        %2190 = vmatprep.subr.mxu0 0.0
        %2191 = vmatpush2.msra.mxu0 0.0
        %2192 = vmatprep.subr.mxu0 0.0
        %2193 = vmatpush2.msra.mxu0 0.0
        %2194 = vmatprep.subr.mxu0 0.0
        %2195 = vmatpush2.msra.mxu0 0.0
        %2196 = vmatprep.subr.mxu0 0.0
        %2197 = vmatpush2.msra.mxu0 0.0
        %2198 = vmatprep.subr.mxu0 0.0
        %2199 = vmatpush2.msra.mxu0 0.0
        %2200 = vmatprep.subr.mxu0 0.0
        %2201 = vmatpush2.msra.mxu0 0.0
        %2202 = vmatprep.subr.mxu0 0.0
        %2203 = vmatpush2.msra.mxu0 0.0
        %2204 = vmatprep.subr.mxu0 0.0
        %2205 = vmatpush2.msra.mxu0 0.0
        %2206 = vmatprep.subr.mxu0 0.0
        %2207 = vmatpush2.msra.mxu0 0.0
        %2208 = vmatprep.subr.mxu0 0.0
        %2209 = vmatpush2.msra.mxu0 0.0
        %2210 = vmatprep.mubr.f32.mxu0 0.0
        %2211 = vmatmul.mubr.f32.gmra.mxu0 %v262
        %v2212 = vpop.f32.mrf.mxu0
        %v2213 = vadd.f32 0.0, %v2212
        %v2214 = vpop.f32.mrf.mxu0
        %2215 = vmatprep.mubr.f32.mxu0 0.0
        %2216 = vmatmul.mubr.f32.gmra.mxu0 %v265
        %v2217 = vpop.f32.mrf.mxu0
        %v2218 = vadd.f32 0.0, %v2217
        %v2219 = vpop.f32.mrf.mxu0
        %2220 = vmatprep.mubr.f32.mxu0 0.0
        %2221 = vmatmul.mubr.f32.gmra.mxu0 %v268
        %v2222 = vpop.f32.mrf.mxu0
        %v2223 = vadd.f32 0.0, %v2222
        %v2224 = vpop.f32.mrf.mxu0
        %2225 = vmatprep.mubr.f32.mxu0 0.0
        %2226 = vmatmul.mubr.f32.gmra.mxu0 %v271
        %v2227 = vpop.f32.mrf.mxu0
        %v2228 = vadd.f32 0.0, %v2227
        %v2229 = vpop.f32.mrf.mxu0
        %2230 = vmatprep.mubr.f32.mxu0 0.0
        %2231 = vmatmul.mubr.f32.gmra.mxu0 %v274
        %v2232 = vpop.f32.mrf.mxu0
        %v2233 = vadd.f32 0.0, %v2232
        %v2234 = vpop.f32.mrf.mxu0
        %2235 = vmatprep.mubr.f32.mxu0 0.0
        %2236 = vmatmul.mubr.f32.gmra.mxu0 %v277
        %v2237 = vpop.f32.mrf.mxu0
        %v2238 = vadd.f32 0.0, %v2237
        %v2239 = vpop.f32.mrf.mxu0
        %2240 = vmatprep.mubr.f32.mxu0 0.0
        %2241 = vmatmul.mubr.f32.gmra.mxu0 %v280
        %v2242 = vpop.f32.mrf.mxu0
        %v2243 = vadd.f32 0.0, %v2242
        %v2244 = vpop.f32.mrf.mxu0
        %2245 = vmatprep.mubr.f32.mxu0 0.0
        %2246 = vmatmul.mubr.f32.gmra.mxu0 %v283
        %v2247 = vpop.f32.mrf.mxu0
        %v2248 = vadd.f32 0.0, %v2247
        %v2249 = vpop.f32.mrf.mxu0
        %2250 = vmatprep.mubr.f32.mxu0 0.0
        %2251 = vmatmul.mubr.f32.gmra.mxu0 %v286
        %v2252 = vpop.f32.mrf.mxu0
        %v2253 = vadd.f32 0.0, %v2252
        %v2254 = vpop.f32.mrf.mxu0
        %2255 = vmatprep.mubr.f32.mxu0 0.0
        %2256 = vmatmul.mubr.f32.gmra.mxu0 %v289
        %v2257 = vpop.f32.mrf.mxu0
        %v2258 = vadd.f32 0.0, %v2257
        %v2259 = vpop.f32.mrf.mxu0
        %2260 = vmatprep.mubr.f32.mxu0 0.0
        %2261 = vmatmul.mubr.f32.gmra.mxu0 %v292
        %v2262 = vpop.f32.mrf.mxu0
        %v2263 = vadd.f32 0.0, %v2262
        %v2264 = vpop.f32.mrf.mxu0
        %2265 = vmatprep.mubr.f32.mxu0 0.0
        %2266 = vmatmul.mubr.f32.gmra.mxu0 %v295
        %v2267 = vpop.f32.mrf.mxu0
        %v2268 = vadd.f32 0.0, %v2267
        %v2269 = vpop.f32.mrf.mxu0
        %2270 = vmatprep.mubr.f32.mxu0 0.0
        %2271 = vmatmul.mubr.f32.gmra.mxu0 %v298
        %v2272 = vpop.f32.mrf.mxu0
        %v2273 = vadd.f32 0.0, %v2272
        %v2274 = vpop.f32.mrf.mxu0
        %2275 = vmatprep.mubr.f32.mxu0 0.0
        %2276 = vmatmul.mubr.f32.gmra.mxu0 %v301
        %v2277 = vpop.f32.mrf.mxu0
        %v2278 = vadd.f32 0.0, %v2277
        %v2279 = vpop.f32.mrf.mxu0
        %2280 = vmatprep.mubr.f32.mxu0 0.0
        %2281 = vmatmul.mubr.f32.gmra.mxu0 %v304
        %v2282 = vpop.f32.mrf.mxu0
        %v2283 = vadd.f32 0.0, %v2282
        %v2284 = vpop.f32.mrf.mxu0
        %2285 = vmatprep.mubr.f32.mxu0 0.0
        %2286 = vmatmul.mubr.f32.gmra.mxu0 %v307
        %v2287 = vpop.f32.mrf.mxu0
        %v2288 = vadd.f32 0.0, %v2287
        %v2289 = vpop.f32.mrf.mxu0
        %2290 = vmatprep.mubr.f32.mxu0 0.0
        %2291 = vmatmul.mubr.f32.gmra.mxu0 %v310
        %v2292 = vpop.f32.mrf.mxu0
        %v2293 = vadd.f32 0.0, %v2292
        %v2294 = vpop.f32.mrf.mxu0
        %2295 = vmatprep.mubr.f32.mxu0 0.0
        %2296 = vmatmul.mubr.f32.gmra.mxu0 %v313
        %v2297 = vpop.f32.mrf.mxu0
        %v2298 = vadd.f32 0.0, %v2297
        %v2299 = vpop.f32.mrf.mxu0
        %2300 = vmatprep.mubr.f32.mxu0 0.0
        %2301 = vmatmul.mubr.f32.gmra.mxu0 %v316
        %v2302 = vpop.f32.mrf.mxu0
        %v2303 = vadd.f32 0.0, %v2302
        %v2304 = vpop.f32.mrf.mxu0
        %2305 = vmatprep.mubr.f32.mxu0 0.0
        %2306 = vmatmul.mubr.f32.gmra.mxu0 %v319
        %v2307 = vpop.f32.mrf.mxu0
        %v2308 = vadd.f32 0.0, %v2307
        %v2309 = vpop.f32.mrf.mxu0
        %2310 = vmatprep.mubr.f32.mxu0 0.0
        %2311 = vmatmul.mubr.f32.gmra.mxu0 %v322
        %v2312 = vpop.f32.mrf.mxu0
        %v2313 = vadd.f32 0.0, %v2312
        %v2314 = vpop.f32.mrf.mxu0
        %2315 = vmatprep.mubr.f32.mxu0 0.0
        %2316 = vmatmul.mubr.f32.gmra.mxu0 %v325
        %v2317 = vpop.f32.mrf.mxu0
        %v2318 = vadd.f32 0.0, %v2317
        %v2319 = vpop.f32.mrf.mxu0
        %2320 = vmatprep.mubr.f32.mxu0 0.0
        %2321 = vmatmul.mubr.f32.gmra.mxu0 %v328
        %v2322 = vpop.f32.mrf.mxu0
        %v2323 = vadd.f32 0.0, %v2322
        %v2324 = vpop.f32.mrf.mxu0
        %2325 = vmatprep.mubr.f32.mxu0 0.0
        %2326 = vmatmul.mubr.f32.gmra.mxu0 %v331
        %v2327 = vpop.f32.mrf.mxu0
        %v2328 = vadd.f32 0.0, %v2327
        %v2329 = vpop.f32.mrf.mxu0
        %2330 = vmatprep.mubr.f32.mxu0 0.0
        %2331 = vmatmul.mubr.f32.gmra.mxu0 %v334
        %v2332 = vpop.f32.mrf.mxu0
        %v2333 = vadd.f32 0.0, %v2332
        %v2334 = vpop.f32.mrf.mxu0
        %2335 = vmatprep.mubr.f32.mxu0 0.0
        %2336 = vmatmul.mubr.f32.gmra.mxu0 %v337
        %v2337 = vpop.f32.mrf.mxu0
        %v2338 = vadd.f32 0.0, %v2337
        %v2339 = vpop.f32.mrf.mxu0
        %2340 = vmatprep.mubr.f32.mxu0 0.0
        %2341 = vmatmul.mubr.f32.gmra.mxu0 %v340
        %v2342 = vpop.f32.mrf.mxu0
        %v2343 = vadd.f32 0.0, %v2342
        %v2344 = vpop.f32.mrf.mxu0
        %2345 = vmatprep.mubr.f32.mxu0 0.0
        %2346 = vmatmul.mubr.f32.gmra.mxu0 %v343
        %v2347 = vpop.f32.mrf.mxu0
        %v2348 = vadd.f32 0.0, %v2347
        %v2349 = vpop.f32.mrf.mxu0
        %2350 = vmatprep.mubr.f32.mxu0 0.0
        %2351 = vmatmul.mubr.f32.gmra.mxu0 %v346
        %v2352 = vpop.f32.mrf.mxu0
        %v2353 = vadd.f32 0.0, %v2352
        %v2354 = vpop.f32.mrf.mxu0
        %2355 = vmatprep.mubr.f32.mxu0 0.0
        %2356 = vmatmul.mubr.f32.gmra.mxu0 %v349
        %v2357 = vpop.f32.mrf.mxu0
        %v2358 = vadd.f32 0.0, %v2357
        %v2359 = vpop.f32.mrf.mxu0
        %2360 = vmatprep.mubr.f32.mxu0 0.0
        %2361 = vmatmul.mubr.f32.gmra.mxu0 %v352
        %v2362 = vpop.f32.mrf.mxu0
        %v2363 = vadd.f32 0.0, %v2362
        %v2364 = vpop.f32.mrf.mxu0
        %2365 = vmatprep.mubr.f32.mxu0 0.0
        %2366 = vmatmul.mubr.f32.gmra.mxu0 %v355
        %v2367 = vpop.f32.mrf.mxu0
        %v2368 = vadd.f32 0.0, %v2367
        %v2369 = vpop.f32.mrf.mxu0
        %2370 = vmatprep.mubr.f32.mxu0 0.0
        %2371 = vmatmul.mubr.f32.gmra.mxu0 %v358
        %v2372 = vpop.f32.mrf.mxu0
        %v2373 = vadd.f32 0.0, %v2372
        %v2374 = vpop.f32.mrf.mxu0
        %2375 = vmatprep.mubr.f32.mxu0 0.0
        %2376 = vmatmul.mubr.f32.gmra.mxu0 %v361
        %v2377 = vpop.f32.mrf.mxu0
        %v2378 = vadd.f32 0.0, %v2377
        %v2379 = vpop.f32.mrf.mxu0
        %2380 = vmatprep.mubr.f32.mxu0 0.0
        %2381 = vmatmul.mubr.f32.gmra.mxu0 %v364
        %v2382 = vpop.f32.mrf.mxu0
        %v2383 = vadd.f32 0.0, %v2382
        %v2384 = vpop.f32.mrf.mxu0
        %2385 = vmatprep.mubr.f32.mxu0 0.0
        %2386 = vmatmul.mubr.f32.gmra.mxu0 %v367
        %v2387 = vpop.f32.mrf.mxu0
        %v2388 = vadd.f32 0.0, %v2387
        %v2389 = vpop.f32.mrf.mxu0
        %2390 = vmatprep.mubr.f32.mxu0 0.0
        %2391 = vmatmul.mubr.f32.gmra.mxu0 %v370
        %v2392 = vpop.f32.mrf.mxu0
        %v2393 = vadd.f32 0.0, %v2392
        %v2394 = vpop.f32.mrf.mxu0
        %2395 = vmatprep.mubr.f32.mxu0 0.0
        %2396 = vmatmul.mubr.f32.gmra.mxu0 %v373
        %v2397 = vpop.f32.mrf.mxu0
        %v2398 = vadd.f32 0.0, %v2397
        %v2399 = vpop.f32.mrf.mxu0
        %2400 = vmatprep.mubr.f32.mxu0 0.0
        %2401 = vmatmul.mubr.f32.gmra.mxu0 %v376
        %v2402 = vpop.f32.mrf.mxu0
        %v2403 = vadd.f32 0.0, %v2402
        %v2404 = vpop.f32.mrf.mxu0
        %2405 = vmatprep.mubr.f32.mxu0 0.0
        %2406 = vmatmul.mubr.f32.gmra.mxu0 %v379
        %v2407 = vpop.f32.mrf.mxu0
        %v2408 = vadd.f32 0.0, %v2407
        %v2409 = vpop.f32.mrf.mxu0
        %2410 = vmatprep.mubr.f32.mxu0 0.0
        %2411 = vmatmul.mubr.f32.gmra.mxu0 %v382
        %v2412 = vpop.f32.mrf.mxu0
        %v2413 = vadd.f32 0.0, %v2412
        %v2414 = vpop.f32.mrf.mxu0
        %2415 = vmatprep.mubr.f32.mxu0 0.0
        %2416 = vmatmul.mubr.f32.gmra.mxu0 %v385
        %v2417 = vpop.f32.mrf.mxu0
        %v2418 = vadd.f32 0.0, %v2417
        %v2419 = vpop.f32.mrf.mxu0
        %2420 = vmatprep.mubr.f32.mxu0 0.0
        %2421 = vmatmul.mubr.f32.gmra.mxu0 %v388
        %v2422 = vpop.f32.mrf.mxu0
        %v2423 = vadd.f32 0.0, %v2422
        %v2424 = vpop.f32.mrf.mxu0
        %2425 = vmatprep.mubr.f32.mxu0 0.0
        %2426 = vmatmul.mubr.f32.gmra.mxu0 %v391
        %v2427 = vpop.f32.mrf.mxu0
        %v2428 = vadd.f32 0.0, %v2427
        %v2429 = vpop.f32.mrf.mxu0
        %2430 = vmatprep.mubr.f32.mxu0 0.0
        %2431 = vmatmul.mubr.f32.gmra.mxu0 %v394
        %v2432 = vpop.f32.mrf.mxu0
        %v2433 = vadd.f32 0.0, %v2432
        %v2434 = vpop.f32.mrf.mxu0
        %2435 = vmatprep.mubr.f32.mxu0 0.0
        %2436 = vmatmul.mubr.f32.gmra.mxu0 %v2138
        %v2437 = vpop.f32.mrf.mxu0
        %v2438 = vadd.f32 0.0, %v2437
        %v2439 = vpop.f32.mrf.mxu0
        %2440 = vmatprep.mubr.f32.mxu0 0.0
        %2441 = vmatmul.mubr.f32.gmra.mxu0 %v2141
        %v2442 = vpop.f32.mrf.mxu0
        %v2443 = vadd.f32 0.0, %v2442
        %v2444 = vpop.f32.mrf.mxu0
        %2445 = vmatprep.mubr.f32.mxu0 0.0
        %2446 = vmatmul.mubr.f32.gmra.mxu0 %v2144
        %v2447 = vpop.f32.mrf.mxu0
        %v2448 = vadd.f32 0.0, %v2447
        %v2449 = vpop.f32.mrf.mxu0
        %2450 = vdwg.mxu0
        %v2451 = vld [vmem:[#allocation2] sm:$0xff]
        %v2452 = vld [vmem:[#allocation2 + $0x8] sm:$0xff]
        %v2453 = vld [vmem:[#allocation2 + $0x10] sm:$0xff]
        %v2454 = vld [vmem:[#allocation2 + $0x18] sm:$0xff]
        %v2455 = vld [vmem:[#allocation2 + $0x20] sm:$0xff]
        %v2456 = vld [vmem:[#allocation2 + $0x28] sm:$0xff]
        %v2457 = vld [vmem:[#allocation2 + $0x30] sm:$0xff]
        %v2458 = vld [vmem:[#allocation2 + $0x38] sm:$0xff]
        %v2459 = vld [vmem:[#allocation2 + $0x40] sm:$0xff]
        %v2460 = vld [vmem:[#allocation2 + $0x48] sm:$0xff]
        %v2461 = vld [vmem:[#allocation2 + $0x50] sm:$0xff]
        %v2462 = vld [vmem:[#allocation2 + $0x58] sm:$0xff]
        %v2463 = vld [vmem:[#allocation2 + $0x60] sm:$0xff]
        %v2464 = vld [vmem:[#allocation2 + $0x68] sm:$0xff]
        %v2465 = vld [vmem:[#allocation2 + $0x70] sm:$0xff]
        %v2466 = vld [vmem:[#allocation2 + $0x78] sm:$0xff]
        %v2467 = vld [vmem:[#allocation2 + $0x80] sm:$0xff]
        %v2468 = vld [vmem:[#allocation2 + $0x88] sm:$0xff]
        %v2469 = vld [vmem:[#allocation2 + $0x90] sm:$0xff]
        %v2470 = vld [vmem:[#allocation2 + $0x98] sm:$0xff]
        %v2471 = vld [vmem:[#allocation2 + $0xa0] sm:$0xff]
        %v2472 = vld [vmem:[#allocation2 + $0xa8] sm:$0xff]
        %v2473 = vld [vmem:[#allocation2 + $0xb0] sm:$0xff]
        %v2474 = vld [vmem:[#allocation2 + $0xb8] sm:$0xff]
        %v2475 = vld [vmem:[#allocation2 + $0xc0] sm:$0xff]
        %v2476 = vld [vmem:[#allocation2 + $0xc8] sm:$0xff]
        %v2477 = vld [vmem:[#allocation2 + $0xd0] sm:$0xff]
        %v2478 = vld [vmem:[#allocation2 + $0xd8] sm:$0xff]
        %v2479 = vld [vmem:[#allocation2 + $0xe0] sm:$0xff]
        %v2480 = vld [vmem:[#allocation2 + $0xe8] sm:$0xff]
        %v2481 = vld [vmem:[#allocation2 + $0xf0] sm:$0xff]
        %v2482 = vld [vmem:[#allocation2 + $0xf8] sm:$0xff]
        %v2483 = vld [vmem:[#allocation2 + $0x100] sm:$0xff]
        %v2484 = vld [vmem:[#allocation2 + $0x108] sm:$0xff]
        %v2485 = vld [vmem:[#allocation2 + $0x110] sm:$0xff]
        %v2486 = vld [vmem:[#allocation2 + $0x118] sm:$0xff]
        %v2487 = vld [vmem:[#allocation2 + $0x120] sm:$0xff]
        %v2488 = vld [vmem:[#allocation2 + $0x128] sm:$0xff]
        %v2489 = vld [vmem:[#allocation2 + $0x130] sm:$0xff]
        %v2490 = vld [vmem:[#allocation2 + $0x138] sm:$0xff]
        %v2491 = vld [vmem:[#allocation2 + $0x140] sm:$0xff]
        %v2492 = vld [vmem:[#allocation2 + $0x148] sm:$0xff]
        %v2493 = vld [vmem:[#allocation2 + $0x150] sm:$0xff]
        %v2494 = vld [vmem:[#allocation2 + $0x158] sm:$0xff]
        %v2495 = vld [vmem:[#allocation2 + $0x160] sm:$0xff]
        %v2496 = vld [vmem:[#allocation2 + $0x168] sm:$0xff]
        %v2497 = vld [vmem:[#allocation2 + $0x170] sm:$0xff]
        %v2498 = vld [vmem:[#allocation2 + $0x178] sm:$0xff]
        %v2499 = vadd.f32 %v2451, %v2213
        %v2500 = vadd.f32 %v2452, %v2218
        %v2501 = vadd.f32 %v2453, %v2223
        %v2502 = vadd.f32 %v2454, %v2228
        %v2503 = vadd.f32 %v2455, %v2233
        %v2504 = vadd.f32 %v2456, %v2238
        %v2505 = vadd.f32 %v2457, %v2243
        %v2506 = vadd.f32 %v2458, %v2248
        %v2507 = vadd.f32 %v2459, %v2253
        %v2508 = vadd.f32 %v2460, %v2258
        %v2509 = vadd.f32 %v2461, %v2263
        %v2510 = vadd.f32 %v2462, %v2268
        %v2511 = vadd.f32 %v2463, %v2273
        %v2512 = vadd.f32 %v2464, %v2278
        %v2513 = vadd.f32 %v2465, %v2283
        %v2514 = vadd.f32 %v2466, %v2288
        %v2515 = vadd.f32 %v2467, %v2293
        %v2516 = vadd.f32 %v2468, %v2298
        %v2517 = vadd.f32 %v2469, %v2303
        %v2518 = vadd.f32 %v2470, %v2308
        %v2519 = vadd.f32 %v2471, %v2313
        %v2520 = vadd.f32 %v2472, %v2318
        %v2521 = vadd.f32 %v2473, %v2323
        %v2522 = vadd.f32 %v2474, %v2328
        %v2523 = vadd.f32 %v2475, %v2333
        %v2524 = vadd.f32 %v2476, %v2338
        %v2525 = vadd.f32 %v2477, %v2343
        %v2526 = vadd.f32 %v2478, %v2348
        %v2527 = vadd.f32 %v2479, %v2353
        %v2528 = vadd.f32 %v2480, %v2358
        %v2529 = vadd.f32 %v2481, %v2363
        %v2530 = vadd.f32 %v2482, %v2368
        %v2531 = vadd.f32 %v2483, %v2373
        %v2532 = vadd.f32 %v2484, %v2378
        %v2533 = vadd.f32 %v2485, %v2383
        %v2534 = vadd.f32 %v2486, %v2388
        %v2535 = vadd.f32 %v2487, %v2393
        %v2536 = vadd.f32 %v2488, %v2398
        %v2537 = vadd.f32 %v2489, %v2403
        %v2538 = vadd.f32 %v2490, %v2408
        %v2539 = vadd.f32 %v2491, %v2413
        %v2540 = vadd.f32 %v2492, %v2418
        %v2541 = vadd.f32 %v2493, %v2423
        %v2542 = vadd.f32 %v2494, %v2428
        %v2543 = vadd.f32 %v2495, %v2433
        %v2544 = vadd.f32 %v2496, %v2438
        %v2545 = vadd.f32 %v2497, %v2443
        %v2546 = vadd.f32 %v2498, %v2448
        %2547 = vst [vmem:[#allocation2] sm:$0xff] %v2499
        %2548 = vst [vmem:[#allocation2 + $0x8] sm:$0xff] %v2500
        %2549 = vst [vmem:[#allocation2 + $0x10] sm:$0xff] %v2501
        %2550 = vst [vmem:[#allocation2 + $0x18] sm:$0xff] %v2502
        %2551 = vst [vmem:[#allocation2 + $0x20] sm:$0xff] %v2503
        %2552 = vst [vmem:[#allocation2 + $0x28] sm:$0xff] %v2504
        %2553 = vst [vmem:[#allocation2 + $0x30] sm:$0xff] %v2505
        %2554 = vst [vmem:[#allocation2 + $0x38] sm:$0xff] %v2506
        %2555 = vst [vmem:[#allocation2 + $0x40] sm:$0xff] %v2507
        %2556 = vst [vmem:[#allocation2 + $0x48] sm:$0xff] %v2508
        %2557 = vst [vmem:[#allocation2 + $0x50] sm:$0xff] %v2509
        %2558 = vst [vmem:[#allocation2 + $0x58] sm:$0xff] %v2510
        %2559 = vst [vmem:[#allocation2 + $0x60] sm:$0xff] %v2511
        %2560 = vst [vmem:[#allocation2 + $0x68] sm:$0xff] %v2512
        %2561 = vst [vmem:[#allocation2 + $0x70] sm:$0xff] %v2513
        %2562 = vst [vmem:[#allocation2 + $0x78] sm:$0xff] %v2514
        %2563 = vst [vmem:[#allocation2 + $0x80] sm:$0xff] %v2515
        %2564 = vst [vmem:[#allocation2 + $0x88] sm:$0xff] %v2516
        %2565 = vst [vmem:[#allocation2 + $0x90] sm:$0xff] %v2517
        %2566 = vst [vmem:[#allocation2 + $0x98] sm:$0xff] %v2518
        %2567 = vst [vmem:[#allocation2 + $0xa0] sm:$0xff] %v2519
        %2568 = vst [vmem:[#allocation2 + $0xa8] sm:$0xff] %v2520
        %2569 = vst [vmem:[#allocation2 + $0xb0] sm:$0xff] %v2521
        %2570 = vst [vmem:[#allocation2 + $0xb8] sm:$0xff] %v2522
        %2571 = vst [vmem:[#allocation2 + $0xc0] sm:$0xff] %v2523
        %2572 = vst [vmem:[#allocation2 + $0xc8] sm:$0xff] %v2524
        %2573 = vst [vmem:[#allocation2 + $0xd0] sm:$0xff] %v2525
        %2574 = vst [vmem:[#allocation2 + $0xd8] sm:$0xff] %v2526
        %2575 = vst [vmem:[#allocation2 + $0xe0] sm:$0xff] %v2527
        %2576 = vst [vmem:[#allocation2 + $0xe8] sm:$0xff] %v2528
        %2577 = vst [vmem:[#allocation2 + $0xf0] sm:$0xff] %v2529
        %2578 = vst [vmem:[#allocation2 + $0xf8] sm:$0xff] %v2530
        %2579 = vst [vmem:[#allocation2 + $0x100] sm:$0xff] %v2531
        %2580 = vst [vmem:[#allocation2 + $0x108] sm:$0xff] %v2532
        %2581 = vst [vmem:[#allocation2 + $0x110] sm:$0xff] %v2533
        %2582 = vst [vmem:[#allocation2 + $0x118] sm:$0xff] %v2534
        %2583 = vst [vmem:[#allocation2 + $0x120] sm:$0xff] %v2535
        %2584 = vst [vmem:[#allocation2 + $0x128] sm:$0xff] %v2536
        %2585 = vst [vmem:[#allocation2 + $0x130] sm:$0xff] %v2537
        %2586 = vst [vmem:[#allocation2 + $0x138] sm:$0xff] %v2538
        %2587 = vst [vmem:[#allocation2 + $0x140] sm:$0xff] %v2539
        %2588 = vst [vmem:[#allocation2 + $0x148] sm:$0xff] %v2540
        %2589 = vst [vmem:[#allocation2 + $0x150] sm:$0xff] %v2541
        %2590 = vst [vmem:[#allocation2 + $0x158] sm:$0xff] %v2542
        %2591 = vst [vmem:[#allocation2 + $0x160] sm:$0xff] %v2543
        %2592 = vst [vmem:[#allocation2 + $0x168] sm:$0xff] %v2544
        %2593 = vst [vmem:[#allocation2 + $0x170] sm:$0xff] %v2545
        %2594 = vst [vmem:[#allocation2 + $0x178] sm:$0xff] %v2546
        %v2595 = vrot.slane %v244, 1
        %v2596 = vrot.slane %v245, 1
        %v2597 = vrot.slane %v246, 1
        %v2598 = vsel %vm799, %v2596, %v2597
        %v2599 = vsel %vm799, %v2595, %v2596
        %v2600 = vsel %vm799, %v796, %v2595
        %v2601 = vsel %vm799, %v2597, %v752
        %s2602 = scalar_lea.vmem %s195, 32
        %v2603 = vld [vmem:[%s2602] sm:$0xff]
        %v2605 = vsel %vm251, %v2600, 0
        %v2608 = vsel %vm251, %v2599, 0
        %v2611 = vsel %vm251, %v2598, 0
        %v2614 = vsel %vm251, %v2601, 0
        %2616 = vmatprep.subr.mxu0 0.0
        %2617 = vmatpush1.msra.mxu0 0.0
        %2618 = vmatprep.subr.mxu0 0.0
        %2619 = vmatpush1.msra.mxu0 0.0
        %2620 = vmatprep.subr.mxu0 0.0
        %2621 = vmatpush1.msra.mxu0 0.0
        %2622 = vmatprep.subr.mxu0 0.0
        %2623 = vmatpush1.msra.mxu0 0.0
        %2624 = vmatprep.subr.mxu0 0.0
        %2625 = vmatpush1.msra.mxu0 0.0
        %2626 = vmatprep.subr.mxu0 0.0
        %2627 = vmatpush1.msra.mxu0 0.0
        %2628 = vmatprep.subr.mxu0 0.0
        %2629 = vmatpush1.msra.mxu0 0.0
        %2630 = vmatprep.subr.mxu0 0.0
        %2631 = vmatpush1.msra.mxu0 0.0
        %2632 = vmatprep.subr.mxu0 0.0
        %2633 = vmatpush1.msra.mxu0 0.0
        %2634 = vmatprep.subr.mxu0 0.0
        %2635 = vmatpush1.msra.mxu0 0.0
        %2636 = vmatprep.subr.mxu0 0.0
        %2637 = vmatpush1.msra.mxu0 0.0
        %2638 = vmatprep.subr.mxu0 0.0
        %2639 = vmatpush1.msra.mxu0 0.0
        %2640 = vmatprep.subr.mxu0 0.0
        %2641 = vmatpush1.msra.mxu0 0.0
        %2642 = vmatprep.subr.mxu0 0.0
        %2643 = vmatpush1.msra.mxu0 0.0
        %2644 = vmatprep.subr.mxu0 0.0
        %2645 = vmatpush1.msra.mxu0 0.0
        %2646 = vmatprep.subr.mxu0 0.0
        %2647 = vmatpush1.msra.mxu0 %v2603
        %2648 = vmatprep.subr.mxu0 0.0
        %2649 = vmatpush2.msra.mxu0 0.0
        %2650 = vmatprep.subr.mxu0 0.0
        %2651 = vmatpush2.msra.mxu0 0.0
        %2652 = vmatprep.subr.mxu0 0.0
        %2653 = vmatpush2.msra.mxu0 0.0
        %2654 = vmatprep.subr.mxu0 0.0
        %2655 = vmatpush2.msra.mxu0 0.0
        %2656 = vmatprep.subr.mxu0 0.0
        %2657 = vmatpush2.msra.mxu0 0.0
        %2658 = vmatprep.subr.mxu0 0.0
        %2659 = vmatpush2.msra.mxu0 0.0
        %2660 = vmatprep.subr.mxu0 0.0
        %2661 = vmatpush2.msra.mxu0 0.0
        %2662 = vmatprep.subr.mxu0 0.0
        %2663 = vmatpush2.msra.mxu0 0.0
        %2664 = vmatprep.subr.mxu0 0.0
        %2665 = vmatpush2.msra.mxu0 0.0
        %2666 = vmatprep.subr.mxu0 0.0
        %2667 = vmatpush2.msra.mxu0 0.0
        %2668 = vmatprep.subr.mxu0 0.0
        %2669 = vmatpush2.msra.mxu0 0.0
        %2670 = vmatprep.subr.mxu0 0.0
        %2671 = vmatpush2.msra.mxu0 0.0
        %2672 = vmatprep.subr.mxu0 0.0
        %2673 = vmatpush2.msra.mxu0 0.0
        %2674 = vmatprep.subr.mxu0 0.0
        %2675 = vmatpush2.msra.mxu0 0.0
        %2676 = vmatprep.subr.mxu0 0.0
        %2677 = vmatpush2.msra.mxu0 0.0
        %2678 = vmatprep.subr.mxu0 0.0
        %2679 = vmatpush2.msra.mxu0 0.0
        %2680 = vmatprep.mubr.f32.mxu0 0.0
        %2681 = vmatmul.mubr.f32.gmra.mxu0 %v860
        %v2682 = vpop.f32.mrf.mxu0
        %v2683 = vadd.f32 0.0, %v2682
        %v2684 = vpop.f32.mrf.mxu0
        %2685 = vmatprep.mubr.f32.mxu0 0.0
        %2686 = vmatmul.mubr.f32.gmra.mxu0 %v863
        %v2687 = vpop.f32.mrf.mxu0
        %v2688 = vadd.f32 0.0, %v2687
        %v2689 = vpop.f32.mrf.mxu0
        %2690 = vmatprep.mubr.f32.mxu0 0.0
        %2691 = vmatmul.mubr.f32.gmra.mxu0 %v866
        %v2692 = vpop.f32.mrf.mxu0
        %v2693 = vadd.f32 0.0, %v2692
        %v2694 = vpop.f32.mrf.mxu0
        %2695 = vmatprep.mubr.f32.mxu0 0.0
        %2696 = vmatmul.mubr.f32.gmra.mxu0 %v869
        %v2697 = vpop.f32.mrf.mxu0
        %v2698 = vadd.f32 0.0, %v2697
        %v2699 = vpop.f32.mrf.mxu0
        %2700 = vmatprep.mubr.f32.mxu0 0.0
        %2701 = vmatmul.mubr.f32.gmra.mxu0 %v872
        %v2702 = vpop.f32.mrf.mxu0
        %v2703 = vadd.f32 0.0, %v2702
        %v2704 = vpop.f32.mrf.mxu0
        %2705 = vmatprep.mubr.f32.mxu0 0.0
        %2706 = vmatmul.mubr.f32.gmra.mxu0 %v875
        %v2707 = vpop.f32.mrf.mxu0
        %v2708 = vadd.f32 0.0, %v2707
        %v2709 = vpop.f32.mrf.mxu0
        %2710 = vmatprep.mubr.f32.mxu0 0.0
        %2711 = vmatmul.mubr.f32.gmra.mxu0 %v878
        %v2712 = vpop.f32.mrf.mxu0
        %v2713 = vadd.f32 0.0, %v2712
        %v2714 = vpop.f32.mrf.mxu0
        %2715 = vmatprep.mubr.f32.mxu0 0.0
        %2716 = vmatmul.mubr.f32.gmra.mxu0 %v881
        %v2717 = vpop.f32.mrf.mxu0
        %v2718 = vadd.f32 0.0, %v2717
        %v2719 = vpop.f32.mrf.mxu0
        %2720 = vmatprep.mubr.f32.mxu0 0.0
        %2721 = vmatmul.mubr.f32.gmra.mxu0 %v884
        %v2722 = vpop.f32.mrf.mxu0
        %v2723 = vadd.f32 0.0, %v2722
        %v2724 = vpop.f32.mrf.mxu0
        %2725 = vmatprep.mubr.f32.mxu0 0.0
        %2726 = vmatmul.mubr.f32.gmra.mxu0 %v887
        %v2727 = vpop.f32.mrf.mxu0
        %v2728 = vadd.f32 0.0, %v2727
        %v2729 = vpop.f32.mrf.mxu0
        %2730 = vmatprep.mubr.f32.mxu0 0.0
        %2731 = vmatmul.mubr.f32.gmra.mxu0 %v890
        %v2732 = vpop.f32.mrf.mxu0
        %v2733 = vadd.f32 0.0, %v2732
        %v2734 = vpop.f32.mrf.mxu0
        %2735 = vmatprep.mubr.f32.mxu0 0.0
        %2736 = vmatmul.mubr.f32.gmra.mxu0 %v893
        %v2737 = vpop.f32.mrf.mxu0
        %v2738 = vadd.f32 0.0, %v2737
        %v2739 = vpop.f32.mrf.mxu0
        %2740 = vmatprep.mubr.f32.mxu0 0.0
        %2741 = vmatmul.mubr.f32.gmra.mxu0 %v896
        %v2742 = vpop.f32.mrf.mxu0
        %v2743 = vadd.f32 0.0, %v2742
        %v2744 = vpop.f32.mrf.mxu0
        %2745 = vmatprep.mubr.f32.mxu0 0.0
        %2746 = vmatmul.mubr.f32.gmra.mxu0 %v899
        %v2747 = vpop.f32.mrf.mxu0
        %v2748 = vadd.f32 0.0, %v2747
        %v2749 = vpop.f32.mrf.mxu0
        %2750 = vmatprep.mubr.f32.mxu0 0.0
        %2751 = vmatmul.mubr.f32.gmra.mxu0 %v902
        %v2752 = vpop.f32.mrf.mxu0
        %v2753 = vadd.f32 0.0, %v2752
        %v2754 = vpop.f32.mrf.mxu0
        %2755 = vmatprep.mubr.f32.mxu0 0.0
        %2756 = vmatmul.mubr.f32.gmra.mxu0 %v905
        %v2757 = vpop.f32.mrf.mxu0
        %v2758 = vadd.f32 0.0, %v2757
        %v2759 = vpop.f32.mrf.mxu0
        %2760 = vmatprep.mubr.f32.mxu0 0.0
        %2761 = vmatmul.mubr.f32.gmra.mxu0 %v908
        %v2762 = vpop.f32.mrf.mxu0
        %v2763 = vadd.f32 0.0, %v2762
        %v2764 = vpop.f32.mrf.mxu0
        %2765 = vmatprep.mubr.f32.mxu0 0.0
        %2766 = vmatmul.mubr.f32.gmra.mxu0 %v911
        %v2767 = vpop.f32.mrf.mxu0
        %v2768 = vadd.f32 0.0, %v2767
        %v2769 = vpop.f32.mrf.mxu0
        %2770 = vmatprep.mubr.f32.mxu0 0.0
        %2771 = vmatmul.mubr.f32.gmra.mxu0 %v914
        %v2772 = vpop.f32.mrf.mxu0
        %v2773 = vadd.f32 0.0, %v2772
        %v2774 = vpop.f32.mrf.mxu0
        %2775 = vmatprep.mubr.f32.mxu0 0.0
        %2776 = vmatmul.mubr.f32.gmra.mxu0 %v917
        %v2777 = vpop.f32.mrf.mxu0
        %v2778 = vadd.f32 0.0, %v2777
        %v2779 = vpop.f32.mrf.mxu0
        %2780 = vmatprep.mubr.f32.mxu0 0.0
        %2781 = vmatmul.mubr.f32.gmra.mxu0 %v920
        %v2782 = vpop.f32.mrf.mxu0
        %v2783 = vadd.f32 0.0, %v2782
        %v2784 = vpop.f32.mrf.mxu0
        %2785 = vmatprep.mubr.f32.mxu0 0.0
        %2786 = vmatmul.mubr.f32.gmra.mxu0 %v923
        %v2787 = vpop.f32.mrf.mxu0
        %v2788 = vadd.f32 0.0, %v2787
        %v2789 = vpop.f32.mrf.mxu0
        %2790 = vmatprep.mubr.f32.mxu0 0.0
        %2791 = vmatmul.mubr.f32.gmra.mxu0 %v926
        %v2792 = vpop.f32.mrf.mxu0
        %v2793 = vadd.f32 0.0, %v2792
        %v2794 = vpop.f32.mrf.mxu0
        %2795 = vmatprep.mubr.f32.mxu0 0.0
        %2796 = vmatmul.mubr.f32.gmra.mxu0 %v929
        %v2797 = vpop.f32.mrf.mxu0
        %v2798 = vadd.f32 0.0, %v2797
        %v2799 = vpop.f32.mrf.mxu0
        %2800 = vmatprep.mubr.f32.mxu0 0.0
        %2801 = vmatmul.mubr.f32.gmra.mxu0 %v932
        %v2802 = vpop.f32.mrf.mxu0
        %v2803 = vadd.f32 0.0, %v2802
        %v2804 = vpop.f32.mrf.mxu0
        %2805 = vmatprep.mubr.f32.mxu0 0.0
        %2806 = vmatmul.mubr.f32.gmra.mxu0 %v935
        %v2807 = vpop.f32.mrf.mxu0
        %v2808 = vadd.f32 0.0, %v2807
        %v2809 = vpop.f32.mrf.mxu0
        %2810 = vmatprep.mubr.f32.mxu0 0.0
        %2811 = vmatmul.mubr.f32.gmra.mxu0 %v938
        %v2812 = vpop.f32.mrf.mxu0
        %v2813 = vadd.f32 0.0, %v2812
        %v2814 = vpop.f32.mrf.mxu0
        %2815 = vmatprep.mubr.f32.mxu0 0.0
        %2816 = vmatmul.mubr.f32.gmra.mxu0 %v941
        %v2817 = vpop.f32.mrf.mxu0
        %v2818 = vadd.f32 0.0, %v2817
        %v2819 = vpop.f32.mrf.mxu0
        %2820 = vmatprep.mubr.f32.mxu0 0.0
        %2821 = vmatmul.mubr.f32.gmra.mxu0 %v944
        %v2822 = vpop.f32.mrf.mxu0
        %v2823 = vadd.f32 0.0, %v2822
        %v2824 = vpop.f32.mrf.mxu0
        %2825 = vmatprep.mubr.f32.mxu0 0.0
        %2826 = vmatmul.mubr.f32.gmra.mxu0 %v947
        %v2827 = vpop.f32.mrf.mxu0
        %v2828 = vadd.f32 0.0, %v2827
        %v2829 = vpop.f32.mrf.mxu0
        %2830 = vmatprep.mubr.f32.mxu0 0.0
        %2831 = vmatmul.mubr.f32.gmra.mxu0 %v950
        %v2832 = vpop.f32.mrf.mxu0
        %v2833 = vadd.f32 0.0, %v2832
        %v2834 = vpop.f32.mrf.mxu0
        %2835 = vmatprep.mubr.f32.mxu0 0.0
        %2836 = vmatmul.mubr.f32.gmra.mxu0 %v953
        %v2837 = vpop.f32.mrf.mxu0
        %v2838 = vadd.f32 0.0, %v2837
        %v2839 = vpop.f32.mrf.mxu0
        %2840 = vmatprep.mubr.f32.mxu0 0.0
        %2841 = vmatmul.mubr.f32.gmra.mxu0 %v956
        %v2842 = vpop.f32.mrf.mxu0
        %v2843 = vadd.f32 0.0, %v2842
        %v2844 = vpop.f32.mrf.mxu0
        %2845 = vmatprep.mubr.f32.mxu0 0.0
        %2846 = vmatmul.mubr.f32.gmra.mxu0 %v959
        %v2847 = vpop.f32.mrf.mxu0
        %v2848 = vadd.f32 0.0, %v2847
        %v2849 = vpop.f32.mrf.mxu0
        %2850 = vmatprep.mubr.f32.mxu0 0.0
        %2851 = vmatmul.mubr.f32.gmra.mxu0 %v962
        %v2852 = vpop.f32.mrf.mxu0
        %v2853 = vadd.f32 0.0, %v2852
        %v2854 = vpop.f32.mrf.mxu0
        %2855 = vmatprep.mubr.f32.mxu0 0.0
        %2856 = vmatmul.mubr.f32.gmra.mxu0 %v965
        %v2857 = vpop.f32.mrf.mxu0
        %v2858 = vadd.f32 0.0, %v2857
        %v2859 = vpop.f32.mrf.mxu0
        %2860 = vmatprep.mubr.f32.mxu0 0.0
        %2861 = vmatmul.mubr.f32.gmra.mxu0 %v968
        %v2862 = vpop.f32.mrf.mxu0
        %v2863 = vadd.f32 0.0, %v2862
        %v2864 = vpop.f32.mrf.mxu0
        %2865 = vmatprep.mubr.f32.mxu0 0.0
        %2866 = vmatmul.mubr.f32.gmra.mxu0 %v971
        %v2867 = vpop.f32.mrf.mxu0
        %v2868 = vadd.f32 0.0, %v2867
        %v2869 = vpop.f32.mrf.mxu0
        %2870 = vmatprep.mubr.f32.mxu0 0.0
        %2871 = vmatmul.mubr.f32.gmra.mxu0 %v974
        %v2872 = vpop.f32.mrf.mxu0
        %v2873 = vadd.f32 0.0, %v2872
        %v2874 = vpop.f32.mrf.mxu0
        %2875 = vmatprep.mubr.f32.mxu0 0.0
        %2876 = vmatmul.mubr.f32.gmra.mxu0 %v977
        %v2877 = vpop.f32.mrf.mxu0
        %v2878 = vadd.f32 0.0, %v2877
        %v2879 = vpop.f32.mrf.mxu0
        %2880 = vmatprep.mubr.f32.mxu0 0.0
        %2881 = vmatmul.mubr.f32.gmra.mxu0 %v980
        %v2882 = vpop.f32.mrf.mxu0
        %v2883 = vadd.f32 0.0, %v2882
        %v2884 = vpop.f32.mrf.mxu0
        %2885 = vmatprep.mubr.f32.mxu0 0.0
        %2886 = vmatmul.mubr.f32.gmra.mxu0 %v983
        %v2887 = vpop.f32.mrf.mxu0
        %v2888 = vadd.f32 0.0, %v2887
        %v2889 = vpop.f32.mrf.mxu0
        %2890 = vmatprep.mubr.f32.mxu0 0.0
        %2891 = vmatmul.mubr.f32.gmra.mxu0 %v986
        %v2892 = vpop.f32.mrf.mxu0
        %v2893 = vadd.f32 0.0, %v2892
        %v2894 = vpop.f32.mrf.mxu0
        %2895 = vmatprep.mubr.f32.mxu0 0.0
        %2896 = vmatmul.mubr.f32.gmra.mxu0 %v989
        %v2897 = vpop.f32.mrf.mxu0
        %v2898 = vadd.f32 0.0, %v2897
        %v2899 = vpop.f32.mrf.mxu0
        %2900 = vmatprep.mubr.f32.mxu0 0.0
        %2901 = vmatmul.mubr.f32.gmra.mxu0 %v2605
        %v2902 = vpop.f32.mrf.mxu0
        %v2903 = vadd.f32 0.0, %v2902
        %v2904 = vpop.f32.mrf.mxu0
        %2905 = vmatprep.mubr.f32.mxu0 0.0
        %2906 = vmatmul.mubr.f32.gmra.mxu0 %v2608
        %v2907 = vpop.f32.mrf.mxu0
        %v2908 = vadd.f32 0.0, %v2907
        %v2909 = vpop.f32.mrf.mxu0
        %2910 = vmatprep.mubr.f32.mxu0 0.0
        %2911 = vmatmul.mubr.f32.gmra.mxu0 %v2611
        %v2912 = vpop.f32.mrf.mxu0
        %v2913 = vadd.f32 0.0, %v2912
        %v2914 = vpop.f32.mrf.mxu0
        %2915 = vmatprep.mubr.f32.mxu0 0.0
        %2916 = vmatmul.mubr.f32.gmra.mxu0 %v2614
        %v2917 = vpop.f32.mrf.mxu0
        %v2918 = vadd.f32 0.0, %v2917
        %v2919 = vpop.f32.mrf.mxu0
        %2920 = vdwg.mxu0
        %v2921 = vld [vmem:[#allocation2] sm:$0xff]
        %v2922 = vld [vmem:[#allocation2 + $0x8] sm:$0xff]
        %v2923 = vld [vmem:[#allocation2 + $0x10] sm:$0xff]
        %v2924 = vld [vmem:[#allocation2 + $0x18] sm:$0xff]
        %v2925 = vld [vmem:[#allocation2 + $0x20] sm:$0xff]
        %v2926 = vld [vmem:[#allocation2 + $0x28] sm:$0xff]
        %v2927 = vld [vmem:[#allocation2 + $0x30] sm:$0xff]
        %v2928 = vld [vmem:[#allocation2 + $0x38] sm:$0xff]
        %v2929 = vld [vmem:[#allocation2 + $0x40] sm:$0xff]
        %v2930 = vld [vmem:[#allocation2 + $0x48] sm:$0xff]
        %v2931 = vld [vmem:[#allocation2 + $0x50] sm:$0xff]
        %v2932 = vld [vmem:[#allocation2 + $0x58] sm:$0xff]
        %v2933 = vld [vmem:[#allocation2 + $0x60] sm:$0xff]
        %v2934 = vld [vmem:[#allocation2 + $0x68] sm:$0xff]
        %v2935 = vld [vmem:[#allocation2 + $0x70] sm:$0xff]
        %v2936 = vld [vmem:[#allocation2 + $0x78] sm:$0xff]
        %v2937 = vld [vmem:[#allocation2 + $0x80] sm:$0xff]
        %v2938 = vld [vmem:[#allocation2 + $0x88] sm:$0xff]
        %v2939 = vld [vmem:[#allocation2 + $0x90] sm:$0xff]
        %v2940 = vld [vmem:[#allocation2 + $0x98] sm:$0xff]
        %v2941 = vld [vmem:[#allocation2 + $0xa0] sm:$0xff]
        %v2942 = vld [vmem:[#allocation2 + $0xa8] sm:$0xff]
        %v2943 = vld [vmem:[#allocation2 + $0xb0] sm:$0xff]
        %v2944 = vld [vmem:[#allocation2 + $0xb8] sm:$0xff]
        %v2945 = vld [vmem:[#allocation2 + $0xc0] sm:$0xff]
        %v2946 = vld [vmem:[#allocation2 + $0xc8] sm:$0xff]
        %v2947 = vld [vmem:[#allocation2 + $0xd0] sm:$0xff]
        %v2948 = vld [vmem:[#allocation2 + $0xd8] sm:$0xff]
        %v2949 = vld [vmem:[#allocation2 + $0xe0] sm:$0xff]
        %v2950 = vld [vmem:[#allocation2 + $0xe8] sm:$0xff]
        %v2951 = vld [vmem:[#allocation2 + $0xf0] sm:$0xff]
        %v2952 = vld [vmem:[#allocation2 + $0xf8] sm:$0xff]
        %v2953 = vld [vmem:[#allocation2 + $0x100] sm:$0xff]
        %v2954 = vld [vmem:[#allocation2 + $0x108] sm:$0xff]
        %v2955 = vld [vmem:[#allocation2 + $0x110] sm:$0xff]
        %v2956 = vld [vmem:[#allocation2 + $0x118] sm:$0xff]
        %v2957 = vld [vmem:[#allocation2 + $0x120] sm:$0xff]
        %v2958 = vld [vmem:[#allocation2 + $0x128] sm:$0xff]
        %v2959 = vld [vmem:[#allocation2 + $0x130] sm:$0xff]
        %v2960 = vld [vmem:[#allocation2 + $0x138] sm:$0xff]
        %v2961 = vld [vmem:[#allocation2 + $0x140] sm:$0xff]
        %v2962 = vld [vmem:[#allocation2 + $0x148] sm:$0xff]
        %v2963 = vld [vmem:[#allocation2 + $0x150] sm:$0xff]
        %v2964 = vld [vmem:[#allocation2 + $0x158] sm:$0xff]
        %v2965 = vld [vmem:[#allocation2 + $0x160] sm:$0xff]
        %v2966 = vld [vmem:[#allocation2 + $0x168] sm:$0xff]
        %v2967 = vld [vmem:[#allocation2 + $0x170] sm:$0xff]
        %v2968 = vld [vmem:[#allocation2 + $0x178] sm:$0xff]
        %v2969 = vadd.f32 %v2921, %v2683
        %v2970 = vadd.f32 %v2922, %v2688
        %v2971 = vadd.f32 %v2923, %v2693
        %v2972 = vadd.f32 %v2924, %v2698
        %v2973 = vadd.f32 %v2925, %v2703
        %v2974 = vadd.f32 %v2926, %v2708
        %v2975 = vadd.f32 %v2927, %v2713
        %v2976 = vadd.f32 %v2928, %v2718
        %v2977 = vadd.f32 %v2929, %v2723
        %v2978 = vadd.f32 %v2930, %v2728
        %v2979 = vadd.f32 %v2931, %v2733
        %v2980 = vadd.f32 %v2932, %v2738
        %v2981 = vadd.f32 %v2933, %v2743
        %v2982 = vadd.f32 %v2934, %v2748
        %v2983 = vadd.f32 %v2935, %v2753
        %v2984 = vadd.f32 %v2936, %v2758
        %v2985 = vadd.f32 %v2937, %v2763
        %v2986 = vadd.f32 %v2938, %v2768
        %v2987 = vadd.f32 %v2939, %v2773
        %v2988 = vadd.f32 %v2940, %v2778
        %v2989 = vadd.f32 %v2941, %v2783
        %v2990 = vadd.f32 %v2942, %v2788
        %v2991 = vadd.f32 %v2943, %v2793
        %v2992 = vadd.f32 %v2944, %v2798
        %v2993 = vadd.f32 %v2945, %v2803
        %v2994 = vadd.f32 %v2946, %v2808
        %v2995 = vadd.f32 %v2947, %v2813
        %v2996 = vadd.f32 %v2948, %v2818
        %v2997 = vadd.f32 %v2949, %v2823
        %v2998 = vadd.f32 %v2950, %v2828
        %v2999 = vadd.f32 %v2951, %v2833
        %v3000 = vadd.f32 %v2952, %v2838
        %v3001 = vadd.f32 %v2953, %v2843
        %v3002 = vadd.f32 %v2954, %v2848
        %v3003 = vadd.f32 %v2955, %v2853
        %v3004 = vadd.f32 %v2956, %v2858
        %v3005 = vadd.f32 %v2957, %v2863
        %v3006 = vadd.f32 %v2958, %v2868
        %v3007 = vadd.f32 %v2959, %v2873
        %v3008 = vadd.f32 %v2960, %v2878
        %v3009 = vadd.f32 %v2961, %v2883
        %v3010 = vadd.f32 %v2962, %v2888
        %v3011 = vadd.f32 %v2963, %v2893
        %v3012 = vadd.f32 %v2964, %v2898
        %v3013 = vadd.f32 %v2965, %v2903
        %v3014 = vadd.f32 %v2966, %v2908
        %v3015 = vadd.f32 %v2967, %v2913
        %v3016 = vadd.f32 %v2968, %v2918
        %3017 = vst [vmem:[#allocation2] sm:$0xff] %v2969
        %3018 = vst [vmem:[#allocation2 + $0x8] sm:$0xff] %v2970
        %3019 = vst [vmem:[#allocation2 + $0x10] sm:$0xff] %v2971
        %3020 = vst [vmem:[#allocation2 + $0x18] sm:$0xff] %v2972
        %3021 = vst [vmem:[#allocation2 + $0x20] sm:$0xff] %v2973
        %3022 = vst [vmem:[#allocation2 + $0x28] sm:$0xff] %v2974
        %3023 = vst [vmem:[#allocation2 + $0x30] sm:$0xff] %v2975
        %3024 = vst [vmem:[#allocation2 + $0x38] sm:$0xff] %v2976
        %3025 = vst [vmem:[#allocation2 + $0x40] sm:$0xff] %v2977
        %3026 = vst [vmem:[#allocation2 + $0x48] sm:$0xff] %v2978
        %3027 = vst [vmem:[#allocation2 + $0x50] sm:$0xff] %v2979
        %3028 = vst [vmem:[#allocation2 + $0x58] sm:$0xff] %v2980
        %3029 = vst [vmem:[#allocation2 + $0x60] sm:$0xff] %v2981
        %3030 = vst [vmem:[#allocation2 + $0x68] sm:$0xff] %v2982
        %3031 = vst [vmem:[#allocation2 + $0x70] sm:$0xff] %v2983
        %3032 = vst [vmem:[#allocation2 + $0x78] sm:$0xff] %v2984
        %3033 = vst [vmem:[#allocation2 + $0x80] sm:$0xff] %v2985
        %3034 = vst [vmem:[#allocation2 + $0x88] sm:$0xff] %v2986
        %3035 = vst [vmem:[#allocation2 + $0x90] sm:$0xff] %v2987
        %3036 = vst [vmem:[#allocation2 + $0x98] sm:$0xff] %v2988
        %3037 = vst [vmem:[#allocation2 + $0xa0] sm:$0xff] %v2989
        %3038 = vst [vmem:[#allocation2 + $0xa8] sm:$0xff] %v2990
        %3039 = vst [vmem:[#allocation2 + $0xb0] sm:$0xff] %v2991
        %3040 = vst [vmem:[#allocation2 + $0xb8] sm:$0xff] %v2992
        %3041 = vst [vmem:[#allocation2 + $0xc0] sm:$0xff] %v2993
        %3042 = vst [vmem:[#allocation2 + $0xc8] sm:$0xff] %v2994
        %3043 = vst [vmem:[#allocation2 + $0xd0] sm:$0xff] %v2995
        %3044 = vst [vmem:[#allocation2 + $0xd8] sm:$0xff] %v2996
        %3045 = vst [vmem:[#allocation2 + $0xe0] sm:$0xff] %v2997
        %3046 = vst [vmem:[#allocation2 + $0xe8] sm:$0xff] %v2998
        %3047 = vst [vmem:[#allocation2 + $0xf0] sm:$0xff] %v2999
        %3048 = vst [vmem:[#allocation2 + $0xf8] sm:$0xff] %v3000
        %3049 = vst [vmem:[#allocation2 + $0x100] sm:$0xff] %v3001
        %3050 = vst [vmem:[#allocation2 + $0x108] sm:$0xff] %v3002
        %3051 = vst [vmem:[#allocation2 + $0x110] sm:$0xff] %v3003
        %3052 = vst [vmem:[#allocation2 + $0x118] sm:$0xff] %v3004
        %3053 = vst [vmem:[#allocation2 + $0x120] sm:$0xff] %v3005
        %3054 = vst [vmem:[#allocation2 + $0x128] sm:$0xff] %v3006
        %3055 = vst [vmem:[#allocation2 + $0x130] sm:$0xff] %v3007
        %3056 = vst [vmem:[#allocation2 + $0x138] sm:$0xff] %v3008
        %3057 = vst [vmem:[#allocation2 + $0x140] sm:$0xff] %v3009
        %3058 = vst [vmem:[#allocation2 + $0x148] sm:$0xff] %v3010
        %3059 = vst [vmem:[#allocation2 + $0x150] sm:$0xff] %v3011
        %3060 = vst [vmem:[#allocation2 + $0x158] sm:$0xff] %v3012
        %3061 = vst [vmem:[#allocation2 + $0x160] sm:$0xff] %v3013
        %3062 = vst [vmem:[#allocation2 + $0x168] sm:$0xff] %v3014
        %3063 = vst [vmem:[#allocation2 + $0x170] sm:$0xff] %v3015
        %3064 = vst [vmem:[#allocation2 + $0x178] sm:$0xff] %v3016
        %v3065 = vrot.slane %v244, 2
        %v3066 = vrot.slane %v245, 2
        %v3067 = vrot.slane %v246, 2
        %v3068 = vsel %vm1491, %v3066, %v3067
        %v3069 = vsel %vm1491, %v3065, %v3066
        %v3070 = vsel %vm1491, %v1490, %v3065
        %v3071 = vsel %vm1491, %v3067, %v1446
        %s3072 = scalar_lea.vmem %s195, 40
        %v3073 = vld [vmem:[%s3072] sm:$0xff]
        %v3075 = vsel %vm251, %v3070, 0
        %v3078 = vsel %vm251, %v3069, 0
        %v3081 = vsel %vm251, %v3068, 0
        %v3084 = vsel %vm251, %v3071, 0
        %3086 = vmatprep.subr.mxu0 0.0
        %3087 = vmatpush1.msra.mxu0 0.0
        %3088 = vmatprep.subr.mxu0 0.0
        %3089 = vmatpush1.msra.mxu0 0.0
        %3090 = vmatprep.subr.mxu0 0.0
        %3091 = vmatpush1.msra.mxu0 0.0
        %3092 = vmatprep.subr.mxu0 0.0
        %3093 = vmatpush1.msra.mxu0 0.0
        %3094 = vmatprep.subr.mxu0 0.0
        %3095 = vmatpush1.msra.mxu0 0.0
        %3096 = vmatprep.subr.mxu0 0.0
        %3097 = vmatpush1.msra.mxu0 0.0
        %3098 = vmatprep.subr.mxu0 0.0
        %3099 = vmatpush1.msra.mxu0 0.0
        %3100 = vmatprep.subr.mxu0 0.0
        %3101 = vmatpush1.msra.mxu0 0.0
        %3102 = vmatprep.subr.mxu0 0.0
        %3103 = vmatpush1.msra.mxu0 0.0
        %3104 = vmatprep.subr.mxu0 0.0
        %3105 = vmatpush1.msra.mxu0 0.0
        %3106 = vmatprep.subr.mxu0 0.0
        %3107 = vmatpush1.msra.mxu0 0.0
        %3108 = vmatprep.subr.mxu0 0.0
        %3109 = vmatpush1.msra.mxu0 0.0
        %3110 = vmatprep.subr.mxu0 0.0
        %3111 = vmatpush1.msra.mxu0 0.0
        %3112 = vmatprep.subr.mxu0 0.0
        %3113 = vmatpush1.msra.mxu0 0.0
        %3114 = vmatprep.subr.mxu0 0.0
        %3115 = vmatpush1.msra.mxu0 0.0
        %3116 = vmatprep.subr.mxu0 0.0
        %3117 = vmatpush1.msra.mxu0 %v3073
        %3118 = vmatprep.subr.mxu0 0.0
        %3119 = vmatpush2.msra.mxu0 0.0
        %3120 = vmatprep.subr.mxu0 0.0
        %3121 = vmatpush2.msra.mxu0 0.0
        %3122 = vmatprep.subr.mxu0 0.0
        %3123 = vmatpush2.msra.mxu0 0.0
        %3124 = vmatprep.subr.mxu0 0.0
        %3125 = vmatpush2.msra.mxu0 0.0
        %3126 = vmatprep.subr.mxu0 0.0
        %3127 = vmatpush2.msra.mxu0 0.0
        %3128 = vmatprep.subr.mxu0 0.0
        %3129 = vmatpush2.msra.mxu0 0.0
        %3130 = vmatprep.subr.mxu0 0.0
        %3131 = vmatpush2.msra.mxu0 0.0
        %3132 = vmatprep.subr.mxu0 0.0
        %3133 = vmatpush2.msra.mxu0 0.0
        %3134 = vmatprep.subr.mxu0 0.0
        %3135 = vmatpush2.msra.mxu0 0.0
        %3136 = vmatprep.subr.mxu0 0.0
        %3137 = vmatpush2.msra.mxu0 0.0
        %3138 = vmatprep.subr.mxu0 0.0
        %3139 = vmatpush2.msra.mxu0 0.0
        %3140 = vmatprep.subr.mxu0 0.0
        %3141 = vmatpush2.msra.mxu0 0.0
        %3142 = vmatprep.subr.mxu0 0.0
        %3143 = vmatpush2.msra.mxu0 0.0
        %3144 = vmatprep.subr.mxu0 0.0
        %3145 = vmatpush2.msra.mxu0 0.0
        %3146 = vmatprep.subr.mxu0 0.0
        %3147 = vmatpush2.msra.mxu0 0.0
        %3148 = vmatprep.subr.mxu0 0.0
        %3149 = vmatpush2.msra.mxu0 0.0
        %3150 = vmatprep.mubr.f32.mxu0 0.0
        %3151 = vmatmul.mubr.f32.gmra.mxu0 %v1552
        %v3152 = vpop.f32.mrf.mxu0
        %v3153 = vadd.f32 0.0, %v3152
        %v3154 = vpop.f32.mrf.mxu0
        %3155 = vmatprep.mubr.f32.mxu0 0.0
        %3156 = vmatmul.mubr.f32.gmra.mxu0 %v1555
        %v3157 = vpop.f32.mrf.mxu0
        %v3158 = vadd.f32 0.0, %v3157
        %v3159 = vpop.f32.mrf.mxu0
        %3160 = vmatprep.mubr.f32.mxu0 0.0
        %3161 = vmatmul.mubr.f32.gmra.mxu0 %v1558
        %v3162 = vpop.f32.mrf.mxu0
        %v3163 = vadd.f32 0.0, %v3162
        %v3164 = vpop.f32.mrf.mxu0
        %3165 = vmatprep.mubr.f32.mxu0 0.0
        %3166 = vmatmul.mubr.f32.gmra.mxu0 %v1561
        %v3167 = vpop.f32.mrf.mxu0
        %v3168 = vadd.f32 0.0, %v3167
        %v3169 = vpop.f32.mrf.mxu0
        %3170 = vmatprep.mubr.f32.mxu0 0.0
        %3171 = vmatmul.mubr.f32.gmra.mxu0 %v1564
        %v3172 = vpop.f32.mrf.mxu0
        %v3173 = vadd.f32 0.0, %v3172
        %v3174 = vpop.f32.mrf.mxu0
        %3175 = vmatprep.mubr.f32.mxu0 0.0
        %3176 = vmatmul.mubr.f32.gmra.mxu0 %v1567
        %v3177 = vpop.f32.mrf.mxu0
        %v3178 = vadd.f32 0.0, %v3177
        %v3179 = vpop.f32.mrf.mxu0
        %3180 = vmatprep.mubr.f32.mxu0 0.0
        %3181 = vmatmul.mubr.f32.gmra.mxu0 %v1570
        %v3182 = vpop.f32.mrf.mxu0
        %v3183 = vadd.f32 0.0, %v3182
        %v3184 = vpop.f32.mrf.mxu0
        %3185 = vmatprep.mubr.f32.mxu0 0.0
        %3186 = vmatmul.mubr.f32.gmra.mxu0 %v1573
        %v3187 = vpop.f32.mrf.mxu0
        %v3188 = vadd.f32 0.0, %v3187
        %v3189 = vpop.f32.mrf.mxu0
        %3190 = vmatprep.mubr.f32.mxu0 0.0
        %3191 = vmatmul.mubr.f32.gmra.mxu0 %v1576
        %v3192 = vpop.f32.mrf.mxu0
        %v3193 = vadd.f32 0.0, %v3192
        %v3194 = vpop.f32.mrf.mxu0
        %3195 = vmatprep.mubr.f32.mxu0 0.0
        %3196 = vmatmul.mubr.f32.gmra.mxu0 %v1579
        %v3197 = vpop.f32.mrf.mxu0
        %v3198 = vadd.f32 0.0, %v3197
        %v3199 = vpop.f32.mrf.mxu0
        %3200 = vmatprep.mubr.f32.mxu0 0.0
        %3201 = vmatmul.mubr.f32.gmra.mxu0 %v1582
        %v3202 = vpop.f32.mrf.mxu0
        %v3203 = vadd.f32 0.0, %v3202
        %v3204 = vpop.f32.mrf.mxu0
        %3205 = vmatprep.mubr.f32.mxu0 0.0
        %3206 = vmatmul.mubr.f32.gmra.mxu0 %v1585
        %v3207 = vpop.f32.mrf.mxu0
        %v3208 = vadd.f32 0.0, %v3207
        %v3209 = vpop.f32.mrf.mxu0
        %3210 = vmatprep.mubr.f32.mxu0 0.0
        %3211 = vmatmul.mubr.f32.gmra.mxu0 %v1588
        %v3212 = vpop.f32.mrf.mxu0
        %v3213 = vadd.f32 0.0, %v3212
        %v3214 = vpop.f32.mrf.mxu0
        %3215 = vmatprep.mubr.f32.mxu0 0.0
        %3216 = vmatmul.mubr.f32.gmra.mxu0 %v1591
        %v3217 = vpop.f32.mrf.mxu0
        %v3218 = vadd.f32 0.0, %v3217
        %v3219 = vpop.f32.mrf.mxu0
        %3220 = vmatprep.mubr.f32.mxu0 0.0
        %3221 = vmatmul.mubr.f32.gmra.mxu0 %v1594
        %v3222 = vpop.f32.mrf.mxu0
        %v3223 = vadd.f32 0.0, %v3222
        %v3224 = vpop.f32.mrf.mxu0
        %3225 = vmatprep.mubr.f32.mxu0 0.0
        %3226 = vmatmul.mubr.f32.gmra.mxu0 %v1597
        %v3227 = vpop.f32.mrf.mxu0
        %v3228 = vadd.f32 0.0, %v3227
        %v3229 = vpop.f32.mrf.mxu0
        %3230 = vmatprep.mubr.f32.mxu0 0.0
        %3231 = vmatmul.mubr.f32.gmra.mxu0 %v1600
        %v3232 = vpop.f32.mrf.mxu0
        %v3233 = vadd.f32 0.0, %v3232
        %v3234 = vpop.f32.mrf.mxu0
        %3235 = vmatprep.mubr.f32.mxu0 0.0
        %3236 = vmatmul.mubr.f32.gmra.mxu0 %v1603
        %v3237 = vpop.f32.mrf.mxu0
        %v3238 = vadd.f32 0.0, %v3237
        %v3239 = vpop.f32.mrf.mxu0
        %3240 = vmatprep.mubr.f32.mxu0 0.0
        %3241 = vmatmul.mubr.f32.gmra.mxu0 %v1606
        %v3242 = vpop.f32.mrf.mxu0
        %v3243 = vadd.f32 0.0, %v3242
        %v3244 = vpop.f32.mrf.mxu0
        %3245 = vmatprep.mubr.f32.mxu0 0.0
        %3246 = vmatmul.mubr.f32.gmra.mxu0 %v1609
        %v3247 = vpop.f32.mrf.mxu0
        %v3248 = vadd.f32 0.0, %v3247
        %v3249 = vpop.f32.mrf.mxu0
        %3250 = vmatprep.mubr.f32.mxu0 0.0
        %3251 = vmatmul.mubr.f32.gmra.mxu0 %v1612
        %v3252 = vpop.f32.mrf.mxu0
        %v3253 = vadd.f32 0.0, %v3252
        %v3254 = vpop.f32.mrf.mxu0
        %3255 = vmatprep.mubr.f32.mxu0 0.0
        %3256 = vmatmul.mubr.f32.gmra.mxu0 %v1615
        %v3257 = vpop.f32.mrf.mxu0
        %v3258 = vadd.f32 0.0, %v3257
        %v3259 = vpop.f32.mrf.mxu0
        %3260 = vmatprep.mubr.f32.mxu0 0.0
        %3261 = vmatmul.mubr.f32.gmra.mxu0 %v1618
        %v3262 = vpop.f32.mrf.mxu0
        %v3263 = vadd.f32 0.0, %v3262
        %v3264 = vpop.f32.mrf.mxu0
        %3265 = vmatprep.mubr.f32.mxu0 0.0
        %3266 = vmatmul.mubr.f32.gmra.mxu0 %v1621
        %v3267 = vpop.f32.mrf.mxu0
        %v3268 = vadd.f32 0.0, %v3267
        %v3269 = vpop.f32.mrf.mxu0
        %3270 = vmatprep.mubr.f32.mxu0 0.0
        %3271 = vmatmul.mubr.f32.gmra.mxu0 %v1624
        %v3272 = vpop.f32.mrf.mxu0
        %v3273 = vadd.f32 0.0, %v3272
        %v3274 = vpop.f32.mrf.mxu0
        %3275 = vmatprep.mubr.f32.mxu0 0.0
        %3276 = vmatmul.mubr.f32.gmra.mxu0 %v1627
        %v3277 = vpop.f32.mrf.mxu0
        %v3278 = vadd.f32 0.0, %v3277
        %v3279 = vpop.f32.mrf.mxu0
        %3280 = vmatprep.mubr.f32.mxu0 0.0
        %3281 = vmatmul.mubr.f32.gmra.mxu0 %v1630
        %v3282 = vpop.f32.mrf.mxu0
        %v3283 = vadd.f32 0.0, %v3282
        %v3284 = vpop.f32.mrf.mxu0
        %3285 = vmatprep.mubr.f32.mxu0 0.0
        %3286 = vmatmul.mubr.f32.gmra.mxu0 %v1633
        %v3287 = vpop.f32.mrf.mxu0
        %v3288 = vadd.f32 0.0, %v3287
        %v3289 = vpop.f32.mrf.mxu0
        %3290 = vmatprep.mubr.f32.mxu0 0.0
        %3291 = vmatmul.mubr.f32.gmra.mxu0 %v1636
        %v3292 = vpop.f32.mrf.mxu0
        %v3293 = vadd.f32 0.0, %v3292
        %v3294 = vpop.f32.mrf.mxu0
        %3295 = vmatprep.mubr.f32.mxu0 0.0
        %3296 = vmatmul.mubr.f32.gmra.mxu0 %v1639
        %v3297 = vpop.f32.mrf.mxu0
        %v3298 = vadd.f32 0.0, %v3297
        %v3299 = vpop.f32.mrf.mxu0
        %3300 = vmatprep.mubr.f32.mxu0 0.0
        %3301 = vmatmul.mubr.f32.gmra.mxu0 %v1642
        %v3302 = vpop.f32.mrf.mxu0
        %v3303 = vadd.f32 0.0, %v3302
        %v3304 = vpop.f32.mrf.mxu0
        %3305 = vmatprep.mubr.f32.mxu0 0.0
        %3306 = vmatmul.mubr.f32.gmra.mxu0 %v1645
        %v3307 = vpop.f32.mrf.mxu0
        %v3308 = vadd.f32 0.0, %v3307
        %v3309 = vpop.f32.mrf.mxu0
        %3310 = vmatprep.mubr.f32.mxu0 0.0
        %3311 = vmatmul.mubr.f32.gmra.mxu0 %v1648
        %v3312 = vpop.f32.mrf.mxu0
        %v3313 = vadd.f32 0.0, %v3312
        %v3314 = vpop.f32.mrf.mxu0
        %3315 = vmatprep.mubr.f32.mxu0 0.0
        %3316 = vmatmul.mubr.f32.gmra.mxu0 %v1651
        %v3317 = vpop.f32.mrf.mxu0
        %v3318 = vadd.f32 0.0, %v3317
        %v3319 = vpop.f32.mrf.mxu0
        %3320 = vmatprep.mubr.f32.mxu0 0.0
        %3321 = vmatmul.mubr.f32.gmra.mxu0 %v1654
        %v3322 = vpop.f32.mrf.mxu0
        %v3323 = vadd.f32 0.0, %v3322
        %v3324 = vpop.f32.mrf.mxu0
        %3325 = vmatprep.mubr.f32.mxu0 0.0
        %3326 = vmatmul.mubr.f32.gmra.mxu0 %v1657
        %v3327 = vpop.f32.mrf.mxu0
        %v3328 = vadd.f32 0.0, %v3327
        %v3329 = vpop.f32.mrf.mxu0
        %3330 = vmatprep.mubr.f32.mxu0 0.0
        %3331 = vmatmul.mubr.f32.gmra.mxu0 %v1660
        %v3332 = vpop.f32.mrf.mxu0
        %v3333 = vadd.f32 0.0, %v3332
        %v3334 = vpop.f32.mrf.mxu0
        %3335 = vmatprep.mubr.f32.mxu0 0.0
        %3336 = vmatmul.mubr.f32.gmra.mxu0 %v1663
        %v3337 = vpop.f32.mrf.mxu0
        %v3338 = vadd.f32 0.0, %v3337
        %v3339 = vpop.f32.mrf.mxu0
        %3340 = vmatprep.mubr.f32.mxu0 0.0
        %3341 = vmatmul.mubr.f32.gmra.mxu0 %v1666
        %v3342 = vpop.f32.mrf.mxu0
        %v3343 = vadd.f32 0.0, %v3342
        %v3344 = vpop.f32.mrf.mxu0
        %3345 = vmatprep.mubr.f32.mxu0 0.0
        %3346 = vmatmul.mubr.f32.gmra.mxu0 %v1669
        %v3347 = vpop.f32.mrf.mxu0
        %v3348 = vadd.f32 0.0, %v3347
        %v3349 = vpop.f32.mrf.mxu0
        %3350 = vmatprep.mubr.f32.mxu0 0.0
        %3351 = vmatmul.mubr.f32.gmra.mxu0 %v1672
        %v3352 = vpop.f32.mrf.mxu0
        %v3353 = vadd.f32 0.0, %v3352
        %v3354 = vpop.f32.mrf.mxu0
        %3355 = vmatprep.mubr.f32.mxu0 0.0
        %3356 = vmatmul.mubr.f32.gmra.mxu0 %v1675
        %v3357 = vpop.f32.mrf.mxu0
        %v3358 = vadd.f32 0.0, %v3357
        %v3359 = vpop.f32.mrf.mxu0
        %3360 = vmatprep.mubr.f32.mxu0 0.0
        %3361 = vmatmul.mubr.f32.gmra.mxu0 %v1678
        %v3362 = vpop.f32.mrf.mxu0
        %v3363 = vadd.f32 0.0, %v3362
        %v3364 = vpop.f32.mrf.mxu0
        %3365 = vmatprep.mubr.f32.mxu0 0.0
        %3366 = vmatmul.mubr.f32.gmra.mxu0 %v1681
        %v3367 = vpop.f32.mrf.mxu0
        %v3368 = vadd.f32 0.0, %v3367
        %v3369 = vpop.f32.mrf.mxu0
        %3370 = vmatprep.mubr.f32.mxu0 0.0
        %3371 = vmatmul.mubr.f32.gmra.mxu0 %v3075
        %v3372 = vpop.f32.mrf.mxu0
        %v3373 = vadd.f32 0.0, %v3372
        %v3374 = vpop.f32.mrf.mxu0
        %3375 = vmatprep.mubr.f32.mxu0 0.0
        %3376 = vmatmul.mubr.f32.gmra.mxu0 %v3078
        %v3377 = vpop.f32.mrf.mxu0
        %v3378 = vadd.f32 0.0, %v3377
        %v3379 = vpop.f32.mrf.mxu0
        %3380 = vmatprep.mubr.f32.mxu0 0.0
        %3381 = vmatmul.mubr.f32.gmra.mxu0 %v3081
        %v3382 = vpop.f32.mrf.mxu0
        %v3383 = vadd.f32 0.0, %v3382
        %v3384 = vpop.f32.mrf.mxu0
        %3385 = vmatprep.mubr.f32.mxu0 0.0
        %3386 = vmatmul.mubr.f32.gmra.mxu0 %v3084
        %v3387 = vpop.f32.mrf.mxu0
        %v3388 = vadd.f32 0.0, %v3387
        %v3389 = vpop.f32.mrf.mxu0
        %3390 = vdwg.mxu0
        %v3391 = vld [vmem:[#allocation2] sm:$0xff]
        %v3392 = vld [vmem:[#allocation2 + $0x8] sm:$0xff]
        %v3393 = vld [vmem:[#allocation2 + $0x10] sm:$0xff]
        %v3394 = vld [vmem:[#allocation2 + $0x18] sm:$0xff]
        %v3395 = vld [vmem:[#allocation2 + $0x20] sm:$0xff]
        %v3396 = vld [vmem:[#allocation2 + $0x28] sm:$0xff]
        %v3397 = vld [vmem:[#allocation2 + $0x30] sm:$0xff]
        %v3398 = vld [vmem:[#allocation2 + $0x38] sm:$0xff]
        %v3399 = vld [vmem:[#allocation2 + $0x40] sm:$0xff]
        %v3400 = vld [vmem:[#allocation2 + $0x48] sm:$0xff]
        %v3401 = vld [vmem:[#allocation2 + $0x50] sm:$0xff]
        %v3402 = vld [vmem:[#allocation2 + $0x58] sm:$0xff]
        %v3403 = vld [vmem:[#allocation2 + $0x60] sm:$0xff]
        %v3404 = vld [vmem:[#allocation2 + $0x68] sm:$0xff]
        %v3405 = vld [vmem:[#allocation2 + $0x70] sm:$0xff]
        %v3406 = vld [vmem:[#allocation2 + $0x78] sm:$0xff]
        %v3407 = vld [vmem:[#allocation2 + $0x80] sm:$0xff]
        %v3408 = vld [vmem:[#allocation2 + $0x88] sm:$0xff]
        %v3409 = vld [vmem:[#allocation2 + $0x90] sm:$0xff]
        %v3410 = vld [vmem:[#allocation2 + $0x98] sm:$0xff]
        %v3411 = vld [vmem:[#allocation2 + $0xa0] sm:$0xff]
        %v3412 = vld [vmem:[#allocation2 + $0xa8] sm:$0xff]
        %v3413 = vld [vmem:[#allocation2 + $0xb0] sm:$0xff]
        %v3414 = vld [vmem:[#allocation2 + $0xb8] sm:$0xff]
        %v3415 = vld [vmem:[#allocation2 + $0xc0] sm:$0xff]
        %v3416 = vld [vmem:[#allocation2 + $0xc8] sm:$0xff]
        %v3417 = vld [vmem:[#allocation2 + $0xd0] sm:$0xff]
        %v3418 = vld [vmem:[#allocation2 + $0xd8] sm:$0xff]
        %v3419 = vld [vmem:[#allocation2 + $0xe0] sm:$0xff]
        %v3420 = vld [vmem:[#allocation2 + $0xe8] sm:$0xff]
        %v3421 = vld [vmem:[#allocation2 + $0xf0] sm:$0xff]
        %v3422 = vld [vmem:[#allocation2 + $0xf8] sm:$0xff]
        %v3423 = vld [vmem:[#allocation2 + $0x100] sm:$0xff]
        %v3424 = vld [vmem:[#allocation2 + $0x108] sm:$0xff]
        %v3425 = vld [vmem:[#allocation2 + $0x110] sm:$0xff]
        %v3426 = vld [vmem:[#allocation2 + $0x118] sm:$0xff]
        %v3427 = vld [vmem:[#allocation2 + $0x120] sm:$0xff]
        %v3428 = vld [vmem:[#allocation2 + $0x128] sm:$0xff]
        %v3429 = vld [vmem:[#allocation2 + $0x130] sm:$0xff]
        %v3430 = vld [vmem:[#allocation2 + $0x138] sm:$0xff]
        %v3431 = vld [vmem:[#allocation2 + $0x140] sm:$0xff]
        %v3432 = vld [vmem:[#allocation2 + $0x148] sm:$0xff]
        %v3433 = vld [vmem:[#allocation2 + $0x150] sm:$0xff]
        %v3434 = vld [vmem:[#allocation2 + $0x158] sm:$0xff]
        %v3435 = vld [vmem:[#allocation2 + $0x160] sm:$0xff]
        %v3436 = vld [vmem:[#allocation2 + $0x168] sm:$0xff]
        %v3437 = vld [vmem:[#allocation2 + $0x170] sm:$0xff]
        %v3438 = vld [vmem:[#allocation2 + $0x178] sm:$0xff]
        %v3439 = vadd.f32 %v3391, %v3153
        %v3440 = vadd.f32 %v3392, %v3158
        %v3441 = vadd.f32 %v3393, %v3163
        %v3442 = vadd.f32 %v3394, %v3168
        %v3443 = vadd.f32 %v3395, %v3173
        %v3444 = vadd.f32 %v3396, %v3178
        %v3445 = vadd.f32 %v3397, %v3183
        %v3446 = vadd.f32 %v3398, %v3188
        %v3447 = vadd.f32 %v3399, %v3193
        %v3448 = vadd.f32 %v3400, %v3198
        %v3449 = vadd.f32 %v3401, %v3203
        %v3450 = vadd.f32 %v3402, %v3208
        %v3451 = vadd.f32 %v3403, %v3213
        %v3452 = vadd.f32 %v3404, %v3218
        %v3453 = vadd.f32 %v3405, %v3223
        %v3454 = vadd.f32 %v3406, %v3228
        %v3455 = vadd.f32 %v3407, %v3233
        %v3456 = vadd.f32 %v3408, %v3238
        %v3457 = vadd.f32 %v3409, %v3243
        %v3458 = vadd.f32 %v3410, %v3248
        %v3459 = vadd.f32 %v3411, %v3253
        %v3460 = vadd.f32 %v3412, %v3258
        %v3461 = vadd.f32 %v3413, %v3263
        %v3462 = vadd.f32 %v3414, %v3268
        %v3463 = vadd.f32 %v3415, %v3273
        %v3464 = vadd.f32 %v3416, %v3278
        %v3465 = vadd.f32 %v3417, %v3283
        %v3466 = vadd.f32 %v3418, %v3288
        %v3467 = vadd.f32 %v3419, %v3293
        %v3468 = vadd.f32 %v3420, %v3298
        %v3469 = vadd.f32 %v3421, %v3303
        %v3470 = vadd.f32 %v3422, %v3308
        %v3471 = vadd.f32 %v3423, %v3313
        %v3472 = vadd.f32 %v3424, %v3318
        %v3473 = vadd.f32 %v3425, %v3323
        %v3474 = vadd.f32 %v3426, %v3328
        %v3475 = vadd.f32 %v3427, %v3333
        %v3476 = vadd.f32 %v3428, %v3338
        %v3477 = vadd.f32 %v3429, %v3343
        %v3478 = vadd.f32 %v3430, %v3348
        %v3479 = vadd.f32 %v3431, %v3353
        %v3480 = vadd.f32 %v3432, %v3358
        %v3481 = vadd.f32 %v3433, %v3363
        %v3482 = vadd.f32 %v3434, %v3368
        %v3483 = vadd.f32 %v3435, %v3373
        %v3484 = vadd.f32 %v3436, %v3378
        %v3485 = vadd.f32 %v3437, %v3383
        %v3486 = vadd.f32 %v3438, %v3388
        %3487 = vst [vmem:[#allocation2] sm:$0xff] %v3439
        %3488 = vst [vmem:[#allocation2 + $0x8] sm:$0xff] %v3440
        %3489 = vst [vmem:[#allocation2 + $0x10] sm:$0xff] %v3441
        %3490 = vst [vmem:[#allocation2 + $0x18] sm:$0xff] %v3442
        %3491 = vst [vmem:[#allocation2 + $0x20] sm:$0xff] %v3443
        %3492 = vst [vmem:[#allocation2 + $0x28] sm:$0xff] %v3444
        %3493 = vst [vmem:[#allocation2 + $0x30] sm:$0xff] %v3445
        %3494 = vst [vmem:[#allocation2 + $0x38] sm:$0xff] %v3446
        %3495 = vst [vmem:[#allocation2 + $0x40] sm:$0xff] %v3447
        %3496 = vst [vmem:[#allocation2 + $0x48] sm:$0xff] %v3448
        %3497 = vst [vmem:[#allocation2 + $0x50] sm:$0xff] %v3449
        %3498 = vst [vmem:[#allocation2 + $0x58] sm:$0xff] %v3450
        %3499 = vst [vmem:[#allocation2 + $0x60] sm:$0xff] %v3451
        %3500 = vst [vmem:[#allocation2 + $0x68] sm:$0xff] %v3452
        %3501 = vst [vmem:[#allocation2 + $0x70] sm:$0xff] %v3453
        %3502 = vst [vmem:[#allocation2 + $0x78] sm:$0xff] %v3454
        %3503 = vst [vmem:[#allocation2 + $0x80] sm:$0xff] %v3455
        %3504 = vst [vmem:[#allocation2 + $0x88] sm:$0xff] %v3456
        %3505 = vst [vmem:[#allocation2 + $0x90] sm:$0xff] %v3457
        %3506 = vst [vmem:[#allocation2 + $0x98] sm:$0xff] %v3458
        %3507 = vst [vmem:[#allocation2 + $0xa0] sm:$0xff] %v3459
        %3508 = vst [vmem:[#allocation2 + $0xa8] sm:$0xff] %v3460
        %3509 = vst [vmem:[#allocation2 + $0xb0] sm:$0xff] %v3461
        %3510 = vst [vmem:[#allocation2 + $0xb8] sm:$0xff] %v3462
        %3511 = vst [vmem:[#allocation2 + $0xc0] sm:$0xff] %v3463
        %3512 = vst [vmem:[#allocation2 + $0xc8] sm:$0xff] %v3464
        %3513 = vst [vmem:[#allocation2 + $0xd0] sm:$0xff] %v3465
        %3514 = vst [vmem:[#allocation2 + $0xd8] sm:$0xff] %v3466
        %3515 = vst [vmem:[#allocation2 + $0xe0] sm:$0xff] %v3467
        %3516 = vst [vmem:[#allocation2 + $0xe8] sm:$0xff] %v3468
        %3517 = vst [vmem:[#allocation2 + $0xf0] sm:$0xff] %v3469
        %3518 = vst [vmem:[#allocation2 + $0xf8] sm:$0xff] %v3470
        %3519 = vst [vmem:[#allocation2 + $0x100] sm:$0xff] %v3471
        %3520 = vst [vmem:[#allocation2 + $0x108] sm:$0xff] %v3472
        %3521 = vst [vmem:[#allocation2 + $0x110] sm:$0xff] %v3473
        %3522 = vst [vmem:[#allocation2 + $0x118] sm:$0xff] %v3474
        %3523 = vst [vmem:[#allocation2 + $0x120] sm:$0xff] %v3475
        %3524 = vst [vmem:[#allocation2 + $0x128] sm:$0xff] %v3476
        %3525 = vst [vmem:[#allocation2 + $0x130] sm:$0xff] %v3477
        %3526 = vst [vmem:[#allocation2 + $0x138] sm:$0xff] %v3478
        %3527 = vst [vmem:[#allocation2 + $0x140] sm:$0xff] %v3479
        %3528 = vst [vmem:[#allocation2 + $0x148] sm:$0xff] %v3480
        %3529 = vst [vmem:[#allocation2 + $0x150] sm:$0xff] %v3481
        %3530 = vst [vmem:[#allocation2 + $0x158] sm:$0xff] %v3482
        %3531 = vst [vmem:[#allocation2 + $0x160] sm:$0xff] %v3483
        %3532 = vst [vmem:[#allocation2 + $0x168] sm:$0xff] %v3484
        %3533 = vst [vmem:[#allocation2 + $0x170] sm:$0xff] %v3485
        %3534 = vst [vmem:[#allocation2 + $0x178] sm:$0xff] %v3486
        %s3535 = scalar_lea.vmem %s195, 48
        %v3536 = vld [vmem:[%s3535] sm:$0xff]
        %v3538 = vsel %vm251, %v247, 0
        %v3541 = vsel %vm251, %v248, 0
        %v3544 = vsel %vm251, %v249, 0
        %3546 = vmatprep.subr.mxu0 0.0
        %3547 = vmatpush1.msra.mxu0 0.0
        %3548 = vmatprep.subr.mxu0 0.0
        %3549 = vmatpush1.msra.mxu0 0.0
        %3550 = vmatprep.subr.mxu0 0.0
        %3551 = vmatpush1.msra.mxu0 0.0
        %3552 = vmatprep.subr.mxu0 0.0
        %3553 = vmatpush1.msra.mxu0 0.0
        %3554 = vmatprep.subr.mxu0 0.0
        %3555 = vmatpush1.msra.mxu0 0.0
        %3556 = vmatprep.subr.mxu0 0.0
        %3557 = vmatpush1.msra.mxu0 0.0
        %3558 = vmatprep.subr.mxu0 0.0
        %3559 = vmatpush1.msra.mxu0 0.0
        %3560 = vmatprep.subr.mxu0 0.0
        %3561 = vmatpush1.msra.mxu0 0.0
        %3562 = vmatprep.subr.mxu0 0.0
        %3563 = vmatpush1.msra.mxu0 0.0
        %3564 = vmatprep.subr.mxu0 0.0
        %3565 = vmatpush1.msra.mxu0 0.0
        %3566 = vmatprep.subr.mxu0 0.0
        %3567 = vmatpush1.msra.mxu0 0.0
        %3568 = vmatprep.subr.mxu0 0.0
        %3569 = vmatpush1.msra.mxu0 0.0
        %3570 = vmatprep.subr.mxu0 0.0
        %3571 = vmatpush1.msra.mxu0 0.0
        %3572 = vmatprep.subr.mxu0 0.0
        %3573 = vmatpush1.msra.mxu0 0.0
        %3574 = vmatprep.subr.mxu0 0.0
        %3575 = vmatpush1.msra.mxu0 0.0
        %3576 = vmatprep.subr.mxu0 0.0
        %3577 = vmatpush1.msra.mxu0 %v3536
        %3578 = vmatprep.subr.mxu0 0.0
        %3579 = vmatpush2.msra.mxu0 0.0
        %3580 = vmatprep.subr.mxu0 0.0
        %3581 = vmatpush2.msra.mxu0 0.0
        %3582 = vmatprep.subr.mxu0 0.0
        %3583 = vmatpush2.msra.mxu0 0.0
        %3584 = vmatprep.subr.mxu0 0.0
        %3585 = vmatpush2.msra.mxu0 0.0
        %3586 = vmatprep.subr.mxu0 0.0
        %3587 = vmatpush2.msra.mxu0 0.0
        %3588 = vmatprep.subr.mxu0 0.0
        %3589 = vmatpush2.msra.mxu0 0.0
        %3590 = vmatprep.subr.mxu0 0.0
        %3591 = vmatpush2.msra.mxu0 0.0
        %3592 = vmatprep.subr.mxu0 0.0
        %3593 = vmatpush2.msra.mxu0 0.0
        %3594 = vmatprep.subr.mxu0 0.0
        %3595 = vmatpush2.msra.mxu0 0.0
        %3596 = vmatprep.subr.mxu0 0.0
        %3597 = vmatpush2.msra.mxu0 0.0
        %3598 = vmatprep.subr.mxu0 0.0
        %3599 = vmatpush2.msra.mxu0 0.0
        %3600 = vmatprep.subr.mxu0 0.0
        %3601 = vmatpush2.msra.mxu0 0.0
        %3602 = vmatprep.subr.mxu0 0.0
        %3603 = vmatpush2.msra.mxu0 0.0
        %3604 = vmatprep.subr.mxu0 0.0
        %3605 = vmatpush2.msra.mxu0 0.0
        %3606 = vmatprep.subr.mxu0 0.0
        %3607 = vmatpush2.msra.mxu0 0.0
        %3608 = vmatprep.subr.mxu0 0.0
        %3609 = vmatpush2.msra.mxu0 0.0
        %3610 = vmatprep.mubr.f32.mxu0 0.0
        %3611 = vmatmul.mubr.f32.gmra.mxu0 %v271
        %v3612 = vpop.f32.mrf.mxu0
        %v3613 = vadd.f32 0.0, %v3612
        %v3614 = vpop.f32.mrf.mxu0
        %3615 = vmatprep.mubr.f32.mxu0 0.0
        %3616 = vmatmul.mubr.f32.gmra.mxu0 %v274
        %v3617 = vpop.f32.mrf.mxu0
        %v3618 = vadd.f32 0.0, %v3617
        %v3619 = vpop.f32.mrf.mxu0
        %3620 = vmatprep.mubr.f32.mxu0 0.0
        %3621 = vmatmul.mubr.f32.gmra.mxu0 %v277
        %v3622 = vpop.f32.mrf.mxu0
        %v3623 = vadd.f32 0.0, %v3622
        %v3624 = vpop.f32.mrf.mxu0
        %3625 = vmatprep.mubr.f32.mxu0 0.0
        %3626 = vmatmul.mubr.f32.gmra.mxu0 %v280
        %v3627 = vpop.f32.mrf.mxu0
        %v3628 = vadd.f32 0.0, %v3627
        %v3629 = vpop.f32.mrf.mxu0
        %3630 = vmatprep.mubr.f32.mxu0 0.0
        %3631 = vmatmul.mubr.f32.gmra.mxu0 %v283
        %v3632 = vpop.f32.mrf.mxu0
        %v3633 = vadd.f32 0.0, %v3632
        %v3634 = vpop.f32.mrf.mxu0
        %3635 = vmatprep.mubr.f32.mxu0 0.0
        %3636 = vmatmul.mubr.f32.gmra.mxu0 %v286
        %v3637 = vpop.f32.mrf.mxu0
        %v3638 = vadd.f32 0.0, %v3637
        %v3639 = vpop.f32.mrf.mxu0
        %3640 = vmatprep.mubr.f32.mxu0 0.0
        %3641 = vmatmul.mubr.f32.gmra.mxu0 %v289
        %v3642 = vpop.f32.mrf.mxu0
        %v3643 = vadd.f32 0.0, %v3642
        %v3644 = vpop.f32.mrf.mxu0
        %3645 = vmatprep.mubr.f32.mxu0 0.0
        %3646 = vmatmul.mubr.f32.gmra.mxu0 %v292
        %v3647 = vpop.f32.mrf.mxu0
        %v3648 = vadd.f32 0.0, %v3647
        %v3649 = vpop.f32.mrf.mxu0
        %3650 = vmatprep.mubr.f32.mxu0 0.0
        %3651 = vmatmul.mubr.f32.gmra.mxu0 %v295
        %v3652 = vpop.f32.mrf.mxu0
        %v3653 = vadd.f32 0.0, %v3652
        %v3654 = vpop.f32.mrf.mxu0
        %3655 = vmatprep.mubr.f32.mxu0 0.0
        %3656 = vmatmul.mubr.f32.gmra.mxu0 %v298
        %v3657 = vpop.f32.mrf.mxu0
        %v3658 = vadd.f32 0.0, %v3657
        %v3659 = vpop.f32.mrf.mxu0
        %3660 = vmatprep.mubr.f32.mxu0 0.0
        %3661 = vmatmul.mubr.f32.gmra.mxu0 %v301
        %v3662 = vpop.f32.mrf.mxu0
        %v3663 = vadd.f32 0.0, %v3662
        %v3664 = vpop.f32.mrf.mxu0
        %3665 = vmatprep.mubr.f32.mxu0 0.0
        %3666 = vmatmul.mubr.f32.gmra.mxu0 %v304
        %v3667 = vpop.f32.mrf.mxu0
        %v3668 = vadd.f32 0.0, %v3667
        %v3669 = vpop.f32.mrf.mxu0
        %3670 = vmatprep.mubr.f32.mxu0 0.0
        %3671 = vmatmul.mubr.f32.gmra.mxu0 %v307
        %v3672 = vpop.f32.mrf.mxu0
        %v3673 = vadd.f32 0.0, %v3672
        %v3674 = vpop.f32.mrf.mxu0
        %3675 = vmatprep.mubr.f32.mxu0 0.0
        %3676 = vmatmul.mubr.f32.gmra.mxu0 %v310
        %v3677 = vpop.f32.mrf.mxu0
        %v3678 = vadd.f32 0.0, %v3677
        %v3679 = vpop.f32.mrf.mxu0
        %3680 = vmatprep.mubr.f32.mxu0 0.0
        %3681 = vmatmul.mubr.f32.gmra.mxu0 %v313
        %v3682 = vpop.f32.mrf.mxu0
        %v3683 = vadd.f32 0.0, %v3682
        %v3684 = vpop.f32.mrf.mxu0
        %3685 = vmatprep.mubr.f32.mxu0 0.0
        %3686 = vmatmul.mubr.f32.gmra.mxu0 %v316
        %v3687 = vpop.f32.mrf.mxu0
        %v3688 = vadd.f32 0.0, %v3687
        %v3689 = vpop.f32.mrf.mxu0
        %3690 = vmatprep.mubr.f32.mxu0 0.0
        %3691 = vmatmul.mubr.f32.gmra.mxu0 %v319
        %v3692 = vpop.f32.mrf.mxu0
        %v3693 = vadd.f32 0.0, %v3692
        %v3694 = vpop.f32.mrf.mxu0
        %3695 = vmatprep.mubr.f32.mxu0 0.0
        %3696 = vmatmul.mubr.f32.gmra.mxu0 %v322
        %v3697 = vpop.f32.mrf.mxu0
        %v3698 = vadd.f32 0.0, %v3697
        %v3699 = vpop.f32.mrf.mxu0
        %3700 = vmatprep.mubr.f32.mxu0 0.0
        %3701 = vmatmul.mubr.f32.gmra.mxu0 %v325
        %v3702 = vpop.f32.mrf.mxu0
        %v3703 = vadd.f32 0.0, %v3702
        %v3704 = vpop.f32.mrf.mxu0
        %3705 = vmatprep.mubr.f32.mxu0 0.0
        %3706 = vmatmul.mubr.f32.gmra.mxu0 %v328
        %v3707 = vpop.f32.mrf.mxu0
        %v3708 = vadd.f32 0.0, %v3707
        %v3709 = vpop.f32.mrf.mxu0
        %3710 = vmatprep.mubr.f32.mxu0 0.0
        %3711 = vmatmul.mubr.f32.gmra.mxu0 %v331
        %v3712 = vpop.f32.mrf.mxu0
        %v3713 = vadd.f32 0.0, %v3712
        %v3714 = vpop.f32.mrf.mxu0
        %3715 = vmatprep.mubr.f32.mxu0 0.0
        %3716 = vmatmul.mubr.f32.gmra.mxu0 %v334
        %v3717 = vpop.f32.mrf.mxu0
        %v3718 = vadd.f32 0.0, %v3717
        %v3719 = vpop.f32.mrf.mxu0
        %3720 = vmatprep.mubr.f32.mxu0 0.0
        %3721 = vmatmul.mubr.f32.gmra.mxu0 %v337
        %v3722 = vpop.f32.mrf.mxu0
        %v3723 = vadd.f32 0.0, %v3722
        %v3724 = vpop.f32.mrf.mxu0
        %3725 = vmatprep.mubr.f32.mxu0 0.0
        %3726 = vmatmul.mubr.f32.gmra.mxu0 %v340
        %v3727 = vpop.f32.mrf.mxu0
        %v3728 = vadd.f32 0.0, %v3727
        %v3729 = vpop.f32.mrf.mxu0
        %3730 = vmatprep.mubr.f32.mxu0 0.0
        %3731 = vmatmul.mubr.f32.gmra.mxu0 %v343
        %v3732 = vpop.f32.mrf.mxu0
        %v3733 = vadd.f32 0.0, %v3732
        %v3734 = vpop.f32.mrf.mxu0
        %3735 = vmatprep.mubr.f32.mxu0 0.0
        %3736 = vmatmul.mubr.f32.gmra.mxu0 %v346
        %v3737 = vpop.f32.mrf.mxu0
        %v3738 = vadd.f32 0.0, %v3737
        %v3739 = vpop.f32.mrf.mxu0
        %3740 = vmatprep.mubr.f32.mxu0 0.0
        %3741 = vmatmul.mubr.f32.gmra.mxu0 %v349
        %v3742 = vpop.f32.mrf.mxu0
        %v3743 = vadd.f32 0.0, %v3742
        %v3744 = vpop.f32.mrf.mxu0
        %3745 = vmatprep.mubr.f32.mxu0 0.0
        %3746 = vmatmul.mubr.f32.gmra.mxu0 %v352
        %v3747 = vpop.f32.mrf.mxu0
        %v3748 = vadd.f32 0.0, %v3747
        %v3749 = vpop.f32.mrf.mxu0
        %3750 = vmatprep.mubr.f32.mxu0 0.0
        %3751 = vmatmul.mubr.f32.gmra.mxu0 %v355
        %v3752 = vpop.f32.mrf.mxu0
        %v3753 = vadd.f32 0.0, %v3752
        %v3754 = vpop.f32.mrf.mxu0
        %3755 = vmatprep.mubr.f32.mxu0 0.0
        %3756 = vmatmul.mubr.f32.gmra.mxu0 %v358
        %v3757 = vpop.f32.mrf.mxu0
        %v3758 = vadd.f32 0.0, %v3757
        %v3759 = vpop.f32.mrf.mxu0
        %3760 = vmatprep.mubr.f32.mxu0 0.0
        %3761 = vmatmul.mubr.f32.gmra.mxu0 %v361
        %v3762 = vpop.f32.mrf.mxu0
        %v3763 = vadd.f32 0.0, %v3762
        %v3764 = vpop.f32.mrf.mxu0
        %3765 = vmatprep.mubr.f32.mxu0 0.0
        %3766 = vmatmul.mubr.f32.gmra.mxu0 %v364
        %v3767 = vpop.f32.mrf.mxu0
        %v3768 = vadd.f32 0.0, %v3767
        %v3769 = vpop.f32.mrf.mxu0
        %3770 = vmatprep.mubr.f32.mxu0 0.0
        %3771 = vmatmul.mubr.f32.gmra.mxu0 %v367
        %v3772 = vpop.f32.mrf.mxu0
        %v3773 = vadd.f32 0.0, %v3772
        %v3774 = vpop.f32.mrf.mxu0
        %3775 = vmatprep.mubr.f32.mxu0 0.0
        %3776 = vmatmul.mubr.f32.gmra.mxu0 %v370
        %v3777 = vpop.f32.mrf.mxu0
        %v3778 = vadd.f32 0.0, %v3777
        %v3779 = vpop.f32.mrf.mxu0
        %3780 = vmatprep.mubr.f32.mxu0 0.0
        %3781 = vmatmul.mubr.f32.gmra.mxu0 %v373
        %v3782 = vpop.f32.mrf.mxu0
        %v3783 = vadd.f32 0.0, %v3782
        %v3784 = vpop.f32.mrf.mxu0
        %3785 = vmatprep.mubr.f32.mxu0 0.0
        %3786 = vmatmul.mubr.f32.gmra.mxu0 %v376
        %v3787 = vpop.f32.mrf.mxu0
        %v3788 = vadd.f32 0.0, %v3787
        %v3789 = vpop.f32.mrf.mxu0
        %3790 = vmatprep.mubr.f32.mxu0 0.0
        %3791 = vmatmul.mubr.f32.gmra.mxu0 %v379
        %v3792 = vpop.f32.mrf.mxu0
        %v3793 = vadd.f32 0.0, %v3792
        %v3794 = vpop.f32.mrf.mxu0
        %3795 = vmatprep.mubr.f32.mxu0 0.0
        %3796 = vmatmul.mubr.f32.gmra.mxu0 %v382
        %v3797 = vpop.f32.mrf.mxu0
        %v3798 = vadd.f32 0.0, %v3797
        %v3799 = vpop.f32.mrf.mxu0
        %3800 = vmatprep.mubr.f32.mxu0 0.0
        %3801 = vmatmul.mubr.f32.gmra.mxu0 %v385
        %v3802 = vpop.f32.mrf.mxu0
        %v3803 = vadd.f32 0.0, %v3802
        %v3804 = vpop.f32.mrf.mxu0
        %3805 = vmatprep.mubr.f32.mxu0 0.0
        %3806 = vmatmul.mubr.f32.gmra.mxu0 %v388
        %v3807 = vpop.f32.mrf.mxu0
        %v3808 = vadd.f32 0.0, %v3807
        %v3809 = vpop.f32.mrf.mxu0
        %3810 = vmatprep.mubr.f32.mxu0 0.0
        %3811 = vmatmul.mubr.f32.gmra.mxu0 %v391
        %v3812 = vpop.f32.mrf.mxu0
        %v3813 = vadd.f32 0.0, %v3812
        %v3814 = vpop.f32.mrf.mxu0
        %3815 = vmatprep.mubr.f32.mxu0 0.0
        %3816 = vmatmul.mubr.f32.gmra.mxu0 %v394
        %v3817 = vpop.f32.mrf.mxu0
        %v3818 = vadd.f32 0.0, %v3817
        %v3819 = vpop.f32.mrf.mxu0
        %3820 = vmatprep.mubr.f32.mxu0 0.0
        %3821 = vmatmul.mubr.f32.gmra.mxu0 %v2138
        %v3822 = vpop.f32.mrf.mxu0
        %v3823 = vadd.f32 0.0, %v3822
        %v3824 = vpop.f32.mrf.mxu0
        %3825 = vmatprep.mubr.f32.mxu0 0.0
        %3826 = vmatmul.mubr.f32.gmra.mxu0 %v2141
        %v3827 = vpop.f32.mrf.mxu0
        %v3828 = vadd.f32 0.0, %v3827
        %v3829 = vpop.f32.mrf.mxu0
        %3830 = vmatprep.mubr.f32.mxu0 0.0
        %3831 = vmatmul.mubr.f32.gmra.mxu0 %v2144
        %v3832 = vpop.f32.mrf.mxu0
        %v3833 = vadd.f32 0.0, %v3832
        %v3834 = vpop.f32.mrf.mxu0
        %3835 = vmatprep.mubr.f32.mxu0 0.0
        %3836 = vmatmul.mubr.f32.gmra.mxu0 %v3538
        %v3837 = vpop.f32.mrf.mxu0
        %v3838 = vadd.f32 0.0, %v3837
        %v3839 = vpop.f32.mrf.mxu0
        %3840 = vmatprep.mubr.f32.mxu0 0.0
        %3841 = vmatmul.mubr.f32.gmra.mxu0 %v3541
        %v3842 = vpop.f32.mrf.mxu0
        %v3843 = vadd.f32 0.0, %v3842
        %v3844 = vpop.f32.mrf.mxu0
        %3845 = vmatprep.mubr.f32.mxu0 0.0
        %3846 = vmatmul.mubr.f32.gmra.mxu0 %v3544
        %v3847 = vpop.f32.mrf.mxu0
        %v3848 = vadd.f32 0.0, %v3847
        %v3849 = vpop.f32.mrf.mxu0
        %3850 = vdwg.mxu0
        %v3851 = vld [vmem:[#allocation2] sm:$0xff]
        %v3852 = vld [vmem:[#allocation2 + $0x8] sm:$0xff]
        %v3853 = vld [vmem:[#allocation2 + $0x10] sm:$0xff]
        %v3854 = vld [vmem:[#allocation2 + $0x18] sm:$0xff]
        %v3855 = vld [vmem:[#allocation2 + $0x20] sm:$0xff]
        %v3856 = vld [vmem:[#allocation2 + $0x28] sm:$0xff]
        %v3857 = vld [vmem:[#allocation2 + $0x30] sm:$0xff]
        %v3858 = vld [vmem:[#allocation2 + $0x38] sm:$0xff]
        %v3859 = vld [vmem:[#allocation2 + $0x40] sm:$0xff]
        %v3860 = vld [vmem:[#allocation2 + $0x48] sm:$0xff]
        %v3861 = vld [vmem:[#allocation2 + $0x50] sm:$0xff]
        %v3862 = vld [vmem:[#allocation2 + $0x58] sm:$0xff]
        %v3863 = vld [vmem:[#allocation2 + $0x60] sm:$0xff]
        %v3864 = vld [vmem:[#allocation2 + $0x68] sm:$0xff]
        %v3865 = vld [vmem:[#allocation2 + $0x70] sm:$0xff]
        %v3866 = vld [vmem:[#allocation2 + $0x78] sm:$0xff]
        %v3867 = vld [vmem:[#allocation2 + $0x80] sm:$0xff]
        %v3868 = vld [vmem:[#allocation2 + $0x88] sm:$0xff]
        %v3869 = vld [vmem:[#allocation2 + $0x90] sm:$0xff]
        %v3870 = vld [vmem:[#allocation2 + $0x98] sm:$0xff]
        %v3871 = vld [vmem:[#allocation2 + $0xa0] sm:$0xff]
        %v3872 = vld [vmem:[#allocation2 + $0xa8] sm:$0xff]
        %v3873 = vld [vmem:[#allocation2 + $0xb0] sm:$0xff]
        %v3874 = vld [vmem:[#allocation2 + $0xb8] sm:$0xff]
        %v3875 = vld [vmem:[#allocation2 + $0xc0] sm:$0xff]
        %v3876 = vld [vmem:[#allocation2 + $0xc8] sm:$0xff]
        %v3877 = vld [vmem:[#allocation2 + $0xd0] sm:$0xff]
        %v3878 = vld [vmem:[#allocation2 + $0xd8] sm:$0xff]
        %v3879 = vld [vmem:[#allocation2 + $0xe0] sm:$0xff]
        %v3880 = vld [vmem:[#allocation2 + $0xe8] sm:$0xff]
        %v3881 = vld [vmem:[#allocation2 + $0xf0] sm:$0xff]
        %v3882 = vld [vmem:[#allocation2 + $0xf8] sm:$0xff]
        %v3883 = vld [vmem:[#allocation2 + $0x100] sm:$0xff]
        %v3884 = vld [vmem:[#allocation2 + $0x108] sm:$0xff]
        %v3885 = vld [vmem:[#allocation2 + $0x110] sm:$0xff]
        %v3886 = vld [vmem:[#allocation2 + $0x118] sm:$0xff]
        %v3887 = vld [vmem:[#allocation2 + $0x120] sm:$0xff]
        %v3888 = vld [vmem:[#allocation2 + $0x128] sm:$0xff]
        %v3889 = vld [vmem:[#allocation2 + $0x130] sm:$0xff]
        %v3890 = vld [vmem:[#allocation2 + $0x138] sm:$0xff]
        %v3891 = vld [vmem:[#allocation2 + $0x140] sm:$0xff]
        %v3892 = vld [vmem:[#allocation2 + $0x148] sm:$0xff]
        %v3893 = vld [vmem:[#allocation2 + $0x150] sm:$0xff]
        %v3894 = vld [vmem:[#allocation2 + $0x158] sm:$0xff]
        %v3895 = vld [vmem:[#allocation2 + $0x160] sm:$0xff]
        %v3896 = vld [vmem:[#allocation2 + $0x168] sm:$0xff]
        %v3897 = vld [vmem:[#allocation2 + $0x170] sm:$0xff]
        %v3898 = vld [vmem:[#allocation2 + $0x178] sm:$0xff]
        %v3899 = vadd.f32 %v3851, %v3613
        %v3900 = vadd.f32 %v3852, %v3618
        %v3901 = vadd.f32 %v3853, %v3623
        %v3902 = vadd.f32 %v3854, %v3628
        %v3903 = vadd.f32 %v3855, %v3633
        %v3904 = vadd.f32 %v3856, %v3638
        %v3905 = vadd.f32 %v3857, %v3643
        %v3906 = vadd.f32 %v3858, %v3648
        %v3907 = vadd.f32 %v3859, %v3653
        %v3908 = vadd.f32 %v3860, %v3658
        %v3909 = vadd.f32 %v3861, %v3663
        %v3910 = vadd.f32 %v3862, %v3668
        %v3911 = vadd.f32 %v3863, %v3673
        %v3912 = vadd.f32 %v3864, %v3678
        %v3913 = vadd.f32 %v3865, %v3683
        %v3914 = vadd.f32 %v3866, %v3688
        %v3915 = vadd.f32 %v3867, %v3693
        %v3916 = vadd.f32 %v3868, %v3698
        %v3917 = vadd.f32 %v3869, %v3703
        %v3918 = vadd.f32 %v3870, %v3708
        %v3919 = vadd.f32 %v3871, %v3713
        %v3920 = vadd.f32 %v3872, %v3718
        %v3921 = vadd.f32 %v3873, %v3723
        %v3922 = vadd.f32 %v3874, %v3728
        %v3923 = vadd.f32 %v3875, %v3733
        %v3924 = vadd.f32 %v3876, %v3738
        %v3925 = vadd.f32 %v3877, %v3743
        %v3926 = vadd.f32 %v3878, %v3748
        %v3927 = vadd.f32 %v3879, %v3753
        %v3928 = vadd.f32 %v3880, %v3758
        %v3929 = vadd.f32 %v3881, %v3763
        %v3930 = vadd.f32 %v3882, %v3768
        %v3931 = vadd.f32 %v3883, %v3773
        %v3932 = vadd.f32 %v3884, %v3778
        %v3933 = vadd.f32 %v3885, %v3783
        %v3934 = vadd.f32 %v3886, %v3788
        %v3935 = vadd.f32 %v3887, %v3793
        %v3936 = vadd.f32 %v3888, %v3798
        %v3937 = vadd.f32 %v3889, %v3803
        %v3938 = vadd.f32 %v3890, %v3808
        %v3939 = vadd.f32 %v3891, %v3813
        %v3940 = vadd.f32 %v3892, %v3818
        %v3941 = vadd.f32 %v3893, %v3823
        %v3942 = vadd.f32 %v3894, %v3828
        %v3943 = vadd.f32 %v3895, %v3833
        %v3944 = vadd.f32 %v3896, %v3838
        %v3945 = vadd.f32 %v3897, %v3843
        %v3946 = vadd.f32 %v3898, %v3848
        %3947 = vst [vmem:[#allocation2] sm:$0xff] %v3899
        %3948 = vst [vmem:[#allocation2 + $0x8] sm:$0xff] %v3900
        %3949 = vst [vmem:[#allocation2 + $0x10] sm:$0xff] %v3901
        %3950 = vst [vmem:[#allocation2 + $0x18] sm:$0xff] %v3902
        %3951 = vst [vmem:[#allocation2 + $0x20] sm:$0xff] %v3903
        %3952 = vst [vmem:[#allocation2 + $0x28] sm:$0xff] %v3904
        %3953 = vst [vmem:[#allocation2 + $0x30] sm:$0xff] %v3905
        %3954 = vst [vmem:[#allocation2 + $0x38] sm:$0xff] %v3906
        %3955 = vst [vmem:[#allocation2 + $0x40] sm:$0xff] %v3907
        %3956 = vst [vmem:[#allocation2 + $0x48] sm:$0xff] %v3908
        %3957 = vst [vmem:[#allocation2 + $0x50] sm:$0xff] %v3909
        %3958 = vst [vmem:[#allocation2 + $0x58] sm:$0xff] %v3910
        %3959 = vst [vmem:[#allocation2 + $0x60] sm:$0xff] %v3911
        %3960 = vst [vmem:[#allocation2 + $0x68] sm:$0xff] %v3912
        %3961 = vst [vmem:[#allocation2 + $0x70] sm:$0xff] %v3913
        %3962 = vst [vmem:[#allocation2 + $0x78] sm:$0xff] %v3914
        %3963 = vst [vmem:[#allocation2 + $0x80] sm:$0xff] %v3915
        %3964 = vst [vmem:[#allocation2 + $0x88] sm:$0xff] %v3916
        %3965 = vst [vmem:[#allocation2 + $0x90] sm:$0xff] %v3917
        %3966 = vst [vmem:[#allocation2 + $0x98] sm:$0xff] %v3918
        %3967 = vst [vmem:[#allocation2 + $0xa0] sm:$0xff] %v3919
        %3968 = vst [vmem:[#allocation2 + $0xa8] sm:$0xff] %v3920
        %3969 = vst [vmem:[#allocation2 + $0xb0] sm:$0xff] %v3921
        %3970 = vst [vmem:[#allocation2 + $0xb8] sm:$0xff] %v3922
        %3971 = vst [vmem:[#allocation2 + $0xc0] sm:$0xff] %v3923
        %3972 = vst [vmem:[#allocation2 + $0xc8] sm:$0xff] %v3924
        %3973 = vst [vmem:[#allocation2 + $0xd0] sm:$0xff] %v3925
        %3974 = vst [vmem:[#allocation2 + $0xd8] sm:$0xff] %v3926
        %3975 = vst [vmem:[#allocation2 + $0xe0] sm:$0xff] %v3927
        %3976 = vst [vmem:[#allocation2 + $0xe8] sm:$0xff] %v3928
        %3977 = vst [vmem:[#allocation2 + $0xf0] sm:$0xff] %v3929
        %3978 = vst [vmem:[#allocation2 + $0xf8] sm:$0xff] %v3930
        %3979 = vst [vmem:[#allocation2 + $0x100] sm:$0xff] %v3931
        %3980 = vst [vmem:[#allocation2 + $0x108] sm:$0xff] %v3932
        %3981 = vst [vmem:[#allocation2 + $0x110] sm:$0xff] %v3933
        %3982 = vst [vmem:[#allocation2 + $0x118] sm:$0xff] %v3934
        %3983 = vst [vmem:[#allocation2 + $0x120] sm:$0xff] %v3935
        %3984 = vst [vmem:[#allocation2 + $0x128] sm:$0xff] %v3936
        %3985 = vst [vmem:[#allocation2 + $0x130] sm:$0xff] %v3937
        %3986 = vst [vmem:[#allocation2 + $0x138] sm:$0xff] %v3938
        %3987 = vst [vmem:[#allocation2 + $0x140] sm:$0xff] %v3939
        %3988 = vst [vmem:[#allocation2 + $0x148] sm:$0xff] %v3940
        %3989 = vst [vmem:[#allocation2 + $0x150] sm:$0xff] %v3941
        %3990 = vst [vmem:[#allocation2 + $0x158] sm:$0xff] %v3942
        %3991 = vst [vmem:[#allocation2 + $0x160] sm:$0xff] %v3943
        %3992 = vst [vmem:[#allocation2 + $0x168] sm:$0xff] %v3944
        %3993 = vst [vmem:[#allocation2 + $0x170] sm:$0xff] %v3945
        %3994 = vst [vmem:[#allocation2 + $0x178] sm:$0xff] %v3946
        %v3995 = vrot.slane %v247, 1
        %v3996 = vrot.slane %v248, 1
        %v3997 = vrot.slane %v249, 1
        %v3998 = vsel %vm799, %v3996, %v3997
        %v3999 = vsel %vm799, %v3995, %v3996
        %v4000 = vsel %vm799, %v2597, %v3995
        %v4001 = vsel %vm799, %v3997, %v755
        %s4002 = scalar_lea.vmem %s195, 56
        %v4003 = vld [vmem:[%s4002] sm:$0xff]
        %v4005 = vsel %vm251, %v4000, 0
        %v4008 = vsel %vm251, %v3999, 0
        %v4011 = vsel %vm251, %v3998, 0
        %v4014 = vsel %vm251, %v4001, 0
        %4016 = vmatprep.subr.mxu0 0.0
        %4017 = vmatpush1.msra.mxu0 0.0
        %4018 = vmatprep.subr.mxu0 0.0
        %4019 = vmatpush1.msra.mxu0 0.0
        %4020 = vmatprep.subr.mxu0 0.0
        %4021 = vmatpush1.msra.mxu0 0.0
        %4022 = vmatprep.subr.mxu0 0.0
        %4023 = vmatpush1.msra.mxu0 0.0
        %4024 = vmatprep.subr.mxu0 0.0
        %4025 = vmatpush1.msra.mxu0 0.0
        %4026 = vmatprep.subr.mxu0 0.0
        %4027 = vmatpush1.msra.mxu0 0.0
        %4028 = vmatprep.subr.mxu0 0.0
        %4029 = vmatpush1.msra.mxu0 0.0
        %4030 = vmatprep.subr.mxu0 0.0
        %4031 = vmatpush1.msra.mxu0 0.0
        %4032 = vmatprep.subr.mxu0 0.0
        %4033 = vmatpush1.msra.mxu0 0.0
        %4034 = vmatprep.subr.mxu0 0.0
        %4035 = vmatpush1.msra.mxu0 0.0
        %4036 = vmatprep.subr.mxu0 0.0
        %4037 = vmatpush1.msra.mxu0 0.0
        %4038 = vmatprep.subr.mxu0 0.0
        %4039 = vmatpush1.msra.mxu0 0.0
        %4040 = vmatprep.subr.mxu0 0.0
        %4041 = vmatpush1.msra.mxu0 0.0
        %4042 = vmatprep.subr.mxu0 0.0
        %4043 = vmatpush1.msra.mxu0 0.0
        %4044 = vmatprep.subr.mxu0 0.0
        %4045 = vmatpush1.msra.mxu0 0.0
        %4046 = vmatprep.subr.mxu0 0.0
        %4047 = vmatpush1.msra.mxu0 %v4003
        %4048 = vmatprep.subr.mxu0 0.0
        %4049 = vmatpush2.msra.mxu0 0.0
        %4050 = vmatprep.subr.mxu0 0.0
        %4051 = vmatpush2.msra.mxu0 0.0
        %4052 = vmatprep.subr.mxu0 0.0
        %4053 = vmatpush2.msra.mxu0 0.0
        %4054 = vmatprep.subr.mxu0 0.0
        %4055 = vmatpush2.msra.mxu0 0.0
        %4056 = vmatprep.subr.mxu0 0.0
        %4057 = vmatpush2.msra.mxu0 0.0
        %4058 = vmatprep.subr.mxu0 0.0
        %4059 = vmatpush2.msra.mxu0 0.0
        %4060 = vmatprep.subr.mxu0 0.0
        %4061 = vmatpush2.msra.mxu0 0.0
        %4062 = vmatprep.subr.mxu0 0.0
        %4063 = vmatpush2.msra.mxu0 0.0
        %4064 = vmatprep.subr.mxu0 0.0
        %4065 = vmatpush2.msra.mxu0 0.0
        %4066 = vmatprep.subr.mxu0 0.0
        %4067 = vmatpush2.msra.mxu0 0.0
        %4068 = vmatprep.subr.mxu0 0.0
        %4069 = vmatpush2.msra.mxu0 0.0
        %4070 = vmatprep.subr.mxu0 0.0
        %4071 = vmatpush2.msra.mxu0 0.0
        %4072 = vmatprep.subr.mxu0 0.0
        %4073 = vmatpush2.msra.mxu0 0.0
        %4074 = vmatprep.subr.mxu0 0.0
        %4075 = vmatpush2.msra.mxu0 0.0
        %4076 = vmatprep.subr.mxu0 0.0
        %4077 = vmatpush2.msra.mxu0 0.0
        %4078 = vmatprep.subr.mxu0 0.0
        %4079 = vmatpush2.msra.mxu0 0.0
        %4080 = vmatprep.mubr.f32.mxu0 0.0
        %4081 = vmatmul.mubr.f32.gmra.mxu0 %v869
        %v4082 = vpop.f32.mrf.mxu0
        %v4083 = vadd.f32 0.0, %v4082
        %v4084 = vpop.f32.mrf.mxu0
        %4085 = vmatprep.mubr.f32.mxu0 0.0
        %4086 = vmatmul.mubr.f32.gmra.mxu0 %v872
        %v4087 = vpop.f32.mrf.mxu0
        %v4088 = vadd.f32 0.0, %v4087
        %v4089 = vpop.f32.mrf.mxu0
        %4090 = vmatprep.mubr.f32.mxu0 0.0
        %4091 = vmatmul.mubr.f32.gmra.mxu0 %v875
        %v4092 = vpop.f32.mrf.mxu0
        %v4093 = vadd.f32 0.0, %v4092
        %v4094 = vpop.f32.mrf.mxu0
        %4095 = vmatprep.mubr.f32.mxu0 0.0
        %4096 = vmatmul.mubr.f32.gmra.mxu0 %v878
        %v4097 = vpop.f32.mrf.mxu0
        %v4098 = vadd.f32 0.0, %v4097
        %v4099 = vpop.f32.mrf.mxu0
        %4100 = vmatprep.mubr.f32.mxu0 0.0
        %4101 = vmatmul.mubr.f32.gmra.mxu0 %v881
        %v4102 = vpop.f32.mrf.mxu0
        %v4103 = vadd.f32 0.0, %v4102
        %v4104 = vpop.f32.mrf.mxu0
        %4105 = vmatprep.mubr.f32.mxu0 0.0
        %4106 = vmatmul.mubr.f32.gmra.mxu0 %v884
        %v4107 = vpop.f32.mrf.mxu0
        %v4108 = vadd.f32 0.0, %v4107
        %v4109 = vpop.f32.mrf.mxu0
        %4110 = vmatprep.mubr.f32.mxu0 0.0
        %4111 = vmatmul.mubr.f32.gmra.mxu0 %v887
        %v4112 = vpop.f32.mrf.mxu0
        %v4113 = vadd.f32 0.0, %v4112
        %v4114 = vpop.f32.mrf.mxu0
        %4115 = vmatprep.mubr.f32.mxu0 0.0
        %4116 = vmatmul.mubr.f32.gmra.mxu0 %v890
        %v4117 = vpop.f32.mrf.mxu0
        %v4118 = vadd.f32 0.0, %v4117
        %v4119 = vpop.f32.mrf.mxu0
        %4120 = vmatprep.mubr.f32.mxu0 0.0
        %4121 = vmatmul.mubr.f32.gmra.mxu0 %v893
        %v4122 = vpop.f32.mrf.mxu0
        %v4123 = vadd.f32 0.0, %v4122
        %v4124 = vpop.f32.mrf.mxu0
        %4125 = vmatprep.mubr.f32.mxu0 0.0
        %4126 = vmatmul.mubr.f32.gmra.mxu0 %v896
        %v4127 = vpop.f32.mrf.mxu0
        %v4128 = vadd.f32 0.0, %v4127
        %v4129 = vpop.f32.mrf.mxu0
        %4130 = vmatprep.mubr.f32.mxu0 0.0
        %4131 = vmatmul.mubr.f32.gmra.mxu0 %v899
        %v4132 = vpop.f32.mrf.mxu0
        %v4133 = vadd.f32 0.0, %v4132
        %v4134 = vpop.f32.mrf.mxu0
        %4135 = vmatprep.mubr.f32.mxu0 0.0
        %4136 = vmatmul.mubr.f32.gmra.mxu0 %v902
        %v4137 = vpop.f32.mrf.mxu0
        %v4138 = vadd.f32 0.0, %v4137
        %v4139 = vpop.f32.mrf.mxu0
        %4140 = vmatprep.mubr.f32.mxu0 0.0
        %4141 = vmatmul.mubr.f32.gmra.mxu0 %v905
        %v4142 = vpop.f32.mrf.mxu0
        %v4143 = vadd.f32 0.0, %v4142
        %v4144 = vpop.f32.mrf.mxu0
        %4145 = vmatprep.mubr.f32.mxu0 0.0
        %4146 = vmatmul.mubr.f32.gmra.mxu0 %v908
        %v4147 = vpop.f32.mrf.mxu0
        %v4148 = vadd.f32 0.0, %v4147
        %v4149 = vpop.f32.mrf.mxu0
        %4150 = vmatprep.mubr.f32.mxu0 0.0
        %4151 = vmatmul.mubr.f32.gmra.mxu0 %v911
        %v4152 = vpop.f32.mrf.mxu0
        %v4153 = vadd.f32 0.0, %v4152
        %v4154 = vpop.f32.mrf.mxu0
        %4155 = vmatprep.mubr.f32.mxu0 0.0
        %4156 = vmatmul.mubr.f32.gmra.mxu0 %v914
        %v4157 = vpop.f32.mrf.mxu0
        %v4158 = vadd.f32 0.0, %v4157
        %v4159 = vpop.f32.mrf.mxu0
        %4160 = vmatprep.mubr.f32.mxu0 0.0
        %4161 = vmatmul.mubr.f32.gmra.mxu0 %v917
        %v4162 = vpop.f32.mrf.mxu0
        %v4163 = vadd.f32 0.0, %v4162
        %v4164 = vpop.f32.mrf.mxu0
        %4165 = vmatprep.mubr.f32.mxu0 0.0
        %4166 = vmatmul.mubr.f32.gmra.mxu0 %v920
        %v4167 = vpop.f32.mrf.mxu0
        %v4168 = vadd.f32 0.0, %v4167
        %v4169 = vpop.f32.mrf.mxu0
        %4170 = vmatprep.mubr.f32.mxu0 0.0
        %4171 = vmatmul.mubr.f32.gmra.mxu0 %v923
        %v4172 = vpop.f32.mrf.mxu0
        %v4173 = vadd.f32 0.0, %v4172
        %v4174 = vpop.f32.mrf.mxu0
        %4175 = vmatprep.mubr.f32.mxu0 0.0
        %4176 = vmatmul.mubr.f32.gmra.mxu0 %v926
        %v4177 = vpop.f32.mrf.mxu0
        %v4178 = vadd.f32 0.0, %v4177
        %v4179 = vpop.f32.mrf.mxu0
        %4180 = vmatprep.mubr.f32.mxu0 0.0
        %4181 = vmatmul.mubr.f32.gmra.mxu0 %v929
        %v4182 = vpop.f32.mrf.mxu0
        %v4183 = vadd.f32 0.0, %v4182
        %v4184 = vpop.f32.mrf.mxu0
        %4185 = vmatprep.mubr.f32.mxu0 0.0
        %4186 = vmatmul.mubr.f32.gmra.mxu0 %v932
        %v4187 = vpop.f32.mrf.mxu0
        %v4188 = vadd.f32 0.0, %v4187
        %v4189 = vpop.f32.mrf.mxu0
        %4190 = vmatprep.mubr.f32.mxu0 0.0
        %4191 = vmatmul.mubr.f32.gmra.mxu0 %v935
        %v4192 = vpop.f32.mrf.mxu0
        %v4193 = vadd.f32 0.0, %v4192
        %v4194 = vpop.f32.mrf.mxu0
        %4195 = vmatprep.mubr.f32.mxu0 0.0
        %4196 = vmatmul.mubr.f32.gmra.mxu0 %v938
        %v4197 = vpop.f32.mrf.mxu0
        %v4198 = vadd.f32 0.0, %v4197
        %v4199 = vpop.f32.mrf.mxu0
        %4200 = vmatprep.mubr.f32.mxu0 0.0
        %4201 = vmatmul.mubr.f32.gmra.mxu0 %v941
        %v4202 = vpop.f32.mrf.mxu0
        %v4203 = vadd.f32 0.0, %v4202
        %v4204 = vpop.f32.mrf.mxu0
        %4205 = vmatprep.mubr.f32.mxu0 0.0
        %4206 = vmatmul.mubr.f32.gmra.mxu0 %v944
        %v4207 = vpop.f32.mrf.mxu0
        %v4208 = vadd.f32 0.0, %v4207
        %v4209 = vpop.f32.mrf.mxu0
        %4210 = vmatprep.mubr.f32.mxu0 0.0
        %4211 = vmatmul.mubr.f32.gmra.mxu0 %v947
        %v4212 = vpop.f32.mrf.mxu0
        %v4213 = vadd.f32 0.0, %v4212
        %v4214 = vpop.f32.mrf.mxu0
        %4215 = vmatprep.mubr.f32.mxu0 0.0
        %4216 = vmatmul.mubr.f32.gmra.mxu0 %v950
        %v4217 = vpop.f32.mrf.mxu0
        %v4218 = vadd.f32 0.0, %v4217
        %v4219 = vpop.f32.mrf.mxu0
        %4220 = vmatprep.mubr.f32.mxu0 0.0
        %4221 = vmatmul.mubr.f32.gmra.mxu0 %v953
        %v4222 = vpop.f32.mrf.mxu0
        %v4223 = vadd.f32 0.0, %v4222
        %v4224 = vpop.f32.mrf.mxu0
        %4225 = vmatprep.mubr.f32.mxu0 0.0
        %4226 = vmatmul.mubr.f32.gmra.mxu0 %v956
        %v4227 = vpop.f32.mrf.mxu0
        %v4228 = vadd.f32 0.0, %v4227
        %v4229 = vpop.f32.mrf.mxu0
        %4230 = vmatprep.mubr.f32.mxu0 0.0
        %4231 = vmatmul.mubr.f32.gmra.mxu0 %v959
        %v4232 = vpop.f32.mrf.mxu0
        %v4233 = vadd.f32 0.0, %v4232
        %v4234 = vpop.f32.mrf.mxu0
        %4235 = vmatprep.mubr.f32.mxu0 0.0
        %4236 = vmatmul.mubr.f32.gmra.mxu0 %v962
        %v4237 = vpop.f32.mrf.mxu0
        %v4238 = vadd.f32 0.0, %v4237
        %v4239 = vpop.f32.mrf.mxu0
        %4240 = vmatprep.mubr.f32.mxu0 0.0
        %4241 = vmatmul.mubr.f32.gmra.mxu0 %v965
        %v4242 = vpop.f32.mrf.mxu0
        %v4243 = vadd.f32 0.0, %v4242
        %v4244 = vpop.f32.mrf.mxu0
        %4245 = vmatprep.mubr.f32.mxu0 0.0
        %4246 = vmatmul.mubr.f32.gmra.mxu0 %v968
        %v4247 = vpop.f32.mrf.mxu0
        %v4248 = vadd.f32 0.0, %v4247
        %v4249 = vpop.f32.mrf.mxu0
        %4250 = vmatprep.mubr.f32.mxu0 0.0
        %4251 = vmatmul.mubr.f32.gmra.mxu0 %v971
        %v4252 = vpop.f32.mrf.mxu0
        %v4253 = vadd.f32 0.0, %v4252
        %v4254 = vpop.f32.mrf.mxu0
        %4255 = vmatprep.mubr.f32.mxu0 0.0
        %4256 = vmatmul.mubr.f32.gmra.mxu0 %v974
        %v4257 = vpop.f32.mrf.mxu0
        %v4258 = vadd.f32 0.0, %v4257
        %v4259 = vpop.f32.mrf.mxu0
        %4260 = vmatprep.mubr.f32.mxu0 0.0
        %4261 = vmatmul.mubr.f32.gmra.mxu0 %v977
        %v4262 = vpop.f32.mrf.mxu0
        %v4263 = vadd.f32 0.0, %v4262
        %v4264 = vpop.f32.mrf.mxu0
        %4265 = vmatprep.mubr.f32.mxu0 0.0
        %4266 = vmatmul.mubr.f32.gmra.mxu0 %v980
        %v4267 = vpop.f32.mrf.mxu0
        %v4268 = vadd.f32 0.0, %v4267
        %v4269 = vpop.f32.mrf.mxu0
        %4270 = vmatprep.mubr.f32.mxu0 0.0
        %4271 = vmatmul.mubr.f32.gmra.mxu0 %v983
        %v4272 = vpop.f32.mrf.mxu0
        %v4273 = vadd.f32 0.0, %v4272
        %v4274 = vpop.f32.mrf.mxu0
        %4275 = vmatprep.mubr.f32.mxu0 0.0
        %4276 = vmatmul.mubr.f32.gmra.mxu0 %v986
        %v4277 = vpop.f32.mrf.mxu0
        %v4278 = vadd.f32 0.0, %v4277
        %v4279 = vpop.f32.mrf.mxu0
        %4280 = vmatprep.mubr.f32.mxu0 0.0
        %4281 = vmatmul.mubr.f32.gmra.mxu0 %v989
        %v4282 = vpop.f32.mrf.mxu0
        %v4283 = vadd.f32 0.0, %v4282
        %v4284 = vpop.f32.mrf.mxu0
        %4285 = vmatprep.mubr.f32.mxu0 0.0
        %4286 = vmatmul.mubr.f32.gmra.mxu0 %v2605
        %v4287 = vpop.f32.mrf.mxu0
        %v4288 = vadd.f32 0.0, %v4287
        %v4289 = vpop.f32.mrf.mxu0
        %4290 = vmatprep.mubr.f32.mxu0 0.0
        %4291 = vmatmul.mubr.f32.gmra.mxu0 %v2608
        %v4292 = vpop.f32.mrf.mxu0
        %v4293 = vadd.f32 0.0, %v4292
        %v4294 = vpop.f32.mrf.mxu0
        %4295 = vmatprep.mubr.f32.mxu0 0.0
        %4296 = vmatmul.mubr.f32.gmra.mxu0 %v2611
        %v4297 = vpop.f32.mrf.mxu0
        %v4298 = vadd.f32 0.0, %v4297
        %v4299 = vpop.f32.mrf.mxu0
        %4300 = vmatprep.mubr.f32.mxu0 0.0
        %4301 = vmatmul.mubr.f32.gmra.mxu0 %v4005
        %v4302 = vpop.f32.mrf.mxu0
        %v4303 = vadd.f32 0.0, %v4302
        %v4304 = vpop.f32.mrf.mxu0
        %4305 = vmatprep.mubr.f32.mxu0 0.0
        %4306 = vmatmul.mubr.f32.gmra.mxu0 %v4008
        %v4307 = vpop.f32.mrf.mxu0
        %v4308 = vadd.f32 0.0, %v4307
        %v4309 = vpop.f32.mrf.mxu0
        %4310 = vmatprep.mubr.f32.mxu0 0.0
        %4311 = vmatmul.mubr.f32.gmra.mxu0 %v4011
        %v4312 = vpop.f32.mrf.mxu0
        %v4313 = vadd.f32 0.0, %v4312
        %v4314 = vpop.f32.mrf.mxu0
        %4315 = vmatprep.mubr.f32.mxu0 0.0
        %4316 = vmatmul.mubr.f32.gmra.mxu0 %v4014
        %v4317 = vpop.f32.mrf.mxu0
        %v4318 = vadd.f32 0.0, %v4317
        %v4319 = vpop.f32.mrf.mxu0
        %4320 = vdwg.mxu0
        %v4321 = vld [vmem:[#allocation2] sm:$0xff]
        %v4322 = vld [vmem:[#allocation2 + $0x8] sm:$0xff]
        %v4323 = vld [vmem:[#allocation2 + $0x10] sm:$0xff]
        %v4324 = vld [vmem:[#allocation2 + $0x18] sm:$0xff]
        %v4325 = vld [vmem:[#allocation2 + $0x20] sm:$0xff]
        %v4326 = vld [vmem:[#allocation2 + $0x28] sm:$0xff]
        %v4327 = vld [vmem:[#allocation2 + $0x30] sm:$0xff]
        %v4328 = vld [vmem:[#allocation2 + $0x38] sm:$0xff]
        %v4329 = vld [vmem:[#allocation2 + $0x40] sm:$0xff]
        %v4330 = vld [vmem:[#allocation2 + $0x48] sm:$0xff]
        %v4331 = vld [vmem:[#allocation2 + $0x50] sm:$0xff]
        %v4332 = vld [vmem:[#allocation2 + $0x58] sm:$0xff]
        %v4333 = vld [vmem:[#allocation2 + $0x60] sm:$0xff]
        %v4334 = vld [vmem:[#allocation2 + $0x68] sm:$0xff]
        %v4335 = vld [vmem:[#allocation2 + $0x70] sm:$0xff]
        %v4336 = vld [vmem:[#allocation2 + $0x78] sm:$0xff]
        %v4337 = vld [vmem:[#allocation2 + $0x80] sm:$0xff]
        %v4338 = vld [vmem:[#allocation2 + $0x88] sm:$0xff]
        %v4339 = vld [vmem:[#allocation2 + $0x90] sm:$0xff]
        %v4340 = vld [vmem:[#allocation2 + $0x98] sm:$0xff]
        %v4341 = vld [vmem:[#allocation2 + $0xa0] sm:$0xff]
        %v4342 = vld [vmem:[#allocation2 + $0xa8] sm:$0xff]
        %v4343 = vld [vmem:[#allocation2 + $0xb0] sm:$0xff]
        %v4344 = vld [vmem:[#allocation2 + $0xb8] sm:$0xff]
        %v4345 = vld [vmem:[#allocation2 + $0xc0] sm:$0xff]
        %v4346 = vld [vmem:[#allocation2 + $0xc8] sm:$0xff]
        %v4347 = vld [vmem:[#allocation2 + $0xd0] sm:$0xff]
        %v4348 = vld [vmem:[#allocation2 + $0xd8] sm:$0xff]
        %v4349 = vld [vmem:[#allocation2 + $0xe0] sm:$0xff]
        %v4350 = vld [vmem:[#allocation2 + $0xe8] sm:$0xff]
        %v4351 = vld [vmem:[#allocation2 + $0xf0] sm:$0xff]
        %v4352 = vld [vmem:[#allocation2 + $0xf8] sm:$0xff]
        %v4353 = vld [vmem:[#allocation2 + $0x100] sm:$0xff]
        %v4354 = vld [vmem:[#allocation2 + $0x108] sm:$0xff]
        %v4355 = vld [vmem:[#allocation2 + $0x110] sm:$0xff]
        %v4356 = vld [vmem:[#allocation2 + $0x118] sm:$0xff]
        %v4357 = vld [vmem:[#allocation2 + $0x120] sm:$0xff]
        %v4358 = vld [vmem:[#allocation2 + $0x128] sm:$0xff]
        %v4359 = vld [vmem:[#allocation2 + $0x130] sm:$0xff]
        %v4360 = vld [vmem:[#allocation2 + $0x138] sm:$0xff]
        %v4361 = vld [vmem:[#allocation2 + $0x140] sm:$0xff]
        %v4362 = vld [vmem:[#allocation2 + $0x148] sm:$0xff]
        %v4363 = vld [vmem:[#allocation2 + $0x150] sm:$0xff]
        %v4364 = vld [vmem:[#allocation2 + $0x158] sm:$0xff]
        %v4365 = vld [vmem:[#allocation2 + $0x160] sm:$0xff]
        %v4366 = vld [vmem:[#allocation2 + $0x168] sm:$0xff]
        %v4367 = vld [vmem:[#allocation2 + $0x170] sm:$0xff]
        %v4368 = vld [vmem:[#allocation2 + $0x178] sm:$0xff]
        %v4369 = vadd.f32 %v4321, %v4083
        %v4370 = vadd.f32 %v4322, %v4088
        %v4371 = vadd.f32 %v4323, %v4093
        %v4372 = vadd.f32 %v4324, %v4098
        %v4373 = vadd.f32 %v4325, %v4103
        %v4374 = vadd.f32 %v4326, %v4108
        %v4375 = vadd.f32 %v4327, %v4113
        %v4376 = vadd.f32 %v4328, %v4118
        %v4377 = vadd.f32 %v4329, %v4123
        %v4378 = vadd.f32 %v4330, %v4128
        %v4379 = vadd.f32 %v4331, %v4133
        %v4380 = vadd.f32 %v4332, %v4138
        %v4381 = vadd.f32 %v4333, %v4143
        %v4382 = vadd.f32 %v4334, %v4148
        %v4383 = vadd.f32 %v4335, %v4153
        %v4384 = vadd.f32 %v4336, %v4158
        %v4385 = vadd.f32 %v4337, %v4163
        %v4386 = vadd.f32 %v4338, %v4168
        %v4387 = vadd.f32 %v4339, %v4173
        %v4388 = vadd.f32 %v4340, %v4178
        %v4389 = vadd.f32 %v4341, %v4183
        %v4390 = vadd.f32 %v4342, %v4188
        %v4391 = vadd.f32 %v4343, %v4193
        %v4392 = vadd.f32 %v4344, %v4198
        %v4393 = vadd.f32 %v4345, %v4203
        %v4394 = vadd.f32 %v4346, %v4208
        %v4395 = vadd.f32 %v4347, %v4213
        %v4396 = vadd.f32 %v4348, %v4218
        %v4397 = vadd.f32 %v4349, %v4223
        %v4398 = vadd.f32 %v4350, %v4228
        %v4399 = vadd.f32 %v4351, %v4233
        %v4400 = vadd.f32 %v4352, %v4238
        %v4401 = vadd.f32 %v4353, %v4243
        %v4402 = vadd.f32 %v4354, %v4248
        %v4403 = vadd.f32 %v4355, %v4253
        %v4404 = vadd.f32 %v4356, %v4258
        %v4405 = vadd.f32 %v4357, %v4263
        %v4406 = vadd.f32 %v4358, %v4268
        %v4407 = vadd.f32 %v4359, %v4273
        %v4408 = vadd.f32 %v4360, %v4278
        %v4409 = vadd.f32 %v4361, %v4283
        %v4410 = vadd.f32 %v4362, %v4288
        %v4411 = vadd.f32 %v4363, %v4293
        %v4412 = vadd.f32 %v4364, %v4298
        %v4413 = vadd.f32 %v4365, %v4303
        %v4414 = vadd.f32 %v4366, %v4308
        %v4415 = vadd.f32 %v4367, %v4313
        %v4416 = vadd.f32 %v4368, %v4318
        %4417 = vst [vmem:[#allocation2] sm:$0xff] %v4369
        %4418 = vst [vmem:[#allocation2 + $0x8] sm:$0xff] %v4370
        %4419 = vst [vmem:[#allocation2 + $0x10] sm:$0xff] %v4371
        %4420 = vst [vmem:[#allocation2 + $0x18] sm:$0xff] %v4372
        %4421 = vst [vmem:[#allocation2 + $0x20] sm:$0xff] %v4373
        %4422 = vst [vmem:[#allocation2 + $0x28] sm:$0xff] %v4374
        %4423 = vst [vmem:[#allocation2 + $0x30] sm:$0xff] %v4375
        %4424 = vst [vmem:[#allocation2 + $0x38] sm:$0xff] %v4376
        %4425 = vst [vmem:[#allocation2 + $0x40] sm:$0xff] %v4377
        %4426 = vst [vmem:[#allocation2 + $0x48] sm:$0xff] %v4378
        %4427 = vst [vmem:[#allocation2 + $0x50] sm:$0xff] %v4379
        %4428 = vst [vmem:[#allocation2 + $0x58] sm:$0xff] %v4380
        %4429 = vst [vmem:[#allocation2 + $0x60] sm:$0xff] %v4381
        %4430 = vst [vmem:[#allocation2 + $0x68] sm:$0xff] %v4382
        %4431 = vst [vmem:[#allocation2 + $0x70] sm:$0xff] %v4383
        %4432 = vst [vmem:[#allocation2 + $0x78] sm:$0xff] %v4384
        %4433 = vst [vmem:[#allocation2 + $0x80] sm:$0xff] %v4385
        %4434 = vst [vmem:[#allocation2 + $0x88] sm:$0xff] %v4386
        %4435 = vst [vmem:[#allocation2 + $0x90] sm:$0xff] %v4387
        %4436 = vst [vmem:[#allocation2 + $0x98] sm:$0xff] %v4388
        %4437 = vst [vmem:[#allocation2 + $0xa0] sm:$0xff] %v4389
        %4438 = vst [vmem:[#allocation2 + $0xa8] sm:$0xff] %v4390
        %4439 = vst [vmem:[#allocation2 + $0xb0] sm:$0xff] %v4391
        %4440 = vst [vmem:[#allocation2 + $0xb8] sm:$0xff] %v4392
        %4441 = vst [vmem:[#allocation2 + $0xc0] sm:$0xff] %v4393
        %4442 = vst [vmem:[#allocation2 + $0xc8] sm:$0xff] %v4394
        %4443 = vst [vmem:[#allocation2 + $0xd0] sm:$0xff] %v4395
        %4444 = vst [vmem:[#allocation2 + $0xd8] sm:$0xff] %v4396
        %4445 = vst [vmem:[#allocation2 + $0xe0] sm:$0xff] %v4397
        %4446 = vst [vmem:[#allocation2 + $0xe8] sm:$0xff] %v4398
        %4447 = vst [vmem:[#allocation2 + $0xf0] sm:$0xff] %v4399
        %4448 = vst [vmem:[#allocation2 + $0xf8] sm:$0xff] %v4400
        %4449 = vst [vmem:[#allocation2 + $0x100] sm:$0xff] %v4401
        %4450 = vst [vmem:[#allocation2 + $0x108] sm:$0xff] %v4402
        %4451 = vst [vmem:[#allocation2 + $0x110] sm:$0xff] %v4403
        %4452 = vst [vmem:[#allocation2 + $0x118] sm:$0xff] %v4404
        %4453 = vst [vmem:[#allocation2 + $0x120] sm:$0xff] %v4405
        %4454 = vst [vmem:[#allocation2 + $0x128] sm:$0xff] %v4406
        %4455 = vst [vmem:[#allocation2 + $0x130] sm:$0xff] %v4407
        %4456 = vst [vmem:[#allocation2 + $0x138] sm:$0xff] %v4408
        %4457 = vst [vmem:[#allocation2 + $0x140] sm:$0xff] %v4409
        %4458 = vst [vmem:[#allocation2 + $0x148] sm:$0xff] %v4410
        %4459 = vst [vmem:[#allocation2 + $0x150] sm:$0xff] %v4411
        %4460 = vst [vmem:[#allocation2 + $0x158] sm:$0xff] %v4412
        %4461 = vst [vmem:[#allocation2 + $0x160] sm:$0xff] %v4413
        %4462 = vst [vmem:[#allocation2 + $0x168] sm:$0xff] %v4414
        %4463 = vst [vmem:[#allocation2 + $0x170] sm:$0xff] %v4415
        %4464 = vst [vmem:[#allocation2 + $0x178] sm:$0xff] %v4416
        %v4465 = vrot.slane %v247, 2
        %v4466 = vrot.slane %v248, 2
        %v4467 = vrot.slane %v249, 2
        %v4468 = vsel %vm1491, %v4466, %v4467
        %v4469 = vsel %vm1491, %v4465, %v4466
        %v4470 = vsel %vm1491, %v3067, %v4465
        %v4471 = vsel %vm1491, %v4467, %v1449
        %s4472 = scalar_lea.vmem %s195, 64
        %v4473 = vld [vmem:[%s4472] sm:$0xff]
        %v4475 = vsel %vm251, %v4470, 0
        %v4478 = vsel %vm251, %v4469, 0
        %v4481 = vsel %vm251, %v4468, 0
        %v4484 = vsel %vm251, %v4471, 0
        %4486 = vmatprep.subr.mxu0 0.0
        %4487 = vmatpush1.msra.mxu0 0.0
        %4488 = vmatprep.subr.mxu0 0.0
        %4489 = vmatpush1.msra.mxu0 0.0
        %4490 = vmatprep.subr.mxu0 0.0
        %4491 = vmatpush1.msra.mxu0 0.0
        %4492 = vmatprep.subr.mxu0 0.0
        %4493 = vmatpush1.msra.mxu0 0.0
        %4494 = vmatprep.subr.mxu0 0.0
        %4495 = vmatpush1.msra.mxu0 0.0
        %4496 = vmatprep.subr.mxu0 0.0
        %4497 = vmatpush1.msra.mxu0 0.0
        %4498 = vmatprep.subr.mxu0 0.0
        %4499 = vmatpush1.msra.mxu0 0.0
        %4500 = vmatprep.subr.mxu0 0.0
        %4501 = vmatpush1.msra.mxu0 0.0
        %4502 = vmatprep.subr.mxu0 0.0
        %4503 = vmatpush1.msra.mxu0 0.0
        %4504 = vmatprep.subr.mxu0 0.0
        %4505 = vmatpush1.msra.mxu0 0.0
        %4506 = vmatprep.subr.mxu0 0.0
        %4507 = vmatpush1.msra.mxu0 0.0
        %4508 = vmatprep.subr.mxu0 0.0
        %4509 = vmatpush1.msra.mxu0 0.0
        %4510 = vmatprep.subr.mxu0 0.0
        %4511 = vmatpush1.msra.mxu0 0.0
        %4512 = vmatprep.subr.mxu0 0.0
        %4513 = vmatpush1.msra.mxu0 0.0
        %4514 = vmatprep.subr.mxu0 0.0
        %4515 = vmatpush1.msra.mxu0 0.0
        %4516 = vmatprep.subr.mxu0 0.0
        %4517 = vmatpush1.msra.mxu0 %v4473
        %4518 = vmatprep.subr.mxu0 0.0
        %4519 = vmatpush2.msra.mxu0 0.0
        %4520 = vmatprep.subr.mxu0 0.0
        %4521 = vmatpush2.msra.mxu0 0.0
        %4522 = vmatprep.subr.mxu0 0.0
        %4523 = vmatpush2.msra.mxu0 0.0
        %4524 = vmatprep.subr.mxu0 0.0
        %4525 = vmatpush2.msra.mxu0 0.0
        %4526 = vmatprep.subr.mxu0 0.0
        %4527 = vmatpush2.msra.mxu0 0.0
        %4528 = vmatprep.subr.mxu0 0.0
        %4529 = vmatpush2.msra.mxu0 0.0
        %4530 = vmatprep.subr.mxu0 0.0
        %4531 = vmatpush2.msra.mxu0 0.0
        %4532 = vmatprep.subr.mxu0 0.0
        %4533 = vmatpush2.msra.mxu0 0.0
        %4534 = vmatprep.subr.mxu0 0.0
        %4535 = vmatpush2.msra.mxu0 0.0
        %4536 = vmatprep.subr.mxu0 0.0
        %4537 = vmatpush2.msra.mxu0 0.0
        %4538 = vmatprep.subr.mxu0 0.0
        %4539 = vmatpush2.msra.mxu0 0.0
        %4540 = vmatprep.subr.mxu0 0.0
        %4541 = vmatpush2.msra.mxu0 0.0
        %4542 = vmatprep.subr.mxu0 0.0
        %4543 = vmatpush2.msra.mxu0 0.0
        %4544 = vmatprep.subr.mxu0 0.0
        %4545 = vmatpush2.msra.mxu0 0.0
        %4546 = vmatprep.subr.mxu0 0.0
        %4547 = vmatpush2.msra.mxu0 0.0
        %4548 = vmatprep.subr.mxu0 0.0
        %4549 = vmatpush2.msra.mxu0 0.0
        %4550 = vmatprep.mubr.f32.mxu0 0.0
        %4551 = vmatmul.mubr.f32.gmra.mxu0 %v1561
        %v4552 = vpop.f32.mrf.mxu0
        %v4553 = vadd.f32 0.0, %v4552
        %v4554 = vpop.f32.mrf.mxu0
        %4555 = vmatprep.mubr.f32.mxu0 0.0
        %4556 = vmatmul.mubr.f32.gmra.mxu0 %v1564
        %v4557 = vpop.f32.mrf.mxu0
        %v4558 = vadd.f32 0.0, %v4557
        %v4559 = vpop.f32.mrf.mxu0
        %4560 = vmatprep.mubr.f32.mxu0 0.0
        %4561 = vmatmul.mubr.f32.gmra.mxu0 %v1567
        %v4562 = vpop.f32.mrf.mxu0
        %v4563 = vadd.f32 0.0, %v4562
        %v4564 = vpop.f32.mrf.mxu0
        %4565 = vmatprep.mubr.f32.mxu0 0.0
        %4566 = vmatmul.mubr.f32.gmra.mxu0 %v1570
        %v4567 = vpop.f32.mrf.mxu0
        %v4568 = vadd.f32 0.0, %v4567
        %v4569 = vpop.f32.mrf.mxu0
        %4570 = vmatprep.mubr.f32.mxu0 0.0
        %4571 = vmatmul.mubr.f32.gmra.mxu0 %v1573
        %v4572 = vpop.f32.mrf.mxu0
        %v4573 = vadd.f32 0.0, %v4572
        %v4574 = vpop.f32.mrf.mxu0
        %4575 = vmatprep.mubr.f32.mxu0 0.0
        %4576 = vmatmul.mubr.f32.gmra.mxu0 %v1576
        %v4577 = vpop.f32.mrf.mxu0
        %v4578 = vadd.f32 0.0, %v4577
        %v4579 = vpop.f32.mrf.mxu0
        %4580 = vmatprep.mubr.f32.mxu0 0.0
        %4581 = vmatmul.mubr.f32.gmra.mxu0 %v1579
        %v4582 = vpop.f32.mrf.mxu0
        %v4583 = vadd.f32 0.0, %v4582
        %v4584 = vpop.f32.mrf.mxu0
        %4585 = vmatprep.mubr.f32.mxu0 0.0
        %4586 = vmatmul.mubr.f32.gmra.mxu0 %v1582
        %v4587 = vpop.f32.mrf.mxu0
        %v4588 = vadd.f32 0.0, %v4587
        %v4589 = vpop.f32.mrf.mxu0
        %4590 = vmatprep.mubr.f32.mxu0 0.0
        %4591 = vmatmul.mubr.f32.gmra.mxu0 %v1585
        %v4592 = vpop.f32.mrf.mxu0
        %v4593 = vadd.f32 0.0, %v4592
        %v4594 = vpop.f32.mrf.mxu0
        %4595 = vmatprep.mubr.f32.mxu0 0.0
        %4596 = vmatmul.mubr.f32.gmra.mxu0 %v1588
        %v4597 = vpop.f32.mrf.mxu0
        %v4598 = vadd.f32 0.0, %v4597
        %v4599 = vpop.f32.mrf.mxu0
        %4600 = vmatprep.mubr.f32.mxu0 0.0
        %4601 = vmatmul.mubr.f32.gmra.mxu0 %v1591
        %v4602 = vpop.f32.mrf.mxu0
        %v4603 = vadd.f32 0.0, %v4602
        %v4604 = vpop.f32.mrf.mxu0
        %4605 = vmatprep.mubr.f32.mxu0 0.0
        %4606 = vmatmul.mubr.f32.gmra.mxu0 %v1594
        %v4607 = vpop.f32.mrf.mxu0
        %v4608 = vadd.f32 0.0, %v4607
        %v4609 = vpop.f32.mrf.mxu0
        %4610 = vmatprep.mubr.f32.mxu0 0.0
        %4611 = vmatmul.mubr.f32.gmra.mxu0 %v1597
        %v4612 = vpop.f32.mrf.mxu0
        %v4613 = vadd.f32 0.0, %v4612
        %v4614 = vpop.f32.mrf.mxu0
        %4615 = vmatprep.mubr.f32.mxu0 0.0
        %4616 = vmatmul.mubr.f32.gmra.mxu0 %v1600
        %v4617 = vpop.f32.mrf.mxu0
        %v4618 = vadd.f32 0.0, %v4617
        %v4619 = vpop.f32.mrf.mxu0
        %4620 = vmatprep.mubr.f32.mxu0 0.0
        %4621 = vmatmul.mubr.f32.gmra.mxu0 %v1603
        %v4622 = vpop.f32.mrf.mxu0
        %v4623 = vadd.f32 0.0, %v4622
        %v4624 = vpop.f32.mrf.mxu0
        %4625 = vmatprep.mubr.f32.mxu0 0.0
        %4626 = vmatmul.mubr.f32.gmra.mxu0 %v1606
        %v4627 = vpop.f32.mrf.mxu0
        %v4628 = vadd.f32 0.0, %v4627
        %v4629 = vpop.f32.mrf.mxu0
        %4630 = vmatprep.mubr.f32.mxu0 0.0
        %4631 = vmatmul.mubr.f32.gmra.mxu0 %v1609
        %v4632 = vpop.f32.mrf.mxu0
        %v4633 = vadd.f32 0.0, %v4632
        %v4634 = vpop.f32.mrf.mxu0
        %4635 = vmatprep.mubr.f32.mxu0 0.0
        %4636 = vmatmul.mubr.f32.gmra.mxu0 %v1612
        %v4637 = vpop.f32.mrf.mxu0
        %v4638 = vadd.f32 0.0, %v4637
        %v4639 = vpop.f32.mrf.mxu0
        %4640 = vmatprep.mubr.f32.mxu0 0.0
        %4641 = vmatmul.mubr.f32.gmra.mxu0 %v1615
        %v4642 = vpop.f32.mrf.mxu0
        %v4643 = vadd.f32 0.0, %v4642
        %v4644 = vpop.f32.mrf.mxu0
        %4645 = vmatprep.mubr.f32.mxu0 0.0
        %4646 = vmatmul.mubr.f32.gmra.mxu0 %v1618
        %v4647 = vpop.f32.mrf.mxu0
        %v4648 = vadd.f32 0.0, %v4647
        %v4649 = vpop.f32.mrf.mxu0
        %4650 = vmatprep.mubr.f32.mxu0 0.0
        %4651 = vmatmul.mubr.f32.gmra.mxu0 %v1621
        %v4652 = vpop.f32.mrf.mxu0
        %v4653 = vadd.f32 0.0, %v4652
        %v4654 = vpop.f32.mrf.mxu0
        %4655 = vmatprep.mubr.f32.mxu0 0.0
        %4656 = vmatmul.mubr.f32.gmra.mxu0 %v1624
        %v4657 = vpop.f32.mrf.mxu0
        %v4658 = vadd.f32 0.0, %v4657
        %v4659 = vpop.f32.mrf.mxu0
        %4660 = vmatprep.mubr.f32.mxu0 0.0
        %4661 = vmatmul.mubr.f32.gmra.mxu0 %v1627
        %v4662 = vpop.f32.mrf.mxu0
        %v4663 = vadd.f32 0.0, %v4662
        %v4664 = vpop.f32.mrf.mxu0
        %4665 = vmatprep.mubr.f32.mxu0 0.0
        %4666 = vmatmul.mubr.f32.gmra.mxu0 %v1630
        %v4667 = vpop.f32.mrf.mxu0
        %v4668 = vadd.f32 0.0, %v4667
        %v4669 = vpop.f32.mrf.mxu0
        %4670 = vmatprep.mubr.f32.mxu0 0.0
        %4671 = vmatmul.mubr.f32.gmra.mxu0 %v1633
        %v4672 = vpop.f32.mrf.mxu0
        %v4673 = vadd.f32 0.0, %v4672
        %v4674 = vpop.f32.mrf.mxu0
        %4675 = vmatprep.mubr.f32.mxu0 0.0
        %4676 = vmatmul.mubr.f32.gmra.mxu0 %v1636
        %v4677 = vpop.f32.mrf.mxu0
        %v4678 = vadd.f32 0.0, %v4677
        %v4679 = vpop.f32.mrf.mxu0
        %4680 = vmatprep.mubr.f32.mxu0 0.0
        %4681 = vmatmul.mubr.f32.gmra.mxu0 %v1639
        %v4682 = vpop.f32.mrf.mxu0
        %v4683 = vadd.f32 0.0, %v4682
        %v4684 = vpop.f32.mrf.mxu0
        %4685 = vmatprep.mubr.f32.mxu0 0.0
        %4686 = vmatmul.mubr.f32.gmra.mxu0 %v1642
        %v4687 = vpop.f32.mrf.mxu0
        %v4688 = vadd.f32 0.0, %v4687
        %v4689 = vpop.f32.mrf.mxu0
        %4690 = vmatprep.mubr.f32.mxu0 0.0
        %4691 = vmatmul.mubr.f32.gmra.mxu0 %v1645
        %v4692 = vpop.f32.mrf.mxu0
        %v4693 = vadd.f32 0.0, %v4692
        %v4694 = vpop.f32.mrf.mxu0
        %4695 = vmatprep.mubr.f32.mxu0 0.0
        %4696 = vmatmul.mubr.f32.gmra.mxu0 %v1648
        %v4697 = vpop.f32.mrf.mxu0
        %v4698 = vadd.f32 0.0, %v4697
        %v4699 = vpop.f32.mrf.mxu0
        %4700 = vmatprep.mubr.f32.mxu0 0.0
        %4701 = vmatmul.mubr.f32.gmra.mxu0 %v1651
        %v4702 = vpop.f32.mrf.mxu0
        %v4703 = vadd.f32 0.0, %v4702
        %v4704 = vpop.f32.mrf.mxu0
        %4705 = vmatprep.mubr.f32.mxu0 0.0
        %4706 = vmatmul.mubr.f32.gmra.mxu0 %v1654
        %v4707 = vpop.f32.mrf.mxu0
        %v4708 = vadd.f32 0.0, %v4707
        %v4709 = vpop.f32.mrf.mxu0
        %4710 = vmatprep.mubr.f32.mxu0 0.0
        %4711 = vmatmul.mubr.f32.gmra.mxu0 %v1657
        %v4712 = vpop.f32.mrf.mxu0
        %v4713 = vadd.f32 0.0, %v4712
        %v4714 = vpop.f32.mrf.mxu0
        %4715 = vmatprep.mubr.f32.mxu0 0.0
        %4716 = vmatmul.mubr.f32.gmra.mxu0 %v1660
        %v4717 = vpop.f32.mrf.mxu0
        %v4718 = vadd.f32 0.0, %v4717
        %v4719 = vpop.f32.mrf.mxu0
        %4720 = vmatprep.mubr.f32.mxu0 0.0
        %4721 = vmatmul.mubr.f32.gmra.mxu0 %v1663
        %v4722 = vpop.f32.mrf.mxu0
        %v4723 = vadd.f32 0.0, %v4722
        %v4724 = vpop.f32.mrf.mxu0
        %4725 = vmatprep.mubr.f32.mxu0 0.0
        %4726 = vmatmul.mubr.f32.gmra.mxu0 %v1666
        %v4727 = vpop.f32.mrf.mxu0
        %v4728 = vadd.f32 0.0, %v4727
        %v4729 = vpop.f32.mrf.mxu0
        %4730 = vmatprep.mubr.f32.mxu0 0.0
        %4731 = vmatmul.mubr.f32.gmra.mxu0 %v1669
        %v4732 = vpop.f32.mrf.mxu0
        %v4733 = vadd.f32 0.0, %v4732
        %v4734 = vpop.f32.mrf.mxu0
        %4735 = vmatprep.mubr.f32.mxu0 0.0
        %4736 = vmatmul.mubr.f32.gmra.mxu0 %v1672
        %v4737 = vpop.f32.mrf.mxu0
        %v4738 = vadd.f32 0.0, %v4737
        %v4739 = vpop.f32.mrf.mxu0
        %4740 = vmatprep.mubr.f32.mxu0 0.0
        %4741 = vmatmul.mubr.f32.gmra.mxu0 %v1675
        %v4742 = vpop.f32.mrf.mxu0
        %v4743 = vadd.f32 0.0, %v4742
        %v4744 = vpop.f32.mrf.mxu0
        %4745 = vmatprep.mubr.f32.mxu0 0.0
        %4746 = vmatmul.mubr.f32.gmra.mxu0 %v1678
        %v4747 = vpop.f32.mrf.mxu0
        %v4748 = vadd.f32 0.0, %v4747
        %v4749 = vpop.f32.mrf.mxu0
        %4750 = vmatprep.mubr.f32.mxu0 0.0
        %4751 = vmatmul.mubr.f32.gmra.mxu0 %v1681
        %v4752 = vpop.f32.mrf.mxu0
        %v4753 = vadd.f32 0.0, %v4752
        %v4754 = vpop.f32.mrf.mxu0
        %4755 = vmatprep.mubr.f32.mxu0 0.0
        %4756 = vmatmul.mubr.f32.gmra.mxu0 %v3075
        %v4757 = vpop.f32.mrf.mxu0
        %v4758 = vadd.f32 0.0, %v4757
        %v4759 = vpop.f32.mrf.mxu0
        %4760 = vmatprep.mubr.f32.mxu0 0.0
        %4761 = vmatmul.mubr.f32.gmra.mxu0 %v3078
        %v4762 = vpop.f32.mrf.mxu0
        %v4763 = vadd.f32 0.0, %v4762
        %v4764 = vpop.f32.mrf.mxu0
        %4765 = vmatprep.mubr.f32.mxu0 0.0
        %4766 = vmatmul.mubr.f32.gmra.mxu0 %v3081
        %v4767 = vpop.f32.mrf.mxu0
        %v4768 = vadd.f32 0.0, %v4767
        %v4769 = vpop.f32.mrf.mxu0
        %4770 = vmatprep.mubr.f32.mxu0 0.0
        %4771 = vmatmul.mubr.f32.gmra.mxu0 %v4475
        %v4772 = vpop.f32.mrf.mxu0
        %v4773 = vadd.f32 0.0, %v4772
        %v4774 = vpop.f32.mrf.mxu0
        %4775 = vmatprep.mubr.f32.mxu0 0.0
        %4776 = vmatmul.mubr.f32.gmra.mxu0 %v4478
        %v4777 = vpop.f32.mrf.mxu0
        %v4778 = vadd.f32 0.0, %v4777
        %v4779 = vpop.f32.mrf.mxu0
        %4780 = vmatprep.mubr.f32.mxu0 0.0
        %4781 = vmatmul.mubr.f32.gmra.mxu0 %v4481
        %v4782 = vpop.f32.mrf.mxu0
        %v4783 = vadd.f32 0.0, %v4782
        %v4784 = vpop.f32.mrf.mxu0
        %4785 = vmatprep.mubr.f32.mxu0 0.0
        %4786 = vmatmul.mubr.f32.gmra.mxu0 %v4484
        %v4787 = vpop.f32.mrf.mxu0
        %v4788 = vadd.f32 0.0, %v4787
        %v4789 = vpop.f32.mrf.mxu0
        %4790 = vdwg.mxu0
        %v4791 = vld [vmem:[#allocation2] sm:$0xff]
        %v4792 = vld [vmem:[#allocation2 + $0x8] sm:$0xff]
        %v4793 = vld [vmem:[#allocation2 + $0x10] sm:$0xff]
        %v4794 = vld [vmem:[#allocation2 + $0x18] sm:$0xff]
        %v4795 = vld [vmem:[#allocation2 + $0x20] sm:$0xff]
        %v4796 = vld [vmem:[#allocation2 + $0x28] sm:$0xff]
        %v4797 = vld [vmem:[#allocation2 + $0x30] sm:$0xff]
        %v4798 = vld [vmem:[#allocation2 + $0x38] sm:$0xff]
        %v4799 = vld [vmem:[#allocation2 + $0x40] sm:$0xff]
        %v4800 = vld [vmem:[#allocation2 + $0x48] sm:$0xff]
        %v4801 = vld [vmem:[#allocation2 + $0x50] sm:$0xff]
        %v4802 = vld [vmem:[#allocation2 + $0x58] sm:$0xff]
        %v4803 = vld [vmem:[#allocation2 + $0x60] sm:$0xff]
        %v4804 = vld [vmem:[#allocation2 + $0x68] sm:$0xff]
        %v4805 = vld [vmem:[#allocation2 + $0x70] sm:$0xff]
        %v4806 = vld [vmem:[#allocation2 + $0x78] sm:$0xff]
        %v4807 = vld [vmem:[#allocation2 + $0x80] sm:$0xff]
        %v4808 = vld [vmem:[#allocation2 + $0x88] sm:$0xff]
        %v4809 = vld [vmem:[#allocation2 + $0x90] sm:$0xff]
        %v4810 = vld [vmem:[#allocation2 + $0x98] sm:$0xff]
        %v4811 = vld [vmem:[#allocation2 + $0xa0] sm:$0xff]
        %v4812 = vld [vmem:[#allocation2 + $0xa8] sm:$0xff]
        %v4813 = vld [vmem:[#allocation2 + $0xb0] sm:$0xff]
        %v4814 = vld [vmem:[#allocation2 + $0xb8] sm:$0xff]
        %v4815 = vld [vmem:[#allocation2 + $0xc0] sm:$0xff]
        %v4816 = vld [vmem:[#allocation2 + $0xc8] sm:$0xff]
        %v4817 = vld [vmem:[#allocation2 + $0xd0] sm:$0xff]
        %v4818 = vld [vmem:[#allocation2 + $0xd8] sm:$0xff]
        %v4819 = vld [vmem:[#allocation2 + $0xe0] sm:$0xff]
        %v4820 = vld [vmem:[#allocation2 + $0xe8] sm:$0xff]
        %v4821 = vld [vmem:[#allocation2 + $0xf0] sm:$0xff]
        %v4822 = vld [vmem:[#allocation2 + $0xf8] sm:$0xff]
        %v4823 = vld [vmem:[#allocation2 + $0x100] sm:$0xff]
        %v4824 = vld [vmem:[#allocation2 + $0x108] sm:$0xff]
        %v4825 = vld [vmem:[#allocation2 + $0x110] sm:$0xff]
        %v4826 = vld [vmem:[#allocation2 + $0x118] sm:$0xff]
        %v4827 = vld [vmem:[#allocation2 + $0x120] sm:$0xff]
        %v4828 = vld [vmem:[#allocation2 + $0x128] sm:$0xff]
        %v4829 = vld [vmem:[#allocation2 + $0x130] sm:$0xff]
        %v4830 = vld [vmem:[#allocation2 + $0x138] sm:$0xff]
        %v4831 = vld [vmem:[#allocation2 + $0x140] sm:$0xff]
        %v4832 = vld [vmem:[#allocation2 + $0x148] sm:$0xff]
        %v4833 = vld [vmem:[#allocation2 + $0x150] sm:$0xff]
        %v4834 = vld [vmem:[#allocation2 + $0x158] sm:$0xff]
        %v4835 = vld [vmem:[#allocation2 + $0x160] sm:$0xff]
        %v4836 = vld [vmem:[#allocation2 + $0x168] sm:$0xff]
        %v4837 = vld [vmem:[#allocation2 + $0x170] sm:$0xff]
        %v4838 = vld [vmem:[#allocation2 + $0x178] sm:$0xff]
        %v4839 = vadd.f32 %v4791, %v4553
        %v4840 = vadd.f32 %v4792, %v4558
        %v4841 = vadd.f32 %v4793, %v4563
        %v4842 = vadd.f32 %v4794, %v4568
        %v4843 = vadd.f32 %v4795, %v4573
        %v4844 = vadd.f32 %v4796, %v4578
        %v4845 = vadd.f32 %v4797, %v4583
        %v4846 = vadd.f32 %v4798, %v4588
        %v4847 = vadd.f32 %v4799, %v4593
        %v4848 = vadd.f32 %v4800, %v4598
        %v4849 = vadd.f32 %v4801, %v4603
        %v4850 = vadd.f32 %v4802, %v4608
        %v4851 = vadd.f32 %v4803, %v4613
        %v4852 = vadd.f32 %v4804, %v4618
        %v4853 = vadd.f32 %v4805, %v4623
        %v4854 = vadd.f32 %v4806, %v4628
        %v4855 = vadd.f32 %v4807, %v4633
        %v4856 = vadd.f32 %v4808, %v4638
        %v4857 = vadd.f32 %v4809, %v4643
        %v4858 = vadd.f32 %v4810, %v4648
        %v4859 = vadd.f32 %v4811, %v4653
        %v4860 = vadd.f32 %v4812, %v4658
        %v4861 = vadd.f32 %v4813, %v4663
        %v4862 = vadd.f32 %v4814, %v4668
        %v4863 = vadd.f32 %v4815, %v4673
        %v4864 = vadd.f32 %v4816, %v4678
        %v4865 = vadd.f32 %v4817, %v4683
        %v4866 = vadd.f32 %v4818, %v4688
        %v4867 = vadd.f32 %v4819, %v4693
        %v4868 = vadd.f32 %v4820, %v4698
        %v4869 = vadd.f32 %v4821, %v4703
        %v4870 = vadd.f32 %v4822, %v4708
        %v4871 = vadd.f32 %v4823, %v4713
        %v4872 = vadd.f32 %v4824, %v4718
        %v4873 = vadd.f32 %v4825, %v4723
        %v4874 = vadd.f32 %v4826, %v4728
        %v4875 = vadd.f32 %v4827, %v4733
        %v4876 = vadd.f32 %v4828, %v4738
        %v4877 = vadd.f32 %v4829, %v4743
        %v4878 = vadd.f32 %v4830, %v4748
        %v4879 = vadd.f32 %v4831, %v4753
        %v4880 = vadd.f32 %v4832, %v4758
        %v4881 = vadd.f32 %v4833, %v4763
        %v4882 = vadd.f32 %v4834, %v4768
        %v4883 = vadd.f32 %v4835, %v4773
        %v4884 = vadd.f32 %v4836, %v4778
        %v4885 = vadd.f32 %v4837, %v4783
        %v4886 = vadd.f32 %v4838, %v4788
        %4887 = vst [vmem:[#allocation2] sm:$0xff] %v4839
        %4888 = vst [vmem:[#allocation2 + $0x8] sm:$0xff] %v4840
        %4889 = vst [vmem:[#allocation2 + $0x10] sm:$0xff] %v4841
        %4890 = vst [vmem:[#allocation2 + $0x18] sm:$0xff] %v4842
        %4891 = vst [vmem:[#allocation2 + $0x20] sm:$0xff] %v4843
        %4892 = vst [vmem:[#allocation2 + $0x28] sm:$0xff] %v4844
        %4893 = vst [vmem:[#allocation2 + $0x30] sm:$0xff] %v4845
        %4894 = vst [vmem:[#allocation2 + $0x38] sm:$0xff] %v4846
        %4895 = vst [vmem:[#allocation2 + $0x40] sm:$0xff] %v4847
        %4896 = vst [vmem:[#allocation2 + $0x48] sm:$0xff] %v4848
        %4897 = vst [vmem:[#allocation2 + $0x50] sm:$0xff] %v4849
        %4898 = vst [vmem:[#allocation2 + $0x58] sm:$0xff] %v4850
        %4899 = vst [vmem:[#allocation2 + $0x60] sm:$0xff] %v4851
        %4900 = vst [vmem:[#allocation2 + $0x68] sm:$0xff] %v4852
        %4901 = vst [vmem:[#allocation2 + $0x70] sm:$0xff] %v4853
        %4902 = vst [vmem:[#allocation2 + $0x78] sm:$0xff] %v4854
        %4903 = vst [vmem:[#allocation2 + $0x80] sm:$0xff] %v4855
        %4904 = vst [vmem:[#allocation2 + $0x88] sm:$0xff] %v4856
        %4905 = vst [vmem:[#allocation2 + $0x90] sm:$0xff] %v4857
        %4906 = vst [vmem:[#allocation2 + $0x98] sm:$0xff] %v4858
        %4907 = vst [vmem:[#allocation2 + $0xa0] sm:$0xff] %v4859
        %4908 = vst [vmem:[#allocation2 + $0xa8] sm:$0xff] %v4860
        %4909 = vst [vmem:[#allocation2 + $0xb0] sm:$0xff] %v4861
        %4910 = vst [vmem:[#allocation2 + $0xb8] sm:$0xff] %v4862
        %4911 = vst [vmem:[#allocation2 + $0xc0] sm:$0xff] %v4863
        %4912 = vst [vmem:[#allocation2 + $0xc8] sm:$0xff] %v4864
        %4913 = vst [vmem:[#allocation2 + $0xd0] sm:$0xff] %v4865
        %4914 = vst [vmem:[#allocation2 + $0xd8] sm:$0xff] %v4866
        %4915 = vst [vmem:[#allocation2 + $0xe0] sm:$0xff] %v4867
        %4916 = vst [vmem:[#allocation2 + $0xe8] sm:$0xff] %v4868
        %4917 = vst [vmem:[#allocation2 + $0xf0] sm:$0xff] %v4869
        %4918 = vst [vmem:[#allocation2 + $0xf8] sm:$0xff] %v4870
        %4919 = vst [vmem:[#allocation2 + $0x100] sm:$0xff] %v4871
        %4920 = vst [vmem:[#allocation2 + $0x108] sm:$0xff] %v4872
        %4921 = vst [vmem:[#allocation2 + $0x110] sm:$0xff] %v4873
        %4922 = vst [vmem:[#allocation2 + $0x118] sm:$0xff] %v4874
        %4923 = vst [vmem:[#allocation2 + $0x120] sm:$0xff] %v4875
        %4924 = vst [vmem:[#allocation2 + $0x128] sm:$0xff] %v4876
        %4925 = vst [vmem:[#allocation2 + $0x130] sm:$0xff] %v4877
        %4926 = vst [vmem:[#allocation2 + $0x138] sm:$0xff] %v4878
        %4927 = vst [vmem:[#allocation2 + $0x140] sm:$0xff] %v4879
        %4928 = vst [vmem:[#allocation2 + $0x148] sm:$0xff] %v4880
        %4929 = vst [vmem:[#allocation2 + $0x150] sm:$0xff] %v4881
        %4930 = vst [vmem:[#allocation2 + $0x158] sm:$0xff] %v4882
        %4931 = vst [vmem:[#allocation2 + $0x160] sm:$0xff] %v4883
        %4932 = vst [vmem:[#allocation2 + $0x168] sm:$0xff] %v4884
        %4933 = vst [vmem:[#allocation2 + $0x170] sm:$0xff] %v4885
        %4934 = vst [vmem:[#allocation2 + $0x178] sm:$0xff] %v4886
        %v4935 = vld [vmem:[#allocation2] sm:$0xff]
        %v4936 = vld [vmem:[#allocation2 + $0x8] sm:$0xff]
        %v4937 = vld [vmem:[#allocation2 + $0x10] sm:$0xff]
        %v4938 = vld [vmem:[#allocation2 + $0x18] sm:$0xff]
        %v4939 = vld [vmem:[#allocation2 + $0x20] sm:$0xff]
        %v4940 = vld [vmem:[#allocation2 + $0x28] sm:$0xff]
        %v4941 = vld [vmem:[#allocation2 + $0x30] sm:$0xff]
        %v4942 = vld [vmem:[#allocation2 + $0x38] sm:$0xff]
        %v4943 = vld [vmem:[#allocation2 + $0x40] sm:$0xff]
        %v4944 = vld [vmem:[#allocation2 + $0x48] sm:$0xff]
        %v4945 = vld [vmem:[#allocation2 + $0x50] sm:$0xff]
        %v4946 = vld [vmem:[#allocation2 + $0x58] sm:$0xff]
        %v4947 = vld [vmem:[#allocation2 + $0x60] sm:$0xff]
        %v4948 = vld [vmem:[#allocation2 + $0x68] sm:$0xff]
        %v4949 = vld [vmem:[#allocation2 + $0x70] sm:$0xff]
        %v4950 = vld [vmem:[#allocation2 + $0x78] sm:$0xff]
        %v4951 = vld [vmem:[#allocation2 + $0x80] sm:$0xff]
        %v4952 = vld [vmem:[#allocation2 + $0x88] sm:$0xff]
        %v4953 = vld [vmem:[#allocation2 + $0x90] sm:$0xff]
        %v4954 = vld [vmem:[#allocation2 + $0x98] sm:$0xff]
        %v4955 = vld [vmem:[#allocation2 + $0xa0] sm:$0xff]
        %v4956 = vld [vmem:[#allocation2 + $0xa8] sm:$0xff]
        %v4957 = vld [vmem:[#allocation2 + $0xb0] sm:$0xff]
        %v4958 = vld [vmem:[#allocation2 + $0xb8] sm:$0xff]
        %v4959 = vld [vmem:[#allocation2 + $0xc0] sm:$0xff]
        %v4960 = vld [vmem:[#allocation2 + $0xc8] sm:$0xff]
        %v4961 = vld [vmem:[#allocation2 + $0xd0] sm:$0xff]
        %v4962 = vld [vmem:[#allocation2 + $0xd8] sm:$0xff]
        %v4963 = vld [vmem:[#allocation2 + $0xe0] sm:$0xff]
        %v4964 = vld [vmem:[#allocation2 + $0xe8] sm:$0xff]
        %v4965 = vld [vmem:[#allocation2 + $0xf0] sm:$0xff]
        %v4966 = vld [vmem:[#allocation2 + $0xf8] sm:$0xff]
        %v4967 = vld [vmem:[#allocation2 + $0x100] sm:$0xff]
        %v4968 = vld [vmem:[#allocation2 + $0x108] sm:$0xff]
        %v4969 = vld [vmem:[#allocation2 + $0x110] sm:$0xff]
        %v4970 = vld [vmem:[#allocation2 + $0x118] sm:$0xff]
        %v4971 = vld [vmem:[#allocation2 + $0x120] sm:$0xff]
        %v4972 = vld [vmem:[#allocation2 + $0x128] sm:$0xff]
        %v4973 = vld [vmem:[#allocation2 + $0x130] sm:$0xff]
        %v4974 = vld [vmem:[#allocation2 + $0x138] sm:$0xff]
        %v4975 = vld [vmem:[#allocation2 + $0x140] sm:$0xff]
        %v4976 = vld [vmem:[#allocation2 + $0x148] sm:$0xff]
        %v4977 = vld [vmem:[#allocation2 + $0x150] sm:$0xff]
        %v4978 = vld [vmem:[#allocation2 + $0x158] sm:$0xff]
        %v4979 = vld [vmem:[#allocation2 + $0x160] sm:$0xff]
        %v4980 = vld [vmem:[#allocation2 + $0x168] sm:$0xff]
        %v4981 = vld [vmem:[#allocation2 + $0x170] sm:$0xff]
        %v4982 = vld [vmem:[#allocation2 + $0x178] sm:$0xff]
        %4983 = vst [vmem:[%s182] sm:$0xff] %v4935
        %4984 = vst [vmem:[%s182 + $0x8] sm:$0xff] %v4936
        %4985 = vst [vmem:[%s182 + $0x10] sm:$0xff] %v4937
        %4986 = vst [vmem:[%s182 + $0x18] sm:$0xff] %v4938
        %4987 = vst [vmem:[%s182 + $0x20] sm:$0xff] %v4939
        %4988 = vst [vmem:[%s182 + $0x28] sm:$0xff] %v4940
        %4989 = vst [vmem:[%s182 + $0x30] sm:$0xff] %v4941
        %4990 = vst [vmem:[%s182 + $0x38] sm:$0xff] %v4942
        %4991 = vst [vmem:[%s182 + $0x40] sm:$0xff] %v4943
        %4992 = vst [vmem:[%s182 + $0x48] sm:$0xff] %v4944
        %4993 = vst [vmem:[%s182 + $0x50] sm:$0xff] %v4945
        %4994 = vst [vmem:[%s182 + $0x58] sm:$0xff] %v4946
        %4995 = vst [vmem:[%s182 + $0x60] sm:$0xff] %v4947
        %4996 = vst [vmem:[%s182 + $0x68] sm:$0xff] %v4948
        %4997 = vst [vmem:[%s182 + $0x70] sm:$0xff] %v4949
        %4998 = vst [vmem:[%s182 + $0x78] sm:$0xff] %v4950
        %4999 = vst [vmem:[%s182 + $0x80] sm:$0xff] %v4951
        %5000 = vst [vmem:[%s182 + $0x88] sm:$0xff] %v4952
        %5001 = vst [vmem:[%s182 + $0x90] sm:$0xff] %v4953
        %5002 = vst [vmem:[%s182 + $0x98] sm:$0xff] %v4954
        %5003 = vst [vmem:[%s182 + $0xa0] sm:$0xff] %v4955
        %5004 = vst [vmem:[%s182 + $0xa8] sm:$0xff] %v4956
        %5005 = vst [vmem:[%s182 + $0xb0] sm:$0xff] %v4957
        %5006 = vst [vmem:[%s182 + $0xb8] sm:$0xff] %v4958
        %5007 = vst [vmem:[%s182 + $0xc0] sm:$0xff] %v4959
        %5008 = vst [vmem:[%s182 + $0xc8] sm:$0xff] %v4960
        %5009 = vst [vmem:[%s182 + $0xd0] sm:$0xff] %v4961
        %5010 = vst [vmem:[%s182 + $0xd8] sm:$0xff] %v4962
        %5011 = vst [vmem:[%s182 + $0xe0] sm:$0xff] %v4963
        %5012 = vst [vmem:[%s182 + $0xe8] sm:$0xff] %v4964
        %5013 = vst [vmem:[%s182 + $0xf0] sm:$0xff] %v4965
        %5014 = vst [vmem:[%s182 + $0xf8] sm:$0xff] %v4966
        %5015 = vst [vmem:[%s182 + $0x100] sm:$0xff] %v4967
        %5016 = vst [vmem:[%s182 + $0x108] sm:$0xff] %v4968
        %5017 = vst [vmem:[%s182 + $0x110] sm:$0xff] %v4969
        %5018 = vst [vmem:[%s182 + $0x118] sm:$0xff] %v4970
        %5019 = vst [vmem:[%s182 + $0x120] sm:$0xff] %v4971
        %5020 = vst [vmem:[%s182 + $0x128] sm:$0xff] %v4972
        %5021 = vst [vmem:[%s182 + $0x130] sm:$0xff] %v4973
        %5022 = vst [vmem:[%s182 + $0x138] sm:$0xff] %v4974
        %5023 = vst [vmem:[%s182 + $0x140] sm:$0xff] %v4975
        %5024 = vst [vmem:[%s182 + $0x148] sm:$0xff] %v4976
        %5025 = vst [vmem:[%s182 + $0x150] sm:$0xff] %v4977
        %5026 = vst [vmem:[%s182 + $0x158] sm:$0xff] %v4978
        %5027 = vst [vmem:[%s182 + $0x160] sm:$0xff] %v4979
        %5028 = vst [vmem:[%s182 + $0x168] sm:$0xff] %v4980
        %5029 = vst [vmem:[%s182 + $0x170] sm:$0xff] %v4981
        %5030 = vst [vmem:[%s182 + $0x178] sm:$0xff] %v4982
        %s5031 = sand.u32 %s101, 1
        %s5032 = scalar_lea.sflag [#allocation4], %s5031
        %s5033 = sand.u32 %s101, 1
        %s5034 = smul.addr %s5033, 384
        %s5035 = scalar_lea.vmem [#allocation3], %s5034
        // Predicated region
        $region29: #{tpu_custom_call.1} parent=27 // pred_check
          %p5036 = pneg %p111
        $region30: #{tpu_custom_call.1} parent=27 // pred_check_branch
          %5038 = sbr.rel (%p5036) target = $region32
        $region31: #{tpu_custom_call.1} parent=27 // pred_region
          %s5040 = ssub.s32 6144, 6144
          %5041 = vsyncadd %s5032, %s5040
          %s5042 = smul.addr %s23, 48
          %s5043 = sadd.s32 %s22, %s5042
          %s5044 = smul.addr %s21, 48
          %s5045 = sadd.s32 %s5043, %s5044
          %s5046 = smul.addr %s5045, 128
          %s5047 = scalar_lea.hbm %s2, %s5046
          %s5048 = sshll.u32 %s5035, 4
          %s5049 = int_to_ptr.vmem [resolvable:$true] %s5048
          %5054 = dma.vmem_to_hbm [thread:$0]  %s5049, 6144, %s5047, %s5032, 128, 128, 8
        $region32: #{tpu_custom_call.1} parent=27 // pred_fallthru
          _
      $region28: #{tpu_custom_call.1} parent=5 // pred_fallthru
        _
      %p5055 = scmp.le.s32.totalorder 2, %s11
      // Predicated region
      $region33: #{tpu_custom_call.1} parent=5 // pred_check
        %p5056 = pneg %p5055
      $region34: #{tpu_custom_call.1} parent=5 // pred_check_branch
        %5058 = sbr.rel (%p5056) target = $region36
      $region35: #{tpu_custom_call.1} parent=5 // pred_region
        %s5059 = ssub.s32 %s11, 2
        // Predicated region
        $region37: #{tpu_custom_call.1} parent=35 // pred_check
          %p5060 = pneg %p117
        $region38: #{tpu_custom_call.1} parent=35 // pred_check_branch
          %5062 = sbr.rel (%p5060) target = $region40
        $region39: #{tpu_custom_call.1} parent=35 // pred_region
          %s5063 = sand.u32 %s102, 1
          %s5064 = scalar_lea.sflag [#allocation4], %s5063
          %s5065 = sand.u32 %s102, 1
          %s5066 = smul.addr %s5065, 384
          %s5067 = scalar_lea.vmem [#allocation3], %s5066
          %5068 = dma.done %s5064, 6144
        $region40: #{tpu_custom_call.1} parent=35 // pred_fallthru
          _
      $region36: #{tpu_custom_call.1} parent=5 // pred_fallthru
        _
    $region6: #{tpu_custom_call.1} parent=1 // loop_footer
      %s15 = sadd.s32 1, %s11
    $region7: #{tpu_custom_call.1} parent=1 // loop_footer_branch
      %10 = sbr.rel target = $region3
    $region8: #{tpu_custom_call.1} parent=1 // loop_exit
      _
    %5069 = vsyncpa [#allocation4], 1
    %s5070 = scalar_lea.sflag [#allocation4], 1
    %5071 = vsyncpa %s5070, 1

</llo_original>
